<compile_context>
chip_gen: v5e
topology: v5e:2x2
jax: 0.10.0
libtpu: 0.0.40
codegen_flags: <defaults>
</compile_context>

<pallas_src>
import functools

import jax
import jax.numpy as jnp
from jax import lax
from jax.experimental import pallas as pl
from jax.experimental.pallas import tpu as pltpu


def autopad(k, p=None, d=1):
    """Same-shape padding (mirrors the PyTorch helper)."""
    if d > 1:
        k = d * (k - 1) + 1
    if p is None:
        p = k // 2
    return p


def _largest_divisor_leq(n, cap=8):
    for t in range(min(cap, n), 0, -1):
        if n % t == 0:
            return t
    return 1


# ----------------------------------------------------------------------------
# Pallas kernel: fused im2col + matmul + BN-bias + SiLU epilogue
# ----------------------------------------------------------------------------
def _conv_bn_silu_kernel(x_ref, w_ref, b_ref, o_ref, *, taps, tile_h, wo,
                         stride, dil):
    """One grid step = one batch element x `tile_h` output rows.

    x_ref: (1, Hp, Wp, Cin)         bf16  padded NHWC image (full-image block)
    w_ref: (ntaps, Cin, Cout_p)     bf16  BN-folded, tap-major weights
    b_ref: (1, Cout_p)              f32   BN-folded bias
    o_ref: (1, tile_h, Wo, Cout_p)  f32   lane-dense (Cout_p % 128 == 0)
    """
    cout_p = o_ref.shape[-1]
    h0 = pl.program_id(1) * (tile_h * stride)

    # Hoist the small per-tap weight tiles and the bias out of the row loop.
    w_taps = [w_ref[t] for t in range(len(taps))]
    bias = b_ref[...]                                        # (1, Cout_p) f32

    for r in range(tile_h):                                  # static unroll (<= 8)
        acc = jnp.zeros((wo, cout_p), jnp.float32)
        for t, (di, dj) in enumerate(taps):                  # static unroll (k*k)
            row = h0 + r * stride + di * dil
            if stride == 1:
                a = x_ref[0, row, pl.ds(dj * dil, wo), :]            # (Wo, Cin) bf16
            else:
                a = x_ref[0, row, pl.ds(dj * dil, wo, stride=stride), :]
            acc = acc + jnp.dot(a, w_taps[t],
                                preferred_element_type=jnp.float32)  # MXU, f32 acc
        y = acc + bias                                       # folded BN bias
        # SiLU: y * sigmoid(y).  exp + approx reciprocal both ride the EUP slot.
        y = y * pl.reciprocal(1.0 + jnp.exp(-y), approx=True)
        o_ref[0, r, :, :] = y.astype(o_ref.dtype)


# ----------------------------------------------------------------------------
# Parameter prep (runs once, OUTSIDE the jitted forward)
# ----------------------------------------------------------------------------
def fuse_conv_bn(w_oihw, bn):
    """Fold eval-mode BatchNorm into the preceding (bias-free) conv."""
    scale = bn["gamma"] / jnp.sqrt(bn["var"] + bn["eps"])
    return w_oihw * scale.reshape(-1, 1, 1, 1), bn["beta"] - bn["mean"] * scale


def prepare_conv_params(w_oihw, bn, groups=1):
    """BN fold + tap-major, block-diagonal-over-groups, lane-padded bf16 weights."""
    w, b = fuse_conv_bn(w_oihw, bn)
    cout, cin_g, kh, kw = w.shape
    cin = cin_g * groups
    cout_g = cout // groups
    cout_p = ((cout + 127) // 128) * 128                     # lane-dense output

    w_full = jnp.zeros((kh * kw, cin, cout_p), jnp.float32)
    for g in range(groups):
        wg = w[g * cout_g:(g + 1) * cout_g]                  # (Cout_g, Cin_g, kh, kw)
        wt = jnp.transpose(wg, (2, 3, 1, 0)).reshape(kh * kw, cin_g, cout_g)
        w_full = w_full.at[:, g * cin_g:(g + 1) * cin_g,
                           g * cout_g:(g + 1) * cout_g].set(wt)
    bias = jnp.zeros((1, cout_p), jnp.float32).at[0, :cout].set(b)
    return w_full.astype(jnp.bfloat16), bias, cout


# ----------------------------------------------------------------------------
# Forward wrapper
# ----------------------------------------------------------------------------
def conv_bn_silu_forward(x_nchw, w_taps, bias, *, k, stride, pad, dil, cout):
    n, cin, h, w = x_nchw.shape
    ntaps, cin_w, cout_p = w_taps.shape
    assert cin_w == cin and ntaps == k * k

    x = jnp.transpose(x_nchw, (0, 2, 3, 1)).astype(jnp.bfloat16)   # NHWC, bf16
    if pad:
        x = jnp.pad(x, ((0, 0), (pad, pad), (pad, pad), (0, 0)))
    hp, wp = h + 2 * pad, w + 2 * pad
    keff = dil * (k - 1) + 1
    ho = (hp - keff) // stride + 1
    wo = (wp - keff) // stride + 1

    tile_h = _largest_divisor_leq(ho, 8)
    taps = tuple((di, dj) for di in range(k) for dj in range(k))
    kern = functools.partial(_conv_bn_silu_kernel, taps=taps, tile_h=tile_h,
                             wo=wo, stride=stride, dil=dil)

    out = pl.pallas_call(
        kern,
        out_shape=jax.ShapeDtypeStruct((n, ho, wo, cout_p), jnp.float32),
        grid=(n, ho // tile_h),
        in_specs=[
            pl.BlockSpec((1, hp, wp, cin), lambda b, t: (b, 0, 0, 0)),
            pl.BlockSpec((ntaps, cin, cout_p), lambda b, t: (0, 0, 0)),
            pl.BlockSpec((1, cout_p), lambda b, t: (0, 0)),
        ],
        out_specs=pl.BlockSpec((1, tile_h, wo, cout_p), lambda b, t: (b, t, 0, 0)),
        compiler_params=pltpu.CompilerParams(
            dimension_semantics=("parallel", "parallel"),
            vmem_limit_bytes=32 * 1024 * 1024),
    )(x, w_taps, bias)

    out = out[..., :cout]                                    # drop lane padding
    return jnp.transpose(out, (0, 3, 1, 2))                  # back to NCHW


# ----------------------------------------------------------------------------
# Pure-JAX reference (mirrors PyTorch Conv.forward, eval-mode BN), for checking
# ----------------------------------------------------------------------------
def conv_bn_silu_ref(x, w, bn, stride, pad, dil, groups):
    y = lax.conv_general_dilated(
        x, w, (stride, stride), [(pad, pad), (pad, pad)],
        rhs_dilation=(dil, dil),
        dimension_numbers=("NCHW", "OIHW", "NCHW"),
        feature_group_count=groups,
        precision=lax.Precision.HIGHEST)
    scale = bn["gamma"] / jnp.sqrt(bn["var"] + bn["eps"])
    y = (y - bn["mean"].reshape(1, -1, 1, 1)) * scale.reshape(1, -1, 1, 1) \
        + bn["beta"].reshape(1, -1, 1, 1)
    return y * jax.nn.sigmoid(y)                             # SiLU


# ----------------------------------------------------------------------------
if __name__ == "__main__":
    key = jax.random.PRNGKey(0)
    N, Cin, H, W = 2, 4, 16, 16
    Cout, K, stride, groups, dil = 8, 3, 1, 1, 1
    pad = autopad(K, None, dil)

    kx, kw_, kg, kb, km, kv = jax.random.split(key, 6)
    x = jax.random.normal(kx, (N, Cin, H, W), jnp.float32)
    w = 0.1 * jax.random.normal(kw_, (Cout, Cin // groups, K, K), jnp.float32)
    bn = dict(
        gamma=1.0 + 0.1 * jax.random.normal(kg, (Cout,), jnp.float32),
        beta=0.1 * jax.random.normal(kb, (Cout,), jnp.float32),
        mean=0.1 * jax.random.normal(km, (Cout,), jnp.float32),
        var=1.0 + 0.5 * jax.random.uniform(kv, (Cout,), jnp.float32),
        eps=1e-5,
    )

    # Weight prep (BN fold, tap-major layout, bf16 cast, lane padding): once, not jitted.
    w_taps, bias, cout = prepare_conv_params(w, bn, groups)

    fwd = jax.jit(functools.partial(
        conv_bn_silu_forward, k=K, stride=stride, pad=pad, dil=dil, cout=cout))
    out = jax.block_until_ready(fwd(x, w_taps, bias))

    ref = jax.block_until_ready(conv_bn_silu_ref(x, w, bn, stride, pad, dil, groups))

    assert out.shape == (N, Cout, H, W), out.shape
    assert bool(jnp.all(jnp.isfinite(out)))
    max_err = float(jnp.max(jnp.abs(out - ref)))
    assert max_err < 5e-2, f"mismatch vs reference: {max_err}"
    print("KERNEL_OK")
</pallas_src>

<mosaic_0001>
module attributes {stable_mosaic.version = 11 : i64} {
  func.func @_conv_bn_silu_kernel(%arg0: i32, %arg1: i32, %arg2: memref<1x18x18x4xbf16, #tpu.memory_space<vmem>>, %arg3: memref<9x4x128xbf16, #tpu.memory_space<vmem>>, %arg4: memref<1x128xf32, #tpu.memory_space<vmem>>, %arg5: memref<1x8x16x128xf32, #tpu.memory_space<vmem>>) attributes {dimension_semantics = [#tpu.dimension_semantics<parallel>, #tpu.dimension_semantics<parallel>], iteration_bounds = array<i64: 2, 2>, scalar_prefetch = 0 : i64, scratch_operands = 0 : i64, tpu.core_type = #tpu.core_type<tc>, window_params = [{transform_indices = @transform_0, window_bounds = array<i64: 1, 18, 18, 4>}, {pipeline_mode = #tpu.pipeline_mode<synchronous>, transform_indices = @transform_1, window_bounds = array<i64: 9, 4, 128>}, {pipeline_mode = #tpu.pipeline_mode<synchronous>, transform_indices = @transform_2, window_bounds = array<i64: 1, 128>}, {transform_indices = @transform_3, window_bounds = array<i64: 1, 8, 16, 128>}]} {
    %c8_i32 = arith.constant 8 : i32
    %0 = arith.muli %arg1, %c8_i32 : i32
    %c0 = arith.constant 0 : index
    %c0_0 = arith.constant 0 : index
    %c0_1 = arith.constant 0 : index
    %1 = vector.load %arg3[%c0, %c0_0, %c0_1] : memref<9x4x128xbf16, #tpu.memory_space<vmem>>, vector<1x4x128xbf16>
    %2 = vector.shape_cast %1 : vector<1x4x128xbf16> to vector<4x128xbf16>
    %c1 = arith.constant 1 : index
    %c0_2 = arith.constant 0 : index
    %c0_3 = arith.constant 0 : index
    %3 = vector.load %arg3[%c1, %c0_2, %c0_3] : memref<9x4x128xbf16, #tpu.memory_space<vmem>>, vector<1x4x128xbf16>
    %4 = vector.shape_cast %3 : vector<1x4x128xbf16> to vector<4x128xbf16>
    %c2 = arith.constant 2 : index
    %c0_4 = arith.constant 0 : index
    %c0_5 = arith.constant 0 : index
    %5 = vector.load %arg3[%c2, %c0_4, %c0_5] : memref<9x4x128xbf16, #tpu.memory_space<vmem>>, vector<1x4x128xbf16>
    %6 = vector.shape_cast %5 : vector<1x4x128xbf16> to vector<4x128xbf16>
    %c3 = arith.constant 3 : index
    %c0_6 = arith.constant 0 : index
    %c0_7 = arith.constant 0 : index
    %7 = vector.load %arg3[%c3, %c0_6, %c0_7] : memref<9x4x128xbf16, #tpu.memory_space<vmem>>, vector<1x4x128xbf16>
    %8 = vector.shape_cast %7 : vector<1x4x128xbf16> to vector<4x128xbf16>
    %c4 = arith.constant 4 : index
    %c0_8 = arith.constant 0 : index
    %c0_9 = arith.constant 0 : index
    %9 = vector.load %arg3[%c4, %c0_8, %c0_9] : memref<9x4x128xbf16, #tpu.memory_space<vmem>>, vector<1x4x128xbf16>
    %10 = vector.shape_cast %9 : vector<1x4x128xbf16> to vector<4x128xbf16>
    %c5 = arith.constant 5 : index
    %c0_10 = arith.constant 0 : index
    %c0_11 = arith.constant 0 : index
    %11 = vector.load %arg3[%c5, %c0_10, %c0_11] : memref<9x4x128xbf16, #tpu.memory_space<vmem>>, vector<1x4x128xbf16>
    %12 = vector.shape_cast %11 : vector<1x4x128xbf16> to vector<4x128xbf16>
    %c6 = arith.constant 6 : index
    %c0_12 = arith.constant 0 : index
    %c0_13 = arith.constant 0 : index
    %13 = vector.load %arg3[%c6, %c0_12, %c0_13] : memref<9x4x128xbf16, #tpu.memory_space<vmem>>, vector<1x4x128xbf16>
    %14 = vector.shape_cast %13 : vector<1x4x128xbf16> to vector<4x128xbf16>
    %c7 = arith.constant 7 : index
    %c0_14 = arith.constant 0 : index
    %c0_15 = arith.constant 0 : index
    %15 = vector.load %arg3[%c7, %c0_14, %c0_15] : memref<9x4x128xbf16, #tpu.memory_space<vmem>>, vector<1x4x128xbf16>
    %16 = vector.shape_cast %15 : vector<1x4x128xbf16> to vector<4x128xbf16>
    %c8 = arith.constant 8 : index
    %c0_16 = arith.constant 0 : index
    %c0_17 = arith.constant 0 : index
    %17 = vector.load %arg3[%c8, %c0_16, %c0_17] : memref<9x4x128xbf16, #tpu.memory_space<vmem>>, vector<1x4x128xbf16>
    %18 = vector.shape_cast %17 : vector<1x4x128xbf16> to vector<4x128xbf16>
    %c0_18 = arith.constant 0 : index
    %c0_19 = arith.constant 0 : index
    %19 = vector.load %arg4[%c0_18, %c0_19] : memref<1x128xf32, #tpu.memory_space<vmem>>, vector<1x128xf32>
    %cst = arith.constant 0.000000e+00 : f32
    %20 = vector.broadcast %cst : f32 to vector<16x128xf32>
    %c0_i32 = arith.constant 0 : i32
    %21 = arith.addi %0, %c0_i32 : i32
    %c0_i32_20 = arith.constant 0 : i32
    %22 = arith.addi %21, %c0_i32_20 : i32
    %c0_21 = arith.constant 0 : index
    %23 = arith.index_cast %22 : i32 to index
    %c0_22 = arith.constant 0 : index
    %c0_23 = arith.constant 0 : index
    %24 = vector.load %arg2[%c0_21, %23, %c0_22, %c0_23] : memref<1x18x18x4xbf16, #tpu.memory_space<vmem>>, vector<1x1x16x4xbf16>
    %25 = vector.shape_cast %24 : vector<1x1x16x4xbf16> to vector<16x4xbf16>
    %cst_24 = arith.constant dense<0.000000e+00> : vector<16x128xf32>
    %26 = tpu.matmul %25, %2, %cst_24 {dimension_numbers = #tpu.dot_dimension_numbers<[1], [0], [0], [1], [0, 0, 1, 1], [], []>} : vector<16x4xbf16>, vector<4x128xbf16>, vector<16x128xf32> -> vector<16x128xf32>
    %27 = arith.addf %20, %26 : vector<16x128xf32>
    %c0_i32_25 = arith.constant 0 : i32
    %28 = arith.addi %0, %c0_i32_25 : i32
    %c0_i32_26 = arith.constant 0 : i32
    %29 = arith.addi %28, %c0_i32_26 : i32
    %c0_27 = arith.constant 0 : index
    %30 = arith.index_cast %29 : i32 to index
    %c1_28 = arith.constant 1 : index
    %c0_29 = arith.constant 0 : index
    %31 = vector.load %arg2[%c0_27, %30, %c1_28, %c0_29] : memref<1x18x18x4xbf16, #tpu.memory_space<vmem>>, vector<1x1x16x4xbf16>
    %32 = vector.shape_cast %31 : vector<1x1x16x4xbf16> to vector<16x4xbf16>
    %cst_30 = arith.constant dense<0.000000e+00> : vector<16x128xf32>
    %33 = tpu.matmul %32, %4, %cst_30 {dimension_numbers = #tpu.dot_dimension_numbers<[1], [0], [0], [1], [0, 0, 1, 1], [], []>} : vector<16x4xbf16>, vector<4x128xbf16>, vector<16x128xf32> -> vector<16x128xf32>
    %34 = arith.addf %27, %33 : vector<16x128xf32>
    %c0_i32_31 = arith.constant 0 : i32
    %35 = arith.addi %0, %c0_i32_31 : i32
    %c0_i32_32 = arith.constant 0 : i32
    %36 = arith.addi %35, %c0_i32_32 : i32
    %c0_33 = arith.constant 0 : index
    %37 = arith.index_cast %36 : i32 to index
    %c2_34 = arith.constant 2 : index
    %c0_35 = arith.constant 0 : index
    %38 = vector.load %arg2[%c0_33, %37, %c2_34, %c0_35] : memref<1x18x18x4xbf16, #tpu.memory_space<vmem>>, vector<1x1x16x4xbf16>
    %39 = vector.shape_cast %38 : vector<1x1x16x4xbf16> to vector<16x4xbf16>
    %cst_36 = arith.constant dense<0.000000e+00> : vector<16x128xf32>
    %40 = tpu.matmul %39, %6, %cst_36 {dimension_numbers = #tpu.dot_dimension_numbers<[1], [0], [0], [1], [0, 0, 1, 1], [], []>} : vector<16x4xbf16>, vector<4x128xbf16>, vector<16x128xf32> -> vector<16x128xf32>
    %41 = arith.addf %34, %40 : vector<16x128xf32>
    %c0_i32_37 = arith.constant 0 : i32
    %42 = arith.addi %0, %c0_i32_37 : i32
    %c1_i32 = arith.constant 1 : i32
    %43 = arith.addi %42, %c1_i32 : i32
    %c0_38 = arith.constant 0 : index
    %44 = arith.index_cast %43 : i32 to index
    %c0_39 = arith.constant 0 : index
    %c0_40 = arith.constant 0 : index
    %45 = vector.load %arg2[%c0_38, %44, %c0_39, %c0_40] : memref<1x18x18x4xbf16, #tpu.memory_space<vmem>>, vector<1x1x16x4xbf16>
    %46 = vector.shape_cast %45 : vector<1x1x16x4xbf16> to vector<16x4xbf16>
    %cst_41 = arith.constant dense<0.000000e+00> : vector<16x128xf32>
    %47 = tpu.matmul %46, %8, %cst_41 {dimension_numbers = #tpu.dot_dimension_numbers<[1], [0], [0], [1], [0, 0, 1, 1], [], []>} : vector<16x4xbf16>, vector<4x128xbf16>, vector<16x128xf32> -> vector<16x128xf32>
    %48 = arith.addf %41, %47 : vector<16x128xf32>
    %c0_i32_42 = arith.constant 0 : i32
    %49 = arith.addi %0, %c0_i32_42 : i32
    %c1_i32_43 = arith.constant 1 : i32
    %50 = arith.addi %49, %c1_i32_43 : i32
    %c0_44 = arith.constant 0 : index
    %51 = arith.index_cast %50 : i32 to index
    %c1_45 = arith.constant 1 : index
    %c0_46 = arith.constant 0 : index
    %52 = vector.load %arg2[%c0_44, %51, %c1_45, %c0_46] : memref<1x18x18x4xbf16, #tpu.memory_space<vmem>>, vector<1x1x16x4xbf16>
    %53 = vector.shape_cast %52 : vector<1x1x16x4xbf16> to vector<16x4xbf16>
    %cst_47 = arith.constant dense<0.000000e+00> : vector<16x128xf32>
    %54 = tpu.matmul %53, %10, %cst_47 {dimension_numbers = #tpu.dot_dimension_numbers<[1], [0], [0], [1], [0, 0, 1, 1], [], []>} : vector<16x4xbf16>, vector<4x128xbf16>, vector<16x128xf32> -> vector<16x128xf32>
    %55 = arith.addf %48, %54 : vector<16x128xf32>
    %c0_i32_48 = arith.constant 0 : i32
    %56 = arith.addi %0, %c0_i32_48 : i32
    %c1_i32_49 = arith.constant 1 : i32
    %57 = arith.addi %56, %c1_i32_49 : i32
    %c0_50 = arith.constant 0 : index
    %58 = arith.index_cast %57 : i32 to index
    %c2_51 = arith.constant 2 : index
    %c0_52 = arith.constant 0 : index
    %59 = vector.load %arg2[%c0_50, %58, %c2_51, %c0_52] : memref<1x18x18x4xbf16, #tpu.memory_space<vmem>>, vector<1x1x16x4xbf16>
    %60 = vector.shape_cast %59 : vector<1x1x16x4xbf16> to vector<16x4xbf16>
    %cst_53 = arith.constant dense<0.000000e+00> : vector<16x128xf32>
    %61 = tpu.matmul %60, %12, %cst_53 {dimension_numbers = #tpu.dot_dimension_numbers<[1], [0], [0], [1], [0, 0, 1, 1], [], []>} : vector<16x4xbf16>, vector<4x128xbf16>, vector<16x128xf32> -> vector<16x128xf32>
    %62 = arith.addf %55, %61 : vector<16x128xf32>
    %c0_i32_54 = arith.constant 0 : i32
    %63 = arith.addi %0, %c0_i32_54 : i32
    %c2_i32 = arith.constant 2 : i32
    %64 = arith.addi %63, %c2_i32 : i32
    %c0_55 = arith.constant 0 : index
    %65 = arith.index_cast %64 : i32 to index
    %c0_56 = arith.constant 0 : index
    %c0_57 = arith.constant 0 : index
    %66 = vector.load %arg2[%c0_55, %65, %c0_56, %c0_57] : memref<1x18x18x4xbf16, #tpu.memory_space<vmem>>, vector<1x1x16x4xbf16>
    %67 = vector.shape_cast %66 : vector<1x1x16x4xbf16> to vector<16x4xbf16>
    %cst_58 = arith.constant dense<0.000000e+00> : vector<16x128xf32>
    %68 = tpu.matmul %67, %14, %cst_58 {dimension_numbers = #tpu.dot_dimension_numbers<[1], [0], [0], [1], [0, 0, 1, 1], [], []>} : vector<16x4xbf16>, vector<4x128xbf16>, vector<16x128xf32> -> vector<16x128xf32>
    %69 = arith.addf %62, %68 : vector<16x128xf32>
    %c0_i32_59 = arith.constant 0 : i32
    %70 = arith.addi %0, %c0_i32_59 : i32
    %c2_i32_60 = arith.constant 2 : i32
    %71 = arith.addi %70, %c2_i32_60 : i32
    %c0_61 = arith.constant 0 : index
    %72 = arith.index_cast %71 : i32 to index
    %c1_62 = arith.constant 1 : index
    %c0_63 = arith.constant 0 : index
    %73 = vector.load %arg2[%c0_61, %72, %c1_62, %c0_63] : memref<1x18x18x4xbf16, #tpu.memory_space<vmem>>, vector<1x1x16x4xbf16>
    %74 = vector.shape_cast %73 : vector<1x1x16x4xbf16> to vector<16x4xbf16>
    %cst_64 = arith.constant dense<0.000000e+00> : vector<16x128xf32>
    %75 = tpu.matmul %74, %16, %cst_64 {dimension_numbers = #tpu.dot_dimension_numbers<[1], [0], [0], [1], [0, 0, 1, 1], [], []>} : vector<16x4xbf16>, vector<4x128xbf16>, vector<16x128xf32> -> vector<16x128xf32>
    %76 = arith.addf %69, %75 : vector<16x128xf32>
    %c0_i32_65 = arith.constant 0 : i32
    %77 = arith.addi %0, %c0_i32_65 : i32
    %c2_i32_66 = arith.constant 2 : i32
    %78 = arith.addi %77, %c2_i32_66 : i32
    %c0_67 = arith.constant 0 : index
    %79 = arith.index_cast %78 : i32 to index
    %c2_68 = arith.constant 2 : index
    %c0_69 = arith.constant 0 : index
    %80 = vector.load %arg2[%c0_67, %79, %c2_68, %c0_69] : memref<1x18x18x4xbf16, #tpu.memory_space<vmem>>, vector<1x1x16x4xbf16>
    %81 = vector.shape_cast %80 : vector<1x1x16x4xbf16> to vector<16x4xbf16>
    %cst_70 = arith.constant dense<0.000000e+00> : vector<16x128xf32>
    %82 = tpu.matmul %81, %18, %cst_70 {dimension_numbers = #tpu.dot_dimension_numbers<[1], [0], [0], [1], [0, 0, 1, 1], [], []>} : vector<16x4xbf16>, vector<4x128xbf16>, vector<16x128xf32> -> vector<16x128xf32>
    %83 = arith.addf %76, %82 : vector<16x128xf32>
    %84 = vector.broadcast %19 : vector<1x128xf32> to vector<16x128xf32>
    %85 = arith.addf %83, %84 : vector<16x128xf32>
    %cst_71 = arith.constant 0.000000e+00 : f32
    %86 = vector.broadcast %cst_71 : f32 to vector<16x128xf32>
    %87 = arith.subf %86, %85 : vector<16x128xf32>
    %88 = math.exp %87 : vector<16x128xf32>
    %cst_72 = arith.constant 1.000000e+00 : f32
    %89 = vector.broadcast %cst_72 : f32 to vector<16x128xf32>
    %90 = arith.addf %89, %88 : vector<16x128xf32>
    %91 = tpu.reciprocal %90 {approx = true} : vector<16x128xf32> -> vector<16x128xf32>
    %92 = arith.mulf %85, %91 : vector<16x128xf32>
    %c0_73 = arith.constant 0 : index
    %c0_74 = arith.constant 0 : index
    %c0_75 = arith.constant 0 : index
    %c0_76 = arith.constant 0 : index
    %93 = vector.load %arg5[%c0_73, %c0_74, %c0_75, %c0_76] : memref<1x8x16x128xf32, #tpu.memory_space<vmem>>, vector<1x1x16x128xf32>
    %94 = vector.shape_cast %93 : vector<1x1x16x128xf32> to vector<16x128xf32>
    %95 = vector.shape_cast %92 : vector<16x128xf32> to vector<1x1x16x128xf32>
    tpu.vector_store %arg5[%c0_73, %c0_74, %c0_75, %c0_76], %95 {strides = array<i32>} : memref<1x8x16x128xf32, #tpu.memory_space<vmem>>, vector<1x1x16x128xf32>,
    %cst_77 = arith.constant 0.000000e+00 : f32
    %96 = vector.broadcast %cst_77 : f32 to vector<16x128xf32>
    %c1_i32_78 = arith.constant 1 : i32
    %97 = arith.addi %0, %c1_i32_78 : i32
    %c0_i32_79 = arith.constant 0 : i32
    %98 = arith.addi %97, %c0_i32_79 : i32
    %c0_80 = arith.constant 0 : index
    %99 = arith.index_cast %98 : i32 to index
    %c0_81 = arith.constant 0 : index
    %c0_82 = arith.constant 0 : index
    %100 = vector.load %arg2[%c0_80, %99, %c0_81, %c0_82] : memref<1x18x18x4xbf16, #tpu.memory_space<vmem>>, vector<1x1x16x4xbf16>
    %101 = vector.shape_cast %100 : vector<1x1x16x4xbf16> to vector<16x4xbf16>
    %cst_83 = arith.constant dense<0.000000e+00> : vector<16x128xf32>
    %102 = tpu.matmul %101, %2, %cst_83 {dimension_numbers = #tpu.dot_dimension_numbers<[1], [0], [0], [1], [0, 0, 1, 1], [], []>} : vector<16x4xbf16>, vector<4x128xbf16>, vector<16x128xf32> -> vector<16x128xf32>
    %103 = arith.addf %96, %102 : vector<16x128xf32>
    %c1_i32_84 = arith.constant 1 : i32
    %104 = arith.addi %0, %c1_i32_84 : i32
    %c0_i32_85 = arith.constant 0 : i32
    %105 = arith.addi %104, %c0_i32_85 : i32
    %c0_86 = arith.constant 0 : index
    %106 = arith.index_cast %105 : i32 to index
    %c1_87 = arith.constant 1 : index
    %c0_88 = arith.constant 0 : index
    %107 = vector.load %arg2[%c0_86, %106, %c1_87, %c0_88] : memref<1x18x18x4xbf16, #tpu.memory_space<vmem>>, vector<1x1x16x4xbf16>
    %108 = vector.shape_cast %107 : vector<1x1x16x4xbf16> to vector<16x4xbf16>
    %cst_89 = arith.constant dense<0.000000e+00> : vector<16x128xf32>
    %109 = tpu.matmul %108, %4, %cst_89 {dimension_numbers = #tpu.dot_dimension_numbers<[1], [0], [0], [1], [0, 0, 1, 1], [], []>} : vector<16x4xbf16>, vector<4x128xbf16>, vector<16x128xf32> -> vector<16x128xf32>
    %110 = arith.addf %103, %109 : vector<16x128xf32>
    %c1_i32_90 = arith.constant 1 : i32
    %111 = arith.addi %0, %c1_i32_90 : i32
    %c0_i32_91 = arith.constant 0 : i32
    %112 = arith.addi %111, %c0_i32_91 : i32
    %c0_92 = arith.constant 0 : index
    %113 = arith.index_cast %112 : i32 to index
    %c2_93 = arith.constant 2 : index
    %c0_94 = arith.constant 0 : index
    %114 = vector.load %arg2[%c0_92, %113, %c2_93, %c0_94] : memref<1x18x18x4xbf16, #tpu.memory_space<vmem>>, vector<1x1x16x4xbf16>
    %115 = vector.shape_cast %114 : vector<1x1x16x4xbf16> to vector<16x4xbf16>
    %cst_95 = arith.constant dense<0.000000e+00> : vector<16x128xf32>
    %116 = tpu.matmul %115, %6, %cst_95 {dimension_numbers = #tpu.dot_dimension_numbers<[1], [0], [0], [1], [0, 0, 1, 1], [], []>} : vector<16x4xbf16>, vector<4x128xbf16>, vector<16x128xf32> -> vector<16x128xf32>
    %117 = arith.addf %110, %116 : vector<16x128xf32>
    %c1_i32_96 = arith.constant 1 : i32
    %118 = arith.addi %0, %c1_i32_96 : i32
    %c1_i32_97 = arith.constant 1 : i32
    %119 = arith.addi %118, %c1_i32_97 : i32
    %c0_98 = arith.constant 0 : index
    %120 = arith.index_cast %119 : i32 to index
    %c0_99 = arith.constant 0 : index
    %c0_100 = arith.constant 0 : index
    %121 = vector.load %arg2[%c0_98, %120, %c0_99, %c0_100] : memref<1x18x18x4xbf16, #tpu.memory_space<vmem>>, vector<1x1x16x4xbf16>
    %122 = vector.shape_cast %121 : vector<1x1x16x4xbf16> to vector<16x4xbf16>
    %cst_101 = arith.constant dense<0.000000e+00> : vector<16x128xf32>
    %123 = tpu.matmul %122, %8, %cst_101 {dimension_numbers = #tpu.dot_dimension_numbers<[1], [0], [0], [1], [0, 0, 1, 1], [], []>} : vector<16x4xbf16>, vector<4x128xbf16>, vector<16x128xf32> -> vector<16x128xf32>
    %124 = arith.addf %117, %123 : vector<16x128xf32>
    %c1_i32_102 = arith.constant 1 : i32
    %125 = arith.addi %0, %c1_i32_102 : i32
    %c1_i32_103 = arith.constant 1 : i32
    %126 = arith.addi %125, %c1_i32_103 : i32
    %c0_104 = arith.constant 0 : index
    %127 = arith.index_cast %126 : i32 to index
    %c1_105 = arith.constant 1 : index
    %c0_106 = arith.constant 0 : index
    %128 = vector.load %arg2[%c0_104, %127, %c1_105, %c0_106] : memref<1x18x18x4xbf16, #tpu.memory_space<vmem>>, vector<1x1x16x4xbf16>
    %129 = vector.shape_cast %128 : vector<1x1x16x4xbf16> to vector<16x4xbf16>
    %cst_107 = arith.constant dense<0.000000e+00> : vector<16x128xf32>
    %130 = tpu.matmul %129, %10, %cst_107 {dimension_numbers = #tpu.dot_dimension_numbers<[1], [0], [0], [1], [0, 0, 1, 1], [], []>} : vector<16x4xbf16>, vector<4x128xbf16>, vector<16x128xf32> -> vector<16x128xf32>
    %131 = arith.addf %124, %130 : vector<16x128xf32>
    %c1_i32_108 = arith.constant 1 : i32
    %132 = arith.addi %0, %c1_i32_108 : i32
    %c1_i32_109 = arith.constant 1 : i32
    %133 = arith.addi %132, %c1_i32_109 : i32
    %c0_110 = arith.constant 0 : index
    %134 = arith.index_cast %133 : i32 to index
    %c2_111 = arith.constant 2 : index
    %c0_112 = arith.constant 0 : index
    %135 = vector.load %arg2[%c0_110, %134, %c2_111, %c0_112] : memref<1x18x18x4xbf16, #tpu.memory_space<vmem>>, vector<1x1x16x4xbf16>
    %136 = vector.shape_cast %135 : vector<1x1x16x4xbf16> to vector<16x4xbf16>
    %cst_113 = arith.constant dense<0.000000e+00> : vector<16x128xf32>
    %137 = tpu.matmul %136, %12, %cst_113 {dimension_numbers = #tpu.dot_dimension_numbers<[1], [0], [0], [1], [0, 0, 1, 1], [], []>} : vector<16x4xbf16>, vector<4x128xbf16>, vector<16x128xf32> -> vector<16x128xf32>
    %138 = arith.addf %131, %137 : vector<16x128xf32>
    %c1_i32_114 = arith.constant 1 : i32
    %139 = arith.addi %0, %c1_i32_114 : i32
    %c2_i32_115 = arith.constant 2 : i32
    %140 = arith.addi %139, %c2_i32_115 : i32
    %c0_116 = arith.constant 0 : index
    %141 = arith.index_cast %140 : i32 to index
    %c0_117 = arith.constant 0 : index
    %c0_118 = arith.constant 0 : index
    %142 = vector.load %arg2[%c0_116, %141, %c0_117, %c0_118] : memref<1x18x18x4xbf16, #tpu.memory_space<vmem>>, vector<1x1x16x4xbf16>
    %143 = vector.shape_cast %142 : vector<1x1x16x4xbf16> to vector<16x4xbf16>
    %cst_119 = arith.constant dense<0.000000e+00> : vector<16x128xf32>
    %144 = tpu.matmul %143, %14, %cst_119 {dimension_numbers = #tpu.dot_dimension_numbers<[1], [0], [0], [1], [0, 0, 1, 1], [], []>} : vector<16x4xbf16>, vector<4x128xbf16>, vector<16x128xf32> -> vector<16x128xf32>
    %145 = arith.addf %138, %144 : vector<16x128xf32>
    %c1_i32_120 = arith.constant 1 : i32
    %146 = arith.addi %0, %c1_i32_120 : i32
    %c2_i32_121 = arith.constant 2 : i32
    %147 = arith.addi %146, %c2_i32_121 : i32
    %c0_122 = arith.constant 0 : index
    %148 = arith.index_cast %147 : i32 to index
    %c1_123 = arith.constant 1 : index
    %c0_124 = arith.constant 0 : index
    %149 = vector.load %arg2[%c0_122, %148, %c1_123, %c0_124] : memref<1x18x18x4xbf16, #tpu.memory_space<vmem>>, vector<1x1x16x4xbf16>
    %150 = vector.shape_cast %149 : vector<1x1x16x4xbf16> to vector<16x4xbf16>
    %cst_125 = arith.constant dense<0.000000e+00> : vector<16x128xf32>
    %151 = tpu.matmul %150, %16, %cst_125 {dimension_numbers = #tpu.dot_dimension_numbers<[1], [0], [0], [1], [0, 0, 1, 1], [], []>} : vector<16x4xbf16>, vector<4x128xbf16>, vector<16x128xf32> -> vector<16x128xf32>
    %152 = arith.addf %145, %151 : vector<16x128xf32>
    %c1_i32_126 = arith.constant 1 : i32
    %153 = arith.addi %0, %c1_i32_126 : i32
    %c2_i32_127 = arith.constant 2 : i32
    %154 = arith.addi %153, %c2_i32_127 : i32
    %c0_128 = arith.constant 0 : index
    %155 = arith.index_cast %154 : i32 to index
    %c2_129 = arith.constant 2 : index
    %c0_130 = arith.constant 0 : index
    %156 = vector.load %arg2[%c0_128, %155, %c2_129, %c0_130] : memref<1x18x18x4xbf16, #tpu.memory_space<vmem>>, vector<1x1x16x4xbf16>
    %157 = vector.shape_cast %156 : vector<1x1x16x4xbf16> to vector<16x4xbf16>
    %cst_131 = arith.constant dense<0.000000e+00> : vector<16x128xf32>
    %158 = tpu.matmul %157, %18, %cst_131 {dimension_numbers = #tpu.dot_dimension_numbers<[1], [0], [0], [1], [0, 0, 1, 1], [], []>} : vector<16x4xbf16>, vector<4x128xbf16>, vector<16x128xf32> -> vector<16x128xf32>
    %159 = arith.addf %152, %158 : vector<16x128xf32>
    %160 = vector.broadcast %19 : vector<1x128xf32> to vector<16x128xf32>
    %161 = arith.addf %159, %160 : vector<16x128xf32>
    %cst_132 = arith.constant 0.000000e+00 : f32
    %162 = vector.broadcast %cst_132 : f32 to vector<16x128xf32>
    %163 = arith.subf %162, %161 : vector<16x128xf32>
    %164 = math.exp %163 : vector<16x128xf32>
    %cst_133 = arith.constant 1.000000e+00 : f32
    %165 = vector.broadcast %cst_133 : f32 to vector<16x128xf32>
    %166 = arith.addf %165, %164 : vector<16x128xf32>
    %167 = tpu.reciprocal %166 {approx = true} : vector<16x128xf32> -> vector<16x128xf32>
    %168 = arith.mulf %161, %167 : vector<16x128xf32>
    %c0_134 = arith.constant 0 : index
    %c1_135 = arith.constant 1 : index
    %c0_136 = arith.constant 0 : index
    %c0_137 = arith.constant 0 : index
    %169 = vector.load %arg5[%c0_134, %c1_135, %c0_136, %c0_137] : memref<1x8x16x128xf32, #tpu.memory_space<vmem>>, vector<1x1x16x128xf32>
    %170 = vector.shape_cast %169 : vector<1x1x16x128xf32> to vector<16x128xf32>
    %171 = vector.shape_cast %168 : vector<16x128xf32> to vector<1x1x16x128xf32>
    tpu.vector_store %arg5[%c0_134, %c1_135, %c0_136, %c0_137], %171 {strides = array<i32>} : memref<1x8x16x128xf32, #tpu.memory_space<vmem>>, vector<1x1x16x128xf32>,
    %cst_138 = arith.constant 0.000000e+00 : f32
    %172 = vector.broadcast %cst_138 : f32 to vector<16x128xf32>
    %c2_i32_139 = arith.constant 2 : i32
    %173 = arith.addi %0, %c2_i32_139 : i32
    %c0_i32_140 = arith.constant 0 : i32
    %174 = arith.addi %173, %c0_i32_140 : i32
    %c0_141 = arith.constant 0 : index
    %175 = arith.index_cast %174 : i32 to index
    %c0_142 = arith.constant 0 : index
    %c0_143 = arith.constant 0 : index
    %176 = vector.load %arg2[%c0_141, %175, %c0_142, %c0_143] : memref<1x18x18x4xbf16, #tpu.memory_space<vmem>>, vector<1x1x16x4xbf16>
    %177 = vector.shape_cast %176 : vector<1x1x16x4xbf16> to vector<16x4xbf16>
    %cst_144 = arith.constant dense<0.000000e+00> : vector<16x128xf32>
    %178 = tpu.matmul %177, %2, %cst_144 {dimension_numbers = #tpu.dot_dimension_numbers<[1], [0], [0], [1], [0, 0, 1, 1], [], []>} : vector<16x4xbf16>, vector<4x128xbf16>, vector<16x128xf32> -> vector<16x128xf32>
    %179 = arith.addf %172, %178 : vector<16x128xf32>
    %c2_i32_145 = arith.constant 2 : i32
    %180 = arith.addi %0, %c2_i32_145 : i32
    %c0_i32_146 = arith.constant 0 : i32
    %181 = arith.addi %180, %c0_i32_146 : i32
    %c0_147 = arith.constant 0 : index
    %182 = arith.index_cast %181 : i32 to index
    %c1_148 = arith.constant 1 : index
    %c0_149 = arith.constant 0 : index
    %183 = vector.load %arg2[%c0_147, %182, %c1_148, %c0_149] : memref<1x18x18x4xbf16, #tpu.memory_space<vmem>>, vector<1x1x16x4xbf16>
    %184 = vector.shape_cast %183 : vector<1x1x16x4xbf16> to vector<16x4xbf16>
    %cst_150 = arith.constant dense<0.000000e+00> : vector<16x128xf32>
    %185 = tpu.matmul %184, %4, %cst_150 {dimension_numbers = #tpu.dot_dimension_numbers<[1], [0], [0], [1], [0, 0, 1, 1], [], []>} : vector<16x4xbf16>, vector<4x128xbf16>, vector<16x128xf32> -> vector<16x128xf32>
    %186 = arith.addf %179, %185 : vector<16x128xf32>
    %c2_i32_151 = arith.constant 2 : i32
    %187 = arith.addi %0, %c2_i32_151 : i32
    %c0_i32_152 = arith.constant 0 : i32
    %188 = arith.addi %187, %c0_i32_152 : i32
    %c0_153 = arith.constant 0 : index
    %189 = arith.index_cast %188 : i32 to index
    %c2_154 = arith.constant 2 : index
    %c0_155 = arith.constant 0 : index
    %190 = vector.load %arg2[%c0_153, %189, %c2_154, %c0_155] : memref<1x18x18x4xbf16, #tpu.memory_space<vmem>>, vector<1x1x16x4xbf16>
    %191 = vector.shape_cast %190 : vector<1x1x16x4xbf16> to vector<16x4xbf16>
    %cst_156 = arith.constant dense<0.000000e+00> : vector<16x128xf32>
    %192 = tpu.matmul %191, %6, %cst_156 {dimension_numbers = #tpu.dot_dimension_numbers<[1], [0], [0], [1], [0, 0, 1, 1], [], []>} : vector<16x4xbf16>, vector<4x128xbf16>, vector<16x128xf32> -> vector<16x128xf32>
    %193 = arith.addf %186, %192 : vector<16x128xf32>
    %c2_i32_157 = arith.constant 2 : i32
    %194 = arith.addi %0, %c2_i32_157 : i32
    %c1_i32_158 = arith.constant 1 : i32
    %195 = arith.addi %194, %c1_i32_158 : i32
    %c0_159 = arith.constant 0 : index
    %196 = arith.index_cast %195 : i32 to index
    %c0_160 = arith.constant 0 : index
    %c0_161 = arith.constant 0 : index
    %197 = vector.load %arg2[%c0_159, %196, %c0_160, %c0_161] : memref<1x18x18x4xbf16, #tpu.memory_space<vmem>>, vector<1x1x16x4xbf16>
    %198 = vector.shape_cast %197 : vector<1x1x16x4xbf16> to vector<16x4xbf16>
    %cst_162 = arith.constant dense<0.000000e+00> : vector<16x128xf32>
    %199 = tpu.matmul %198, %8, %cst_162 {dimension_numbers = #tpu.dot_dimension_numbers<[1], [0], [0], [1], [0, 0, 1, 1], [], []>} : vector<16x4xbf16>, vector<4x128xbf16>, vector<16x128xf32> -> vector<16x128xf32>
    %200 = arith.addf %193, %199 : vector<16x128xf32>
    %c2_i32_163 = arith.constant 2 : i32
    %201 = arith.addi %0, %c2_i32_163 : i32
    %c1_i32_164 = arith.constant 1 : i32
    %202 = arith.addi %201, %c1_i32_164 : i32
    %c0_165 = arith.constant 0 : index
    %203 = arith.index_cast %202 : i32 to index
    %c1_166 = arith.constant 1 : index
    %c0_167 = arith.constant 0 : index
    %204 = vector.load %arg2[%c0_165, %203, %c1_166, %c0_167] : memref<1x18x18x4xbf16, #tpu.memory_space<vmem>>, vector<1x1x16x4xbf16>
    %205 = vector.shape_cast %204 : vector<1x1x16x4xbf16> to vector<16x4xbf16>
    %cst_168 = arith.constant dense<0.000000e+00> : vector<16x128xf32>
    %206 = tpu.matmul %205, %10, %cst_168 {dimension_numbers = #tpu.dot_dimension_numbers<[1], [0], [0], [1], [0, 0, 1, 1], [], []>} : vector<16x4xbf16>, vector<4x128xbf16>, vector<16x128xf32> -> vector<16x128xf32>
    %207 = arith.addf %200, %206 : vector<16x128xf32>
    %c2_i32_169 = arith.constant 2 : i32
    %208 = arith.addi %0, %c2_i32_169 : i32
    %c1_i32_170 = arith.constant 1 : i32
    %209 = arith.addi %208, %c1_i32_170 : i32
    %c0_171 = arith.constant 0 : index
    %210 = arith.index_cast %209 : i32 to index
    %c2_172 = arith.constant 2 : index
    %c0_173 = arith.constant 0 : index
    %211 = vector.load %arg2[%c0_171, %210, %c2_172, %c0_173] : memref<1x18x18x4xbf16, #tpu.memory_space<vmem>>, vector<1x1x16x4xbf16>
    %212 = vector.shape_cast %211 : vector<1x1x16x4xbf16> to vector<16x4xbf16>
    %cst_174 = arith.constant dense<0.000000e+00> : vector<16x128xf32>
    %213 = tpu.matmul %212, %12, %cst_174 {dimension_numbers = #tpu.dot_dimension_numbers<[1], [0], [0], [1], [0, 0, 1, 1], [], []>} : vector<16x4xbf16>, vector<4x128xbf16>, vector<16x128xf32> -> vector<16x128xf32>
    %214 = arith.addf %207, %213 : vector<16x128xf32>
    %c2_i32_175 = arith.constant 2 : i32
    %215 = arith.addi %0, %c2_i32_175 : i32
    %c2_i32_176 = arith.constant 2 : i32
    %216 = arith.addi %215, %c2_i32_176 : i32
    %c0_177 = arith.constant 0 : index
    %217 = arith.index_cast %216 : i32 to index
    %c0_178 = arith.constant 0 : index
    %c0_179 = arith.constant 0 : index
    %218 = vector.load %arg2[%c0_177, %217, %c0_178, %c0_179] : memref<1x18x18x4xbf16, #tpu.memory_space<vmem>>, vector<1x1x16x4xbf16>
    %219 = vector.shape_cast %218 : vector<1x1x16x4xbf16> to vector<16x4xbf16>
    %cst_180 = arith.constant dense<0.000000e+00> : vector<16x128xf32>
    %220 = tpu.matmul %219, %14, %cst_180 {dimension_numbers = #tpu.dot_dimension_numbers<[1], [0], [0], [1], [0, 0, 1, 1], [], []>} : vector<16x4xbf16>, vector<4x128xbf16>, vector<16x128xf32> -> vector<16x128xf32>
    %221 = arith.addf %214, %220 : vector<16x128xf32>
    %c2_i32_181 = arith.constant 2 : i32
    %222 = arith.addi %0, %c2_i32_181 : i32
    %c2_i32_182 = arith.constant 2 : i32
    %223 = arith.addi %222, %c2_i32_182 : i32
    %c0_183 = arith.constant 0 : index
    %224 = arith.index_cast %223 : i32 to index
    %c1_184 = arith.constant 1 : index
    %c0_185 = arith.constant 0 : index
    %225 = vector.load %arg2[%c0_183, %224, %c1_184, %c0_185] : memref<1x18x18x4xbf16, #tpu.memory_space<vmem>>, vector<1x1x16x4xbf16>
    %226 = vector.shape_cast %225 : vector<1x1x16x4xbf16> to vector<16x4xbf16>
    %cst_186 = arith.constant dense<0.000000e+00> : vector<16x128xf32>
    %227 = tpu.matmul %226, %16, %cst_186 {dimension_numbers = #tpu.dot_dimension_numbers<[1], [0], [0], [1], [0, 0, 1, 1], [], []>} : vector<16x4xbf16>, vector<4x128xbf16>, vector<16x128xf32> -> vector<16x128xf32>
    %228 = arith.addf %221, %227 : vector<16x128xf32>
    %c2_i32_187 = arith.constant 2 : i32
    %229 = arith.addi %0, %c2_i32_187 : i32
    %c2_i32_188 = arith.constant 2 : i32
    %230 = arith.addi %229, %c2_i32_188 : i32
    %c0_189 = arith.constant 0 : index
    %231 = arith.index_cast %230 : i32 to index
    %c2_190 = arith.constant 2 : index
    %c0_191 = arith.constant 0 : index
    %232 = vector.load %arg2[%c0_189, %231, %c2_190, %c0_191] : memref<1x18x18x4xbf16, #tpu.memory_space<vmem>>, vector<1x1x16x4xbf16>
    %233 = vector.shape_cast %232 : vector<1x1x16x4xbf16> to vector<16x4xbf16>
    %cst_192 = arith.constant dense<0.000000e+00> : vector<16x128xf32>
    %234 = tpu.matmul %233, %18, %cst_192 {dimension_numbers = #tpu.dot_dimension_numbers<[1], [0], [0], [1], [0, 0, 1, 1], [], []>} : vector<16x4xbf16>, vector<4x128xbf16>, vector<16x128xf32> -> vector<16x128xf32>
    %235 = arith.addf %228, %234 : vector<16x128xf32>
    %236 = vector.broadcast %19 : vector<1x128xf32> to vector<16x128xf32>
    %237 = arith.addf %235, %236 : vector<16x128xf32>
    %cst_193 = arith.constant 0.000000e+00 : f32
    %238 = vector.broadcast %cst_193 : f32 to vector<16x128xf32>
    %239 = arith.subf %238, %237 : vector<16x128xf32>
    %240 = math.exp %239 : vector<16x128xf32>
    %cst_194 = arith.constant 1.000000e+00 : f32
    %241 = vector.broadcast %cst_194 : f32 to vector<16x128xf32>
    %242 = arith.addf %241, %240 : vector<16x128xf32>
    %243 = tpu.reciprocal %242 {approx = true} : vector<16x128xf32> -> vector<16x128xf32>
    %244 = arith.mulf %237, %243 : vector<16x128xf32>
    %c0_195 = arith.constant 0 : index
    %c2_196 = arith.constant 2 : index
    %c0_197 = arith.constant 0 : index
    %c0_198 = arith.constant 0 : index
    %245 = vector.load %arg5[%c0_195, %c2_196, %c0_197, %c0_198] : memref<1x8x16x128xf32, #tpu.memory_space<vmem>>, vector<1x1x16x128xf32>
    %246 = vector.shape_cast %245 : vector<1x1x16x128xf32> to vector<16x128xf32>
    %247 = vector.shape_cast %244 : vector<16x128xf32> to vector<1x1x16x128xf32>
    tpu.vector_store %arg5[%c0_195, %c2_196, %c0_197, %c0_198], %247 {strides = array<i32>} : memref<1x8x16x128xf32, #tpu.memory_space<vmem>>, vector<1x1x16x128xf32>,
    %cst_199 = arith.constant 0.000000e+00 : f32
    %248 = vector.broadcast %cst_199 : f32 to vector<16x128xf32>
    %c3_i32 = arith.constant 3 : i32
    %249 = arith.addi %0, %c3_i32 : i32
    %c0_i32_200 = arith.constant 0 : i32
    %250 = arith.addi %249, %c0_i32_200 : i32
    %c0_201 = arith.constant 0 : index
    %251 = arith.index_cast %250 : i32 to index
    %c0_202 = arith.constant 0 : index
    %c0_203 = arith.constant 0 : index
    %252 = vector.load %arg2[%c0_201, %251, %c0_202, %c0_203] : memref<1x18x18x4xbf16, #tpu.memory_space<vmem>>, vector<1x1x16x4xbf16>
    %253 = vector.shape_cast %252 : vector<1x1x16x4xbf16> to vector<16x4xbf16>
    %cst_204 = arith.constant dense<0.000000e+00> : vector<16x128xf32>
    %254 = tpu.matmul %253, %2, %cst_204 {dimension_numbers = #tpu.dot_dimension_numbers<[1], [0], [0], [1], [0, 0, 1, 1], [], []>} : vector<16x4xbf16>, vector<4x128xbf16>, vector<16x128xf32> -> vector<16x128xf32>
    %255 = arith.addf %248, %254 : vector<16x128xf32>
    %c3_i32_205 = arith.constant 3 : i32
    %256 = arith.addi %0, %c3_i32_205 : i32
    %c0_i32_206 = arith.constant 0 : i32
    %257 = arith.addi %256, %c0_i32_206 : i32
    %c0_207 = arith.constant 0 : index
    %258 = arith.index_cast %257 : i32 to index
    %c1_208 = arith.constant 1 : index
    %c0_209 = arith.constant 0 : index
    %259 = vector.load %arg2[%c0_207, %258, %c1_208, %c0_209] : memref<1x18x18x4xbf16, #tpu.memory_space<vmem>>, vector<1x1x16x4xbf16>
    %260 = vector.shape_cast %259 : vector<1x1x16x4xbf16> to vector<16x4xbf16>
    %cst_210 = arith.constant dense<0.000000e+00> : vector<16x128xf32>
    %261 = tpu.matmul %260, %4, %cst_210 {dimension_numbers = #tpu.dot_dimension_numbers<[1], [0], [0], [1], [0, 0, 1, 1], [], []>} : vector<16x4xbf16>, vector<4x128xbf16>, vector<16x128xf32> -> vector<16x128xf32>
    %262 = arith.addf %255, %261 : vector<16x128xf32>
    %c3_i32_211 = arith.constant 3 : i32
    %263 = arith.addi %0, %c3_i32_211 : i32
    %c0_i32_212 = arith.constant 0 : i32
    %264 = arith.addi %263, %c0_i32_212 : i32
    %c0_213 = arith.constant 0 : index
    %265 = arith.index_cast %264 : i32 to index
    %c2_214 = arith.constant 2 : index
    %c0_215 = arith.constant 0 : index
    %266 = vector.load %arg2[%c0_213, %265, %c2_214, %c0_215] : memref<1x18x18x4xbf16, #tpu.memory_space<vmem>>, vector<1x1x16x4xbf16>
    %267 = vector.shape_cast %266 : vector<1x1x16x4xbf16> to vector<16x4xbf16>
    %cst_216 = arith.constant dense<0.000000e+00> : vector<16x128xf32>
    %268 = tpu.matmul %267, %6, %cst_216 {dimension_numbers = #tpu.dot_dimension_numbers<[1], [0], [0], [1], [0, 0, 1, 1], [], []>} : vector<16x4xbf16>, vector<4x128xbf16>, vector<16x128xf32> -> vector<16x128xf32>
    %269 = arith.addf %262, %268 : vector<16x128xf32>
    %c3_i32_217 = arith.constant 3 : i32
    %270 = arith.addi %0, %c3_i32_217 : i32
    %c1_i32_218 = arith.constant 1 : i32
    %271 = arith.addi %270, %c1_i32_218 : i32
    %c0_219 = arith.constant 0 : index
    %272 = arith.index_cast %271 : i32 to index
    %c0_220 = arith.constant 0 : index
    %c0_221 = arith.constant 0 : index
    %273 = vector.load %arg2[%c0_219, %272, %c0_220, %c0_221] : memref<1x18x18x4xbf16, #tpu.memory_space<vmem>>, vector<1x1x16x4xbf16>
    %274 = vector.shape_cast %273 : vector<1x1x16x4xbf16> to vector<16x4xbf16>
    %cst_222 = arith.constant dense<0.000000e+00> : vector<16x128xf32>
    %275 = tpu.matmul %274, %8, %cst_222 {dimension_numbers = #tpu.dot_dimension_numbers<[1], [0], [0], [1], [0, 0, 1, 1], [], []>} : vector<16x4xbf16>, vector<4x128xbf16>, vector<16x128xf32> -> vector<16x128xf32>
    %276 = arith.addf %269, %275 : vector<16x128xf32>
    %c3_i32_223 = arith.constant 3 : i32
    %277 = arith.addi %0, %c3_i32_223 : i32
    %c1_i32_224 = arith.constant 1 : i32
    %278 = arith.addi %277, %c1_i32_224 : i32
    %c0_225 = arith.constant 0 : index
    %279 = arith.index_cast %278 : i32 to index
    %c1_226 = arith.constant 1 : index
    %c0_227 = arith.constant 0 : index
    %280 = vector.load %arg2[%c0_225, %279, %c1_226, %c0_227] : memref<1x18x18x4xbf16, #tpu.memory_space<vmem>>, vector<1x1x16x4xbf16>
    %281 = vector.shape_cast %280 : vector<1x1x16x4xbf16> to vector<16x4xbf16>
    %cst_228 = arith.constant dense<0.000000e+00> : vector<16x128xf32>
    %282 = tpu.matmul %281, %10, %cst_228 {dimension_numbers = #tpu.dot_dimension_numbers<[1], [0], [0], [1], [0, 0, 1, 1], [], []>} : vector<16x4xbf16>, vector<4x128xbf16>, vector<16x128xf32> -> vector<16x128xf32>
    %283 = arith.addf %276, %282 : vector<16x128xf32>
    %c3_i32_229 = arith.constant 3 : i32
    %284 = arith.addi %0, %c3_i32_229 : i32
    %c1_i32_230 = arith.constant 1 : i32
    %285 = arith.addi %284, %c1_i32_230 : i32
    %c0_231 = arith.constant 0 : index
    %286 = arith.index_cast %285 : i32 to index
    %c2_232 = arith.constant 2 : index
    %c0_233 = arith.constant 0 : index
    %287 = vector.load %arg2[%c0_231, %286, %c2_232, %c0_233] : memref<1x18x18x4xbf16, #tpu.memory_space<vmem>>, vector<1x1x16x4xbf16>
    %288 = vector.shape_cast %287 : vector<1x1x16x4xbf16> to vector<16x4xbf16>
    %cst_234 = arith.constant dense<0.000000e+00> : vector<16x128xf32>
    %289 = tpu.matmul %288, %12, %cst_234 {dimension_numbers = #tpu.dot_dimension_numbers<[1], [0], [0], [1], [0, 0, 1, 1], [], []>} : vector<16x4xbf16>, vector<4x128xbf16>, vector<16x128xf32> -> vector<16x128xf32>
    %290 = arith.addf %283, %289 : vector<16x128xf32>
    %c3_i32_235 = arith.constant 3 : i32
    %291 = arith.addi %0, %c3_i32_235 : i32
    %c2_i32_236 = arith.constant 2 : i32
    %292 = arith.addi %291, %c2_i32_236 : i32
    %c0_237 = arith.constant 0 : index
    %293 = arith.index_cast %292 : i32 to index
    %c0_238 = arith.constant 0 : index
    %c0_239 = arith.constant 0 : index
    %294 = vector.load %arg2[%c0_237, %293, %c0_238, %c0_239] : memref<1x18x18x4xbf16, #tpu.memory_space<vmem>>, vector<1x1x16x4xbf16>
    %295 = vector.shape_cast %294 : vector<1x1x16x4xbf16> to vector<16x4xbf16>
    %cst_240 = arith.constant dense<0.000000e+00> : vector<16x128xf32>
    %296 = tpu.matmul %295, %14, %cst_240 {dimension_numbers = #tpu.dot_dimension_numbers<[1], [0], [0], [1], [0, 0, 1, 1], [], []>} : vector<16x4xbf16>, vector<4x128xbf16>, vector<16x128xf32> -> vector<16x128xf32>
    %297 = arith.addf %290, %296 : vector<16x128xf32>
    %c3_i32_241 = arith.constant 3 : i32
    %298 = arith.addi %0, %c3_i32_241 : i32
    %c2_i32_242 = arith.constant 2 : i32
    %299 = arith.addi %298, %c2_i32_242 : i32
    %c0_243 = arith.constant 0 : index
    %300 = arith.index_cast %299 : i32 to index
    %c1_244 = arith.constant 1 : index
    %c0_245 = arith.constant 0 : index
    %301 = vector.load %arg2[%c0_243, %300, %c1_244, %c0_245] : memref<1x18x18x4xbf16, #tpu.memory_space<vmem>>, vector<1x1x16x4xbf16>
    %302 = vector.shape_cast %301 : vector<1x1x16x4xbf16> to vector<16x4xbf16>
    %cst_246 = arith.constant dense<0.000000e+00> : vector<16x128xf32>
    %303 = tpu.matmul %302, %16, %cst_246 {dimension_numbers = #tpu.dot_dimension_numbers<[1], [0], [0], [1], [0, 0, 1, 1], [], []>} : vector<16x4xbf16>, vector<4x128xbf16>, vector<16x128xf32> -> vector<16x128xf32>
    %304 = arith.addf %297, %303 : vector<16x128xf32>
    %c3_i32_247 = arith.constant 3 : i32
    %305 = arith.addi %0, %c3_i32_247 : i32
    %c2_i32_248 = arith.constant 2 : i32
    %306 = arith.addi %305, %c2_i32_248 : i32
    %c0_249 = arith.constant 0 : index
    %307 = arith.index_cast %306 : i32 to index
    %c2_250 = arith.constant 2 : index
    %c0_251 = arith.constant 0 : index
    %308 = vector.load %arg2[%c0_249, %307, %c2_250, %c0_251] : memref<1x18x18x4xbf16, #tpu.memory_space<vmem>>, vector<1x1x16x4xbf16>
    %309 = vector.shape_cast %308 : vector<1x1x16x4xbf16> to vector<16x4xbf16>
    %cst_252 = arith.constant dense<0.000000e+00> : vector<16x128xf32>
    %310 = tpu.matmul %309, %18, %cst_252 {dimension_numbers = #tpu.dot_dimension_numbers<[1], [0], [0], [1], [0, 0, 1, 1], [], []>} : vector<16x4xbf16>, vector<4x128xbf16>, vector<16x128xf32> -> vector<16x128xf32>
    %311 = arith.addf %304, %310 : vector<16x128xf32>
    %312 = vector.broadcast %19 : vector<1x128xf32> to vector<16x128xf32>
    %313 = arith.addf %311, %312 : vector<16x128xf32>
    %cst_253 = arith.constant 0.000000e+00 : f32
    %314 = vector.broadcast %cst_253 : f32 to vector<16x128xf32>
    %315 = arith.subf %314, %313 : vector<16x128xf32>
    %316 = math.exp %315 : vector<16x128xf32>
    %cst_254 = arith.constant 1.000000e+00 : f32
    %317 = vector.broadcast %cst_254 : f32 to vector<16x128xf32>
    %318 = arith.addf %317, %316 : vector<16x128xf32>
    %319 = tpu.reciprocal %318 {approx = true} : vector<16x128xf32> -> vector<16x128xf32>
    %320 = arith.mulf %313, %319 : vector<16x128xf32>
    %c0_255 = arith.constant 0 : index
    %c3_256 = arith.constant 3 : index
    %c0_257 = arith.constant 0 : index
    %c0_258 = arith.constant 0 : index
    %321 = vector.load %arg5[%c0_255, %c3_256, %c0_257, %c0_258] : memref<1x8x16x128xf32, #tpu.memory_space<vmem>>, vector<1x1x16x128xf32>
    %322 = vector.shape_cast %321 : vector<1x1x16x128xf32> to vector<16x128xf32>
    %323 = vector.shape_cast %320 : vector<16x128xf32> to vector<1x1x16x128xf32>
    tpu.vector_store %arg5[%c0_255, %c3_256, %c0_257, %c0_258], %323 {strides = array<i32>} : memref<1x8x16x128xf32, #tpu.memory_space<vmem>>, vector<1x1x16x128xf32>,
    %cst_259 = arith.constant 0.000000e+00 : f32
    %324 = vector.broadcast %cst_259 : f32 to vector<16x128xf32>
    %c4_i32 = arith.constant 4 : i32
    %325 = arith.addi %0, %c4_i32 : i32
    %c0_i32_260 = arith.constant 0 : i32
    %326 = arith.addi %325, %c0_i32_260 : i32
    %c0_261 = arith.constant 0 : index
    %327 = arith.index_cast %326 : i32 to index
    %c0_262 = arith.constant 0 : index
    %c0_263 = arith.constant 0 : index
    %328 = vector.load %arg2[%c0_261, %327, %c0_262, %c0_263] : memref<1x18x18x4xbf16, #tpu.memory_space<vmem>>, vector<1x1x16x4xbf16>
    %329 = vector.shape_cast %328 : vector<1x1x16x4xbf16> to vector<16x4xbf16>
    %cst_264 = arith.constant dense<0.000000e+00> : vector<16x128xf32>
    %330 = tpu.matmul %329, %2, %cst_264 {dimension_numbers = #tpu.dot_dimension_numbers<[1], [0], [0], [1], [0, 0, 1, 1], [], []>} : vector<16x4xbf16>, vector<4x128xbf16>, vector<16x128xf32> -> vector<16x128xf32>
    %331 = arith.addf %324, %330 : vector<16x128xf32>
    %c4_i32_265 = arith.constant 4 : i32
    %332 = arith.addi %0, %c4_i32_265 : i32
    %c0_i32_266 = arith.constant 0 : i32
    %333 = arith.addi %332, %c0_i32_266 : i32
    %c0_267 = arith.constant 0 : index
    %334 = arith.index_cast %333 : i32 to index
    %c1_268 = arith.constant 1 : index
    %c0_269 = arith.constant 0 : index
    %335 = vector.load %arg2[%c0_267, %334, %c1_268, %c0_269] : memref<1x18x18x4xbf16, #tpu.memory_space<vmem>>, vector<1x1x16x4xbf16>
    %336 = vector.shape_cast %335 : vector<1x1x16x4xbf16> to vector<16x4xbf16>
    %cst_270 = arith.constant dense<0.000000e+00> : vector<16x128xf32>
    %337 = tpu.matmul %336, %4, %cst_270 {dimension_numbers = #tpu.dot_dimension_numbers<[1], [0], [0], [1], [0, 0, 1, 1], [], []>} : vector<16x4xbf16>, vector<4x128xbf16>, vector<16x128xf32> -> vector<16x128xf32>
    %338 = arith.addf %331, %337 : vector<16x128xf32>
    %c4_i32_271 = arith.constant 4 : i32
    %339 = arith.addi %0, %c4_i32_271 : i32
    %c0_i32_272 = arith.constant 0 : i32
    %340 = arith.addi %339, %c0_i32_272 : i32
    %c0_273 = arith.constant 0 : index
    %341 = arith.index_cast %340 : i32 to index
    %c2_274 = arith.constant 2 : index
    %c0_275 = arith.constant 0 : index
    %342 = vector.load %arg2[%c0_273, %341, %c2_274, %c0_275] : memref<1x18x18x4xbf16, #tpu.memory_space<vmem>>, vector<1x1x16x4xbf16>
    %343 = vector.shape_cast %342 : vector<1x1x16x4xbf16> to vector<16x4xbf16>
    %cst_276 = arith.constant dense<0.000000e+00> : vector<16x128xf32>
    %344 = tpu.matmul %343, %6, %cst_276 {dimension_numbers = #tpu.dot_dimension_numbers<[1], [0], [0], [1], [0, 0, 1, 1], [], []>} : vector<16x4xbf16>, vector<4x128xbf16>, vector<16x128xf32> -> vector<16x128xf32>
    %345 = arith.addf %338, %344 : vector<16x128xf32>
    %c4_i32_277 = arith.constant 4 : i32
    %346 = arith.addi %0, %c4_i32_277 : i32
    %c1_i32_278 = arith.constant 1 : i32
    %347 = arith.addi %346, %c1_i32_278 : i32
    %c0_279 = arith.constant 0 : index
    %348 = arith.index_cast %347 : i32 to index
    %c0_280 = arith.constant 0 : index
    %c0_281 = arith.constant 0 : index
    %349 = vector.load %arg2[%c0_279, %348, %c0_280, %c0_281] : memref<1x18x18x4xbf16, #tpu.memory_space<vmem>>, vector<1x1x16x4xbf16>
    %350 = vector.shape_cast %349 : vector<1x1x16x4xbf16> to vector<16x4xbf16>
    %cst_282 = arith.constant dense<0.000000e+00> : vector<16x128xf32>
    %351 = tpu.matmul %350, %8, %cst_282 {dimension_numbers = #tpu.dot_dimension_numbers<[1], [0], [0], [1], [0, 0, 1, 1], [], []>} : vector<16x4xbf16>, vector<4x128xbf16>, vector<16x128xf32> -> vector<16x128xf32>
    %352 = arith.addf %345, %351 : vector<16x128xf32>
    %c4_i32_283 = arith.constant 4 : i32
    %353 = arith.addi %0, %c4_i32_283 : i32
    %c1_i32_284 = arith.constant 1 : i32
    %354 = arith.addi %353, %c1_i32_284 : i32
    %c0_285 = arith.constant 0 : index
    %355 = arith.index_cast %354 : i32 to index
    %c1_286 = arith.constant 1 : index
    %c0_287 = arith.constant 0 : index
    %356 = vector.load %arg2[%c0_285, %355, %c1_286, %c0_287] : memref<1x18x18x4xbf16, #tpu.memory_space<vmem>>, vector<1x1x16x4xbf16>
    %357 = vector.shape_cast %356 : vector<1x1x16x4xbf16> to vector<16x4xbf16>
    %cst_288 = arith.constant dense<0.000000e+00> : vector<16x128xf32>
    %358 = tpu.matmul %357, %10, %cst_288 {dimension_numbers = #tpu.dot_dimension_numbers<[1], [0], [0], [1], [0, 0, 1, 1], [], []>} : vector<16x4xbf16>, vector<4x128xbf16>, vector<16x128xf32> -> vector<16x128xf32>
    %359 = arith.addf %352, %358 : vector<16x128xf32>
    %c4_i32_289 = arith.constant 4 : i32
    %360 = arith.addi %0, %c4_i32_289 : i32
    %c1_i32_290 = arith.constant 1 : i32
    %361 = arith.addi %360, %c1_i32_290 : i32
    %c0_291 = arith.constant 0 : index
    %362 = arith.index_cast %361 : i32 to index
    %c2_292 = arith.constant 2 : index
    %c0_293 = arith.constant 0 : index
    %363 = vector.load %arg2[%c0_291, %362, %c2_292, %c0_293] : memref<1x18x18x4xbf16, #tpu.memory_space<vmem>>, vector<1x1x16x4xbf16>
    %364 = vector.shape_cast %363 : vector<1x1x16x4xbf16> to vector<16x4xbf16>
    %cst_294 = arith.constant dense<0.000000e+00> : vector<16x128xf32>
    %365 = tpu.matmul %364, %12, %cst_294 {dimension_numbers = #tpu.dot_dimension_numbers<[1], [0], [0], [1], [0, 0, 1, 1], [], []>} : vector<16x4xbf16>, vector<4x128xbf16>, vector<16x128xf32> -> vector<16x128xf32>
    %366 = arith.addf %359, %365 : vector<16x128xf32>
    %c4_i32_295 = arith.constant 4 : i32
    %367 = arith.addi %0, %c4_i32_295 : i32
    %c2_i32_296 = arith.constant 2 : i32
    %368 = arith.addi %367, %c2_i32_296 : i32
    %c0_297 = arith.constant 0 : index
    %369 = arith.index_cast %368 : i32 to index
    %c0_298 = arith.constant 0 : index
    %c0_299 = arith.constant 0 : index
    %370 = vector.load %arg2[%c0_297, %369, %c0_298, %c0_299] : memref<1x18x18x4xbf16, #tpu.memory_space<vmem>>, vector<1x1x16x4xbf16>
    %371 = vector.shape_cast %370 : vector<1x1x16x4xbf16> to vector<16x4xbf16>
    %cst_300 = arith.constant dense<0.000000e+00> : vector<16x128xf32>
    %372 = tpu.matmul %371, %14, %cst_300 {dimension_numbers = #tpu.dot_dimension_numbers<[1], [0], [0], [1], [0, 0, 1, 1], [], []>} : vector<16x4xbf16>, vector<4x128xbf16>, vector<16x128xf32> -> vector<16x128xf32>
    %373 = arith.addf %366, %372 : vector<16x128xf32>
    %c4_i32_301 = arith.constant 4 : i32
    %374 = arith.addi %0, %c4_i32_301 : i32
    %c2_i32_302 = arith.constant 2 : i32
    %375 = arith.addi %374, %c2_i32_302 : i32
    %c0_303 = arith.constant 0 : index
    %376 = arith.index_cast %375 : i32 to index
    %c1_304 = arith.constant 1 : index
    %c0_305 = arith.constant 0 : index
    %377 = vector.load %arg2[%c0_303, %376, %c1_304, %c0_305] : memref<1x18x18x4xbf16, #tpu.memory_space<vmem>>, vector<1x1x16x4xbf16>
    %378 = vector.shape_cast %377 : vector<1x1x16x4xbf16> to vector<16x4xbf16>
    %cst_306 = arith.constant dense<0.000000e+00> : vector<16x128xf32>
    %379 = tpu.matmul %378, %16, %cst_306 {dimension_numbers = #tpu.dot_dimension_numbers<[1], [0], [0], [1], [0, 0, 1, 1], [], []>} : vector<16x4xbf16>, vector<4x128xbf16>, vector<16x128xf32> -> vector<16x128xf32>
    %380 = arith.addf %373, %379 : vector<16x128xf32>
    %c4_i32_307 = arith.constant 4 : i32
    %381 = arith.addi %0, %c4_i32_307 : i32
    %c2_i32_308 = arith.constant 2 : i32
    %382 = arith.addi %381, %c2_i32_308 : i32
    %c0_309 = arith.constant 0 : index
    %383 = arith.index_cast %382 : i32 to index
    %c2_310 = arith.constant 2 : index
    %c0_311 = arith.constant 0 : index
    %384 = vector.load %arg2[%c0_309, %383, %c2_310, %c0_311] : memref<1x18x18x4xbf16, #tpu.memory_space<vmem>>, vector<1x1x16x4xbf16>
    %385 = vector.shape_cast %384 : vector<1x1x16x4xbf16> to vector<16x4xbf16>
    %cst_312 = arith.constant dense<0.000000e+00> : vector<16x128xf32>
    %386 = tpu.matmul %385, %18, %cst_312 {dimension_numbers = #tpu.dot_dimension_numbers<[1], [0], [0], [1], [0, 0, 1, 1], [], []>} : vector<16x4xbf16>, vector<4x128xbf16>, vector<16x128xf32> -> vector<16x128xf32>
    %387 = arith.addf %380, %386 : vector<16x128xf32>
    %388 = vector.broadcast %19 : vector<1x128xf32> to vector<16x128xf32>
    %389 = arith.addf %387, %388 : vector<16x128xf32>
    %cst_313 = arith.constant 0.000000e+00 : f32
    %390 = vector.broadcast %cst_313 : f32 to vector<16x128xf32>
    %391 = arith.subf %390, %389 : vector<16x128xf32>
    %392 = math.exp %391 : vector<16x128xf32>
    %cst_314 = arith.constant 1.000000e+00 : f32
    %393 = vector.broadcast %cst_314 : f32 to vector<16x128xf32>
    %394 = arith.addf %393, %392 : vector<16x128xf32>
    %395 = tpu.reciprocal %394 {approx = true} : vector<16x128xf32> -> vector<16x128xf32>
    %396 = arith.mulf %389, %395 : vector<16x128xf32>
    %c0_315 = arith.constant 0 : index
    %c4_316 = arith.constant 4 : index
    %c0_317 = arith.constant 0 : index
    %c0_318 = arith.constant 0 : index
    %397 = vector.load %arg5[%c0_315, %c4_316, %c0_317, %c0_318] : memref<1x8x16x128xf32, #tpu.memory_space<vmem>>, vector<1x1x16x128xf32>
    %398 = vector.shape_cast %397 : vector<1x1x16x128xf32> to vector<16x128xf32>
    %399 = vector.shape_cast %396 : vector<16x128xf32> to vector<1x1x16x128xf32>
    tpu.vector_store %arg5[%c0_315, %c4_316, %c0_317, %c0_318], %399 {strides = array<i32>} : memref<1x8x16x128xf32, #tpu.memory_space<vmem>>, vector<1x1x16x128xf32>,
    %cst_319 = arith.constant 0.000000e+00 : f32
    %400 = vector.broadcast %cst_319 : f32 to vector<16x128xf32>
    %c5_i32 = arith.constant 5 : i32
    %401 = arith.addi %0, %c5_i32 : i32
    %c0_i32_320 = arith.constant 0 : i32
    %402 = arith.addi %401, %c0_i32_320 : i32
    %c0_321 = arith.constant 0 : index
    %403 = arith.index_cast %402 : i32 to index
    %c0_322 = arith.constant 0 : index
    %c0_323 = arith.constant 0 : index
    %404 = vector.load %arg2[%c0_321, %403, %c0_322, %c0_323] : memref<1x18x18x4xbf16, #tpu.memory_space<vmem>>, vector<1x1x16x4xbf16>
    %405 = vector.shape_cast %404 : vector<1x1x16x4xbf16> to vector<16x4xbf16>
    %cst_324 = arith.constant dense<0.000000e+00> : vector<16x128xf32>
    %406 = tpu.matmul %405, %2, %cst_324 {dimension_numbers = #tpu.dot_dimension_numbers<[1], [0], [0], [1], [0, 0, 1, 1], [], []>} : vector<16x4xbf16>, vector<4x128xbf16>, vector<16x128xf32> -> vector<16x128xf32>
    %407 = arith.addf %400, %406 : vector<16x128xf32>
    %c5_i32_325 = arith.constant 5 : i32
    %408 = arith.addi %0, %c5_i32_325 : i32
    %c0_i32_326 = arith.constant 0 : i32
    %409 = arith.addi %408, %c0_i32_326 : i32
    %c0_327 = arith.constant 0 : index
    %410 = arith.index_cast %409 : i32 to index
    %c1_328 = arith.constant 1 : index
    %c0_329 = arith.constant 0 : index
    %411 = vector.load %arg2[%c0_327, %410, %c1_328, %c0_329] : memref<1x18x18x4xbf16, #tpu.memory_space<vmem>>, vector<1x1x16x4xbf16>
    %412 = vector.shape_cast %411 : vector<1x1x16x4xbf16> to vector<16x4xbf16>
    %cst_330 = arith.constant dense<0.000000e+00> : vector<16x128xf32>
    %413 = tpu.matmul %412, %4, %cst_330 {dimension_numbers = #tpu.dot_dimension_numbers<[1], [0], [0], [1], [0, 0, 1, 1], [], []>} : vector<16x4xbf16>, vector<4x128xbf16>, vector<16x128xf32> -> vector<16x128xf32>
    %414 = arith.addf %407, %413 : vector<16x128xf32>
    %c5_i32_331 = arith.constant 5 : i32
    %415 = arith.addi %0, %c5_i32_331 : i32
    %c0_i32_332 = arith.constant 0 : i32
    %416 = arith.addi %415, %c0_i32_332 : i32
    %c0_333 = arith.constant 0 : index
    %417 = arith.index_cast %416 : i32 to index
    %c2_334 = arith.constant 2 : index
    %c0_335 = arith.constant 0 : index
    %418 = vector.load %arg2[%c0_333, %417, %c2_334, %c0_335] : memref<1x18x18x4xbf16, #tpu.memory_space<vmem>>, vector<1x1x16x4xbf16>
    %419 = vector.shape_cast %418 : vector<1x1x16x4xbf16> to vector<16x4xbf16>
    %cst_336 = arith.constant dense<0.000000e+00> : vector<16x128xf32>
    %420 = tpu.matmul %419, %6, %cst_336 {dimension_numbers = #tpu.dot_dimension_numbers<[1], [0], [0], [1], [0, 0, 1, 1], [], []>} : vector<16x4xbf16>, vector<4x128xbf16>, vector<16x128xf32> -> vector<16x128xf32>
    %421 = arith.addf %414, %420 : vector<16x128xf32>
    %c5_i32_337 = arith.constant 5 : i32
    %422 = arith.addi %0, %c5_i32_337 : i32
    %c1_i32_338 = arith.constant 1 : i32
    %423 = arith.addi %422, %c1_i32_338 : i32
    %c0_339 = arith.constant 0 : index
    %424 = arith.index_cast %423 : i32 to index
    %c0_340 = arith.constant 0 : index
    %c0_341 = arith.constant 0 : index
    %425 = vector.load %arg2[%c0_339, %424, %c0_340, %c0_341] : memref<1x18x18x4xbf16, #tpu.memory_space<vmem>>, vector<1x1x16x4xbf16>
    %426 = vector.shape_cast %425 : vector<1x1x16x4xbf16> to vector<16x4xbf16>
    %cst_342 = arith.constant dense<0.000000e+00> : vector<16x128xf32>
    %427 = tpu.matmul %426, %8, %cst_342 {dimension_numbers = #tpu.dot_dimension_numbers<[1], [0], [0], [1], [0, 0, 1, 1], [], []>} : vector<16x4xbf16>, vector<4x128xbf16>, vector<16x128xf32> -> vector<16x128xf32>
    %428 = arith.addf %421, %427 : vector<16x128xf32>
    %c5_i32_343 = arith.constant 5 : i32
    %429 = arith.addi %0, %c5_i32_343 : i32
    %c1_i32_344 = arith.constant 1 : i32
    %430 = arith.addi %429, %c1_i32_344 : i32
    %c0_345 = arith.constant 0 : index
    %431 = arith.index_cast %430 : i32 to index
    %c1_346 = arith.constant 1 : index
    %c0_347 = arith.constant 0 : index
    %432 = vector.load %arg2[%c0_345, %431, %c1_346, %c0_347] : memref<1x18x18x4xbf16, #tpu.memory_space<vmem>>, vector<1x1x16x4xbf16>
    %433 = vector.shape_cast %432 : vector<1x1x16x4xbf16> to vector<16x4xbf16>
    %cst_348 = arith.constant dense<0.000000e+00> : vector<16x128xf32>
    %434 = tpu.matmul %433, %10, %cst_348 {dimension_numbers = #tpu.dot_dimension_numbers<[1], [0], [0], [1], [0, 0, 1, 1], [], []>} : vector<16x4xbf16>, vector<4x128xbf16>, vector<16x128xf32> -> vector<16x128xf32>
    %435 = arith.addf %428, %434 : vector<16x128xf32>
    %c5_i32_349 = arith.constant 5 : i32
    %436 = arith.addi %0, %c5_i32_349 : i32
    %c1_i32_350 = arith.constant 1 : i32
    %437 = arith.addi %436, %c1_i32_350 : i32
    %c0_351 = arith.constant 0 : index
    %438 = arith.index_cast %437 : i32 to index
    %c2_352 = arith.constant 2 : index
    %c0_353 = arith.constant 0 : index
    %439 = vector.load %arg2[%c0_351, %438, %c2_352, %c0_353] : memref<1x18x18x4xbf16, #tpu.memory_space<vmem>>, vector<1x1x16x4xbf16>
    %440 = vector.shape_cast %439 : vector<1x1x16x4xbf16> to vector<16x4xbf16>
    %cst_354 = arith.constant dense<0.000000e+00> : vector<16x128xf32>
    %441 = tpu.matmul %440, %12, %cst_354 {dimension_numbers = #tpu.dot_dimension_numbers<[1], [0], [0], [1], [0, 0, 1, 1], [], []>} : vector<16x4xbf16>, vector<4x128xbf16>, vector<16x128xf32> -> vector<16x128xf32>
    %442 = arith.addf %435, %441 : vector<16x128xf32>
    %c5_i32_355 = arith.constant 5 : i32
    %443 = arith.addi %0, %c5_i32_355 : i32
    %c2_i32_356 = arith.constant 2 : i32
    %444 = arith.addi %443, %c2_i32_356 : i32
    %c0_357 = arith.constant 0 : index
    %445 = arith.index_cast %444 : i32 to index
    %c0_358 = arith.constant 0 : index
    %c0_359 = arith.constant 0 : index
    %446 = vector.load %arg2[%c0_357, %445, %c0_358, %c0_359] : memref<1x18x18x4xbf16, #tpu.memory_space<vmem>>, vector<1x1x16x4xbf16>
    %447 = vector.shape_cast %446 : vector<1x1x16x4xbf16> to vector<16x4xbf16>
    %cst_360 = arith.constant dense<0.000000e+00> : vector<16x128xf32>
    %448 = tpu.matmul %447, %14, %cst_360 {dimension_numbers = #tpu.dot_dimension_numbers<[1], [0], [0], [1], [0, 0, 1, 1], [], []>} : vector<16x4xbf16>, vector<4x128xbf16>, vector<16x128xf32> -> vector<16x128xf32>
    %449 = arith.addf %442, %448 : vector<16x128xf32>
    %c5_i32_361 = arith.constant 5 : i32
    %450 = arith.addi %0, %c5_i32_361 : i32
    %c2_i32_362 = arith.constant 2 : i32
    %451 = arith.addi %450, %c2_i32_362 : i32
    %c0_363 = arith.constant 0 : index
    %452 = arith.index_cast %451 : i32 to index
    %c1_364 = arith.constant 1 : index
    %c0_365 = arith.constant 0 : index
    %453 = vector.load %arg2[%c0_363, %452, %c1_364, %c0_365] : memref<1x18x18x4xbf16, #tpu.memory_space<vmem>>, vector<1x1x16x4xbf16>
    %454 = vector.shape_cast %453 : vector<1x1x16x4xbf16> to vector<16x4xbf16>
    %cst_366 = arith.constant dense<0.000000e+00> : vector<16x128xf32>
    %455 = tpu.matmul %454, %16, %cst_366 {dimension_numbers = #tpu.dot_dimension_numbers<[1], [0], [0], [1], [0, 0, 1, 1], [], []>} : vector<16x4xbf16>, vector<4x128xbf16>, vector<16x128xf32> -> vector<16x128xf32>
    %456 = arith.addf %449, %455 : vector<16x128xf32>
    %c5_i32_367 = arith.constant 5 : i32
    %457 = arith.addi %0, %c5_i32_367 : i32
    %c2_i32_368 = arith.constant 2 : i32
    %458 = arith.addi %457, %c2_i32_368 : i32
    %c0_369 = arith.constant 0 : index
    %459 = arith.index_cast %458 : i32 to index
    %c2_370 = arith.constant 2 : index
    %c0_371 = arith.constant 0 : index
    %460 = vector.load %arg2[%c0_369, %459, %c2_370, %c0_371] : memref<1x18x18x4xbf16, #tpu.memory_space<vmem>>, vector<1x1x16x4xbf16>
    %461 = vector.shape_cast %460 : vector<1x1x16x4xbf16> to vector<16x4xbf16>
    %cst_372 = arith.constant dense<0.000000e+00> : vector<16x128xf32>
    %462 = tpu.matmul %461, %18, %cst_372 {dimension_numbers = #tpu.dot_dimension_numbers<[1], [0], [0], [1], [0, 0, 1, 1], [], []>} : vector<16x4xbf16>, vector<4x128xbf16>, vector<16x128xf32> -> vector<16x128xf32>
    %463 = arith.addf %456, %462 : vector<16x128xf32>
    %464 = vector.broadcast %19 : vector<1x128xf32> to vector<16x128xf32>
    %465 = arith.addf %463, %464 : vector<16x128xf32>
    %cst_373 = arith.constant 0.000000e+00 : f32
    %466 = vector.broadcast %cst_373 : f32 to vector<16x128xf32>
    %467 = arith.subf %466, %465 : vector<16x128xf32>
    %468 = math.exp %467 : vector<16x128xf32>
    %cst_374 = arith.constant 1.000000e+00 : f32
    %469 = vector.broadcast %cst_374 : f32 to vector<16x128xf32>
    %470 = arith.addf %469, %468 : vector<16x128xf32>
    %471 = tpu.reciprocal %470 {approx = true} : vector<16x128xf32> -> vector<16x128xf32>
    %472 = arith.mulf %465, %471 : vector<16x128xf32>
    %c0_375 = arith.constant 0 : index
    %c5_376 = arith.constant 5 : index
    %c0_377 = arith.constant 0 : index
    %c0_378 = arith.constant 0 : index
    %473 = vector.load %arg5[%c0_375, %c5_376, %c0_377, %c0_378] : memref<1x8x16x128xf32, #tpu.memory_space<vmem>>, vector<1x1x16x128xf32>
    %474 = vector.shape_cast %473 : vector<1x1x16x128xf32> to vector<16x128xf32>
    %475 = vector.shape_cast %472 : vector<16x128xf32> to vector<1x1x16x128xf32>
    tpu.vector_store %arg5[%c0_375, %c5_376, %c0_377, %c0_378], %475 {strides = array<i32>} : memref<1x8x16x128xf32, #tpu.memory_space<vmem>>, vector<1x1x16x128xf32>,
    %cst_379 = arith.constant 0.000000e+00 : f32
    %476 = vector.broadcast %cst_379 : f32 to vector<16x128xf32>
    %c6_i32 = arith.constant 6 : i32
    %477 = arith.addi %0, %c6_i32 : i32
    %c0_i32_380 = arith.constant 0 : i32
    %478 = arith.addi %477, %c0_i32_380 : i32
    %c0_381 = arith.constant 0 : index
    %479 = arith.index_cast %478 : i32 to index
    %c0_382 = arith.constant 0 : index
    %c0_383 = arith.constant 0 : index
    %480 = vector.load %arg2[%c0_381, %479, %c0_382, %c0_383] : memref<1x18x18x4xbf16, #tpu.memory_space<vmem>>, vector<1x1x16x4xbf16>
    %481 = vector.shape_cast %480 : vector<1x1x16x4xbf16> to vector<16x4xbf16>
    %cst_384 = arith.constant dense<0.000000e+00> : vector<16x128xf32>
    %482 = tpu.matmul %481, %2, %cst_384 {dimension_numbers = #tpu.dot_dimension_numbers<[1], [0], [0], [1], [0, 0, 1, 1], [], []>} : vector<16x4xbf16>, vector<4x128xbf16>, vector<16x128xf32> -> vector<16x128xf32>
    %483 = arith.addf %476, %482 : vector<16x128xf32>
    %c6_i32_385 = arith.constant 6 : i32
    %484 = arith.addi %0, %c6_i32_385 : i32
    %c0_i32_386 = arith.constant 0 : i32
    %485 = arith.addi %484, %c0_i32_386 : i32
    %c0_387 = arith.constant 0 : index
    %486 = arith.index_cast %485 : i32 to index
    %c1_388 = arith.constant 1 : index
    %c0_389 = arith.constant 0 : index
    %487 = vector.load %arg2[%c0_387, %486, %c1_388, %c0_389] : memref<1x18x18x4xbf16, #tpu.memory_space<vmem>>, vector<1x1x16x4xbf16>
    %488 = vector.shape_cast %487 : vector<1x1x16x4xbf16> to vector<16x4xbf16>
    %cst_390 = arith.constant dense<0.000000e+00> : vector<16x128xf32>
    %489 = tpu.matmul %488, %4, %cst_390 {dimension_numbers = #tpu.dot_dimension_numbers<[1], [0], [0], [1], [0, 0, 1, 1], [], []>} : vector<16x4xbf16>, vector<4x128xbf16>, vector<16x128xf32> -> vector<16x128xf32>
    %490 = arith.addf %483, %489 : vector<16x128xf32>
    %c6_i32_391 = arith.constant 6 : i32
    %491 = arith.addi %0, %c6_i32_391 : i32
    %c0_i32_392 = arith.constant 0 : i32
    %492 = arith.addi %491, %c0_i32_392 : i32
    %c0_393 = arith.constant 0 : index
    %493 = arith.index_cast %492 : i32 to index
    %c2_394 = arith.constant 2 : index
    %c0_395 = arith.constant 0 : index
    %494 = vector.load %arg2[%c0_393, %493, %c2_394, %c0_395] : memref<1x18x18x4xbf16, #tpu.memory_space<vmem>>, vector<1x1x16x4xbf16>
    %495 = vector.shape_cast %494 : vector<1x1x16x4xbf16> to vector<16x4xbf16>
    %cst_396 = arith.constant dense<0.000000e+00> : vector<16x128xf32>
    %496 = tpu.matmul %495, %6, %cst_396 {dimension_numbers = #tpu.dot_dimension_numbers<[1], [0], [0], [1], [0, 0, 1, 1], [], []>} : vector<16x4xbf16>, vector<4x128xbf16>, vector<16x128xf32> -> vector<16x128xf32>
    %497 = arith.addf %490, %496 : vector<16x128xf32>
    %c6_i32_397 = arith.constant 6 : i32
    %498 = arith.addi %0, %c6_i32_397 : i32
    %c1_i32_398 = arith.constant 1 : i32
    %499 = arith.addi %498, %c1_i32_398 : i32
    %c0_399 = arith.constant 0 : index
    %500 = arith.index_cast %499 : i32 to index
    %c0_400 = arith.constant 0 : index
    %c0_401 = arith.constant 0 : index
    %501 = vector.load %arg2[%c0_399, %500, %c0_400, %c0_401] : memref<1x18x18x4xbf16, #tpu.memory_space<vmem>>, vector<1x1x16x4xbf16>
    %502 = vector.shape_cast %501 : vector<1x1x16x4xbf16> to vector<16x4xbf16>
    %cst_402 = arith.constant dense<0.000000e+00> : vector<16x128xf32>
    %503 = tpu.matmul %502, %8, %cst_402 {dimension_numbers = #tpu.dot_dimension_numbers<[1], [0], [0], [1], [0, 0, 1, 1], [], []>} : vector<16x4xbf16>, vector<4x128xbf16>, vector<16x128xf32> -> vector<16x128xf32>
    %504 = arith.addf %497, %503 : vector<16x128xf32>
    %c6_i32_403 = arith.constant 6 : i32
    %505 = arith.addi %0, %c6_i32_403 : i32
    %c1_i32_404 = arith.constant 1 : i32
    %506 = arith.addi %505, %c1_i32_404 : i32
    %c0_405 = arith.constant 0 : index
    %507 = arith.index_cast %506 : i32 to index
    %c1_406 = arith.constant 1 : index
    %c0_407 = arith.constant 0 : index
    %508 = vector.load %arg2[%c0_405, %507, %c1_406, %c0_407] : memref<1x18x18x4xbf16, #tpu.memory_space<vmem>>, vector<1x1x16x4xbf16>
    %509 = vector.shape_cast %508 : vector<1x1x16x4xbf16> to vector<16x4xbf16>
    %cst_408 = arith.constant dense<0.000000e+00> : vector<16x128xf32>
    %510 = tpu.matmul %509, %10, %cst_408 {dimension_numbers = #tpu.dot_dimension_numbers<[1], [0], [0], [1], [0, 0, 1, 1], [], []>} : vector<16x4xbf16>, vector<4x128xbf16>, vector<16x128xf32> -> vector<16x128xf32>
    %511 = arith.addf %504, %510 : vector<16x128xf32>
    %c6_i32_409 = arith.constant 6 : i32
    %512 = arith.addi %0, %c6_i32_409 : i32
    %c1_i32_410 = arith.constant 1 : i32
    %513 = arith.addi %512, %c1_i32_410 : i32
    %c0_411 = arith.constant 0 : index
    %514 = arith.index_cast %513 : i32 to index
    %c2_412 = arith.constant 2 : index
    %c0_413 = arith.constant 0 : index
    %515 = vector.load %arg2[%c0_411, %514, %c2_412, %c0_413] : memref<1x18x18x4xbf16, #tpu.memory_space<vmem>>, vector<1x1x16x4xbf16>
    %516 = vector.shape_cast %515 : vector<1x1x16x4xbf16> to vector<16x4xbf16>
    %cst_414 = arith.constant dense<0.000000e+00> : vector<16x128xf32>
    %517 = tpu.matmul %516, %12, %cst_414 {dimension_numbers = #tpu.dot_dimension_numbers<[1], [0], [0], [1], [0, 0, 1, 1], [], []>} : vector<16x4xbf16>, vector<4x128xbf16>, vector<16x128xf32> -> vector<16x128xf32>
    %518 = arith.addf %511, %517 : vector<16x128xf32>
    %c6_i32_415 = arith.constant 6 : i32
    %519 = arith.addi %0, %c6_i32_415 : i32
    %c2_i32_416 = arith.constant 2 : i32
    %520 = arith.addi %519, %c2_i32_416 : i32
    %c0_417 = arith.constant 0 : index
    %521 = arith.index_cast %520 : i32 to index
    %c0_418 = arith.constant 0 : index
    %c0_419 = arith.constant 0 : index
    %522 = vector.load %arg2[%c0_417, %521, %c0_418, %c0_419] : memref<1x18x18x4xbf16, #tpu.memory_space<vmem>>, vector<1x1x16x4xbf16>
    %523 = vector.shape_cast %522 : vector<1x1x16x4xbf16> to vector<16x4xbf16>
    %cst_420 = arith.constant dense<0.000000e+00> : vector<16x128xf32>
    %524 = tpu.matmul %523, %14, %cst_420 {dimension_numbers = #tpu.dot_dimension_numbers<[1], [0], [0], [1], [0, 0, 1, 1], [], []>} : vector<16x4xbf16>, vector<4x128xbf16>, vector<16x128xf32> -> vector<16x128xf32>
    %525 = arith.addf %518, %524 : vector<16x128xf32>
    %c6_i32_421 = arith.constant 6 : i32
    %526 = arith.addi %0, %c6_i32_421 : i32
    %c2_i32_422 = arith.constant 2 : i32
    %527 = arith.addi %526, %c2_i32_422 : i32
    %c0_423 = arith.constant 0 : index
    %528 = arith.index_cast %527 : i32 to index
    %c1_424 = arith.constant 1 : index
    %c0_425 = arith.constant 0 : index
    %529 = vector.load %arg2[%c0_423, %528, %c1_424, %c0_425] : memref<1x18x18x4xbf16, #tpu.memory_space<vmem>>, vector<1x1x16x4xbf16>
    %530 = vector.shape_cast %529 : vector<1x1x16x4xbf16> to vector<16x4xbf16>
    %cst_426 = arith.constant dense<0.000000e+00> : vector<16x128xf32>
    %531 = tpu.matmul %530, %16, %cst_426 {dimension_numbers = #tpu.dot_dimension_numbers<[1], [0], [0], [1], [0, 0, 1, 1], [], []>} : vector<16x4xbf16>, vector<4x128xbf16>, vector<16x128xf32> -> vector<16x128xf32>
    %532 = arith.addf %525, %531 : vector<16x128xf32>
    %c6_i32_427 = arith.constant 6 : i32
    %533 = arith.addi %0, %c6_i32_427 : i32
    %c2_i32_428 = arith.constant 2 : i32
    %534 = arith.addi %533, %c2_i32_428 : i32
    %c0_429 = arith.constant 0 : index
    %535 = arith.index_cast %534 : i32 to index
    %c2_430 = arith.constant 2 : index
    %c0_431 = arith.constant 0 : index
    %536 = vector.load %arg2[%c0_429, %535, %c2_430, %c0_431] : memref<1x18x18x4xbf16, #tpu.memory_space<vmem>>, vector<1x1x16x4xbf16>
    %537 = vector.shape_cast %536 : vector<1x1x16x4xbf16> to vector<16x4xbf16>
    %cst_432 = arith.constant dense<0.000000e+00> : vector<16x128xf32>
    %538 = tpu.matmul %537, %18, %cst_432 {dimension_numbers = #tpu.dot_dimension_numbers<[1], [0], [0], [1], [0, 0, 1, 1], [], []>} : vector<16x4xbf16>, vector<4x128xbf16>, vector<16x128xf32> -> vector<16x128xf32>
    %539 = arith.addf %532, %538 : vector<16x128xf32>
    %540 = vector.broadcast %19 : vector<1x128xf32> to vector<16x128xf32>
    %541 = arith.addf %539, %540 : vector<16x128xf32>
    %cst_433 = arith.constant 0.000000e+00 : f32
    %542 = vector.broadcast %cst_433 : f32 to vector<16x128xf32>
    %543 = arith.subf %542, %541 : vector<16x128xf32>
    %544 = math.exp %543 : vector<16x128xf32>
    %cst_434 = arith.constant 1.000000e+00 : f32
    %545 = vector.broadcast %cst_434 : f32 to vector<16x128xf32>
    %546 = arith.addf %545, %544 : vector<16x128xf32>
    %547 = tpu.reciprocal %546 {approx = true} : vector<16x128xf32> -> vector<16x128xf32>
    %548 = arith.mulf %541, %547 : vector<16x128xf32>
    %c0_435 = arith.constant 0 : index
    %c6_436 = arith.constant 6 : index
    %c0_437 = arith.constant 0 : index
    %c0_438 = arith.constant 0 : index
    %549 = vector.load %arg5[%c0_435, %c6_436, %c0_437, %c0_438] : memref<1x8x16x128xf32, #tpu.memory_space<vmem>>, vector<1x1x16x128xf32>
    %550 = vector.shape_cast %549 : vector<1x1x16x128xf32> to vector<16x128xf32>
    %551 = vector.shape_cast %548 : vector<16x128xf32> to vector<1x1x16x128xf32>
    tpu.vector_store %arg5[%c0_435, %c6_436, %c0_437, %c0_438], %551 {strides = array<i32>} : memref<1x8x16x128xf32, #tpu.memory_space<vmem>>, vector<1x1x16x128xf32>,
    %cst_439 = arith.constant 0.000000e+00 : f32
    %552 = vector.broadcast %cst_439 : f32 to vector<16x128xf32>
    %c7_i32 = arith.constant 7 : i32
    %553 = arith.addi %0, %c7_i32 : i32
    %c0_i32_440 = arith.constant 0 : i32
    %554 = arith.addi %553, %c0_i32_440 : i32
    %c0_441 = arith.constant 0 : index
    %555 = arith.index_cast %554 : i32 to index
    %c0_442 = arith.constant 0 : index
    %c0_443 = arith.constant 0 : index
    %556 = vector.load %arg2[%c0_441, %555, %c0_442, %c0_443] : memref<1x18x18x4xbf16, #tpu.memory_space<vmem>>, vector<1x1x16x4xbf16>
    %557 = vector.shape_cast %556 : vector<1x1x16x4xbf16> to vector<16x4xbf16>
    %cst_444 = arith.constant dense<0.000000e+00> : vector<16x128xf32>
    %558 = tpu.matmul %557, %2, %cst_444 {dimension_numbers = #tpu.dot_dimension_numbers<[1], [0], [0], [1], [0, 0, 1, 1], [], []>} : vector<16x4xbf16>, vector<4x128xbf16>, vector<16x128xf32> -> vector<16x128xf32>
    %559 = arith.addf %552, %558 : vector<16x128xf32>
    %c7_i32_445 = arith.constant 7 : i32
    %560 = arith.addi %0, %c7_i32_445 : i32
    %c0_i32_446 = arith.constant 0 : i32
    %561 = arith.addi %560, %c0_i32_446 : i32
    %c0_447 = arith.constant 0 : index
    %562 = arith.index_cast %561 : i32 to index
    %c1_448 = arith.constant 1 : index
    %c0_449 = arith.constant 0 : index
    %563 = vector.load %arg2[%c0_447, %562, %c1_448, %c0_449] : memref<1x18x18x4xbf16, #tpu.memory_space<vmem>>, vector<1x1x16x4xbf16>
    %564 = vector.shape_cast %563 : vector<1x1x16x4xbf16> to vector<16x4xbf16>
    %cst_450 = arith.constant dense<0.000000e+00> : vector<16x128xf32>
    %565 = tpu.matmul %564, %4, %cst_450 {dimension_numbers = #tpu.dot_dimension_numbers<[1], [0], [0], [1], [0, 0, 1, 1], [], []>} : vector<16x4xbf16>, vector<4x128xbf16>, vector<16x128xf32> -> vector<16x128xf32>
    %566 = arith.addf %559, %565 : vector<16x128xf32>
    %c7_i32_451 = arith.constant 7 : i32
    %567 = arith.addi %0, %c7_i32_451 : i32
    %c0_i32_452 = arith.constant 0 : i32
    %568 = arith.addi %567, %c0_i32_452 : i32
    %c0_453 = arith.constant 0 : index
    %569 = arith.index_cast %568 : i32 to index
    %c2_454 = arith.constant 2 : index
    %c0_455 = arith.constant 0 : index
    %570 = vector.load %arg2[%c0_453, %569, %c2_454, %c0_455] : memref<1x18x18x4xbf16, #tpu.memory_space<vmem>>, vector<1x1x16x4xbf16>
    %571 = vector.shape_cast %570 : vector<1x1x16x4xbf16> to vector<16x4xbf16>
    %cst_456 = arith.constant dense<0.000000e+00> : vector<16x128xf32>
    %572 = tpu.matmul %571, %6, %cst_456 {dimension_numbers = #tpu.dot_dimension_numbers<[1], [0], [0], [1], [0, 0, 1, 1], [], []>} : vector<16x4xbf16>, vector<4x128xbf16>, vector<16x128xf32> -> vector<16x128xf32>
    %573 = arith.addf %566, %572 : vector<16x128xf32>
    %c7_i32_457 = arith.constant 7 : i32
    %574 = arith.addi %0, %c7_i32_457 : i32
    %c1_i32_458 = arith.constant 1 : i32
    %575 = arith.addi %574, %c1_i32_458 : i32
    %c0_459 = arith.constant 0 : index
    %576 = arith.index_cast %575 : i32 to index
    %c0_460 = arith.constant 0 : index
    %c0_461 = arith.constant 0 : index
    %577 = vector.load %arg2[%c0_459, %576, %c0_460, %c0_461] : memref<1x18x18x4xbf16, #tpu.memory_space<vmem>>, vector<1x1x16x4xbf16>
    %578 = vector.shape_cast %577 : vector<1x1x16x4xbf16> to vector<16x4xbf16>
    %cst_462 = arith.constant dense<0.000000e+00> : vector<16x128xf32>
    %579 = tpu.matmul %578, %8, %cst_462 {dimension_numbers = #tpu.dot_dimension_numbers<[1], [0], [0], [1], [0, 0, 1, 1], [], []>} : vector<16x4xbf16>, vector<4x128xbf16>, vector<16x128xf32> -> vector<16x128xf32>
    %580 = arith.addf %573, %579 : vector<16x128xf32>
    %c7_i32_463 = arith.constant 7 : i32
    %581 = arith.addi %0, %c7_i32_463 : i32
    %c1_i32_464 = arith.constant 1 : i32
    %582 = arith.addi %581, %c1_i32_464 : i32
    %c0_465 = arith.constant 0 : index
    %583 = arith.index_cast %582 : i32 to index
    %c1_466 = arith.constant 1 : index
    %c0_467 = arith.constant 0 : index
    %584 = vector.load %arg2[%c0_465, %583, %c1_466, %c0_467] : memref<1x18x18x4xbf16, #tpu.memory_space<vmem>>, vector<1x1x16x4xbf16>
    %585 = vector.shape_cast %584 : vector<1x1x16x4xbf16> to vector<16x4xbf16>
    %cst_468 = arith.constant dense<0.000000e+00> : vector<16x128xf32>
    %586 = tpu.matmul %585, %10, %cst_468 {dimension_numbers = #tpu.dot_dimension_numbers<[1], [0], [0], [1], [0, 0, 1, 1], [], []>} : vector<16x4xbf16>, vector<4x128xbf16>, vector<16x128xf32> -> vector<16x128xf32>
    %587 = arith.addf %580, %586 : vector<16x128xf32>
    %c7_i32_469 = arith.constant 7 : i32
    %588 = arith.addi %0, %c7_i32_469 : i32
    %c1_i32_470 = arith.constant 1 : i32
    %589 = arith.addi %588, %c1_i32_470 : i32
    %c0_471 = arith.constant 0 : index
    %590 = arith.index_cast %589 : i32 to index
    %c2_472 = arith.constant 2 : index
    %c0_473 = arith.constant 0 : index
    %591 = vector.load %arg2[%c0_471, %590, %c2_472, %c0_473] : memref<1x18x18x4xbf16, #tpu.memory_space<vmem>>, vector<1x1x16x4xbf16>
    %592 = vector.shape_cast %591 : vector<1x1x16x4xbf16> to vector<16x4xbf16>
    %cst_474 = arith.constant dense<0.000000e+00> : vector<16x128xf32>
    %593 = tpu.matmul %592, %12, %cst_474 {dimension_numbers = #tpu.dot_dimension_numbers<[1], [0], [0], [1], [0, 0, 1, 1], [], []>} : vector<16x4xbf16>, vector<4x128xbf16>, vector<16x128xf32> -> vector<16x128xf32>
    %594 = arith.addf %587, %593 : vector<16x128xf32>
    %c7_i32_475 = arith.constant 7 : i32
    %595 = arith.addi %0, %c7_i32_475 : i32
    %c2_i32_476 = arith.constant 2 : i32
    %596 = arith.addi %595, %c2_i32_476 : i32
    %c0_477 = arith.constant 0 : index
    %597 = arith.index_cast %596 : i32 to index
    %c0_478 = arith.constant 0 : index
    %c0_479 = arith.constant 0 : index
    %598 = vector.load %arg2[%c0_477, %597, %c0_478, %c0_479] : memref<1x18x18x4xbf16, #tpu.memory_space<vmem>>, vector<1x1x16x4xbf16>
    %599 = vector.shape_cast %598 : vector<1x1x16x4xbf16> to vector<16x4xbf16>
    %cst_480 = arith.constant dense<0.000000e+00> : vector<16x128xf32>
    %600 = tpu.matmul %599, %14, %cst_480 {dimension_numbers = #tpu.dot_dimension_numbers<[1], [0], [0], [1], [0, 0, 1, 1], [], []>} : vector<16x4xbf16>, vector<4x128xbf16>, vector<16x128xf32> -> vector<16x128xf32>
    %601 = arith.addf %594, %600 : vector<16x128xf32>
    %c7_i32_481 = arith.constant 7 : i32
    %602 = arith.addi %0, %c7_i32_481 : i32
    %c2_i32_482 = arith.constant 2 : i32
    %603 = arith.addi %602, %c2_i32_482 : i32
    %c0_483 = arith.constant 0 : index
    %604 = arith.index_cast %603 : i32 to index
    %c1_484 = arith.constant 1 : index
    %c0_485 = arith.constant 0 : index
    %605 = vector.load %arg2[%c0_483, %604, %c1_484, %c0_485] : memref<1x18x18x4xbf16, #tpu.memory_space<vmem>>, vector<1x1x16x4xbf16>
    %606 = vector.shape_cast %605 : vector<1x1x16x4xbf16> to vector<16x4xbf16>
    %cst_486 = arith.constant dense<0.000000e+00> : vector<16x128xf32>
    %607 = tpu.matmul %606, %16, %cst_486 {dimension_numbers = #tpu.dot_dimension_numbers<[1], [0], [0], [1], [0, 0, 1, 1], [], []>} : vector<16x4xbf16>, vector<4x128xbf16>, vector<16x128xf32> -> vector<16x128xf32>
    %608 = arith.addf %601, %607 : vector<16x128xf32>
    %c7_i32_487 = arith.constant 7 : i32
    %609 = arith.addi %0, %c7_i32_487 : i32
    %c2_i32_488 = arith.constant 2 : i32
    %610 = arith.addi %609, %c2_i32_488 : i32
    %c0_489 = arith.constant 0 : index
    %611 = arith.index_cast %610 : i32 to index
    %c2_490 = arith.constant 2 : index
    %c0_491 = arith.constant 0 : index
    %612 = vector.load %arg2[%c0_489, %611, %c2_490, %c0_491] : memref<1x18x18x4xbf16, #tpu.memory_space<vmem>>, vector<1x1x16x4xbf16>
    %613 = vector.shape_cast %612 : vector<1x1x16x4xbf16> to vector<16x4xbf16>
    %cst_492 = arith.constant dense<0.000000e+00> : vector<16x128xf32>
    %614 = tpu.matmul %613, %18, %cst_492 {dimension_numbers = #tpu.dot_dimension_numbers<[1], [0], [0], [1], [0, 0, 1, 1], [], []>} : vector<16x4xbf16>, vector<4x128xbf16>, vector<16x128xf32> -> vector<16x128xf32>
    %615 = arith.addf %608, %614 : vector<16x128xf32>
    %616 = vector.broadcast %19 : vector<1x128xf32> to vector<16x128xf32>
    %617 = arith.addf %615, %616 : vector<16x128xf32>
    %cst_493 = arith.constant 0.000000e+00 : f32
    %618 = vector.broadcast %cst_493 : f32 to vector<16x128xf32>
    %619 = arith.subf %618, %617 : vector<16x128xf32>
    %620 = math.exp %619 : vector<16x128xf32>
    %cst_494 = arith.constant 1.000000e+00 : f32
    %621 = vector.broadcast %cst_494 : f32 to vector<16x128xf32>
    %622 = arith.addf %621, %620 : vector<16x128xf32>
    %623 = tpu.reciprocal %622 {approx = true} : vector<16x128xf32> -> vector<16x128xf32>
    %624 = arith.mulf %617, %623 : vector<16x128xf32>
    %c0_495 = arith.constant 0 : index
    %c7_496 = arith.constant 7 : index
    %c0_497 = arith.constant 0 : index
    %c0_498 = arith.constant 0 : index
    %625 = vector.load %arg5[%c0_495, %c7_496, %c0_497, %c0_498] : memref<1x8x16x128xf32, #tpu.memory_space<vmem>>, vector<1x1x16x128xf32>
    %626 = vector.shape_cast %625 : vector<1x1x16x128xf32> to vector<16x128xf32>
    %627 = vector.shape_cast %624 : vector<16x128xf32> to vector<1x1x16x128xf32>
    tpu.vector_store %arg5[%c0_495, %c7_496, %c0_497, %c0_498], %627 {strides = array<i32>} : memref<1x8x16x128xf32, #tpu.memory_space<vmem>>, vector<1x1x16x128xf32>,
    return
  }
  func.func @transform_0(%arg0: i32, %arg1: i32) -> (i32, i32, i32, i32) {
    %c0_i32 = arith.constant 0 : i32
    %c0_i32_0 = arith.constant 0 : i32
    %c0_i32_1 = arith.constant 0 : i32
    %c0_i32_2 = arith.constant 0 : i32
    return %arg0, %c0_i32, %c0_i32_0, %c0_i32_1 : i32, i32, i32, i32
  }
  func.func @transform_1(%arg0: i32, %arg1: i32) -> (i32, i32, i32) {
    %c0_i32 = arith.constant 0 : i32
    %c0_i32_0 = arith.constant 0 : i32
    %c0_i32_1 = arith.constant 0 : i32
    %c0_i32_2 = arith.constant 0 : i32
    return %c0_i32, %c0_i32_0, %c0_i32_1 : i32, i32, i32
  }
  func.func @transform_2(%arg0: i32, %arg1: i32) -> (i32, i32) {
    %c0_i32 = arith.constant 0 : i32
    %c0_i32_0 = arith.constant 0 : i32
    %c0_i32_1 = arith.constant 0 : i32
    return %c0_i32, %c0_i32_0 : i32, i32
  }
  func.func @transform_3(%arg0: i32, %arg1: i32) -> (i32, i32, i32, i32) {
    %c0_i32 = arith.constant 0 : i32
    %c0_i32_0 = arith.constant 0 : i32
    %c0_i32_1 = arith.constant 0 : i32
    return %arg0, %arg1, %c0_i32, %c0_i32_0 : i32, i32, i32, i32
  }
}

</mosaic_0001>

<llo_original>
// kernel: conv_bn_silu_forward.1
$region0: #{conv_bn_silu_forward.1}
  #allocation0 [shape = 'u32[]', space=smem, size = 0x4, offset = 0x4, fixed_abs, tag = 'smem constant byte address 0x4 - core index']
  #allocation1 [shape = 'u32[72,128]{1,0:T(1,128)}', space=vmem, size = 0x9000, scoped, tag = 'internal scratch']
  %s0 = inlined_call_operand.vmem [shape: bf16[2,18,18,4], index: 0, kind: input, shape index: {}]
  %s1 = inlined_call_operand.vmem [shape: bf16[9,4,128], index: 1, kind: input, shape index: {}]
  %s2 = inlined_call_operand.vmem [shape: f32[1,128], index: 2, kind: input, shape index: {}]
  %s3 = inlined_call_operand.vmem [shape: f32[2,16,16,128], index: 3, kind: output, shape index: {}]
  %s4 = sld [smem:[#allocation0]]
  $region45: #{conv_bn_silu_forward.1} parent=0
    _
  %s6 = ssub.s32 1, %s4
  %s7 = scalar_select 0, %s6, %s4
  loop: start=0, step=1, limit=6
  $region2: #{conv_bn_silu_forward.1} parent=0 // loop_pre_header
    _
  $region3: #{conv_bn_silu_forward.1} parent=0 // loop_header
    %s9 = sphi 0, %s13
    %p10 = scmp.ge.s32.totalorder %s9, 6
    %s16 = sphi 0, %s28
    %s17 = sphi 0, %s24
    %s18 = sphi 0, %s16
    %s19 = sphi 0, %s17
    %s20 = sphi 0, %s18
    %s21 = sphi 0, %s19
    %s31 = sphi 0, %s33
    %s34 = sphi 0, %s31
    %s35 = sphi 0, %s34
    %s51 = sphi 0, %s35
    %s55 = sphi 0, %s55
    %s57 = sphi 0, %s55
    %s58 = sphi 0, %s57
    %s72 = sphi 0, %s58
    %s76 = sphi 0, %s76
    %s78 = sphi 0, %s76
    %s79 = sphi 0, %s78
    %s93 = sphi 0, %s79
    %s101 = sphi 0, %s103
    %s104 = sphi 0, %s101
    %s105 = sphi 0, %s104
    %s121 = sphi 0, %s105
  $region4: #{conv_bn_silu_forward.1} parent=0 // loop_header_branch
    %12 = sbr.rel (%p10) target = $region8
  $region5: #{conv_bn_silu_forward.1} parent=0 // loop_body
    %s14 = ssub.s32 %s9, 1
    %s15 = ssub.s32 %s9, 2
    %s22 = sadd.s32 1, %s17
    %p23 = scmp.ge.s32.totalorder %s22, 2
    %s24 = scalar_select %p23, 0, %s22
    %s25 = sadd.s32 1, %s16
    %s26 = scalar_select %p23, %s25, %s16
    %p27 = scmp.ge.s32.totalorder %s26, 2
    %s28 = scalar_select %p27, 0, %s26
    %s29 = ssub.s32 %s16, %s28
    %p30 = scmp.eq.s32.totalorder %s29, 0
    %s32 = sadd.s32 %s31, 1
    %s33 = scalar_select %p30, %s31, %s32
    %p36 = pneg %p30
    %p37 = scmp.eq.s32.totalorder %s9, 3
    %p38 = por %p36, %p37
    %p39 = scmp.ne.s32.totalorder %s31, %s34
    %p40 = scmp.eq.s32.totalorder %s9, 0
    %p41 = por %p39, %p40
    %p42 = scmp.ne.s32.totalorder %s31, %s34
    %p43 = scmp.eq.s32.totalorder %s14, 3
    %p44 = por %p42, %p43
    %p45 = scmp.ne.s32.totalorder %s34, %s35
    %p46 = scmp.eq.s32.totalorder %s14, 0
    %p47 = por %p45, %p46
    %p48 = scmp.ne.s32.totalorder %s34, %s35
    %p49 = scmp.eq.s32.totalorder %s15, 3
    %p50 = por %p48, %p49
    %p52 = scmp.ne.s32.totalorder %s35, %s51
    %p53 = scmp.eq.s32.totalorder %s15, 0
    %p54 = por %p52, %p53
    %s56 = sadd.s32 %s55, 1
    %p59 = scmp.eq.s32.totalorder %s9, 3
    %p60 = scmp.ne.s32.totalorder %s55, %s57
    %p61 = scmp.eq.s32.totalorder %s9, 0
    %p62 = por %p60, %p61
    %p63 = scmp.ne.s32.totalorder %s55, %s57
    %p64 = scmp.eq.s32.totalorder %s14, 3
    %p65 = por %p63, %p64
    %p66 = scmp.ne.s32.totalorder %s57, %s58
    %p67 = scmp.eq.s32.totalorder %s14, 0
    %p68 = por %p66, %p67
    %p69 = scmp.ne.s32.totalorder %s57, %s58
    %p70 = scmp.eq.s32.totalorder %s15, 3
    %p71 = por %p69, %p70
    %p73 = scmp.ne.s32.totalorder %s58, %s72
    %p74 = scmp.eq.s32.totalorder %s15, 0
    %p75 = por %p73, %p74
    %s77 = sadd.s32 %s76, 1
    %p80 = scmp.eq.s32.totalorder %s9, 3
    %p81 = scmp.ne.s32.totalorder %s76, %s78
    %p82 = scmp.eq.s32.totalorder %s9, 0
    %p83 = por %p81, %p82
    %p84 = scmp.ne.s32.totalorder %s76, %s78
    %p85 = scmp.eq.s32.totalorder %s14, 3
    %p86 = por %p84, %p85
    %p87 = scmp.ne.s32.totalorder %s78, %s79
    %p88 = scmp.eq.s32.totalorder %s14, 0
    %p89 = por %p87, %p88
    %p90 = scmp.ne.s32.totalorder %s78, %s79
    %p91 = scmp.eq.s32.totalorder %s15, 3
    %p92 = por %p90, %p91
    %p94 = scmp.ne.s32.totalorder %s79, %s93
    %p95 = scmp.eq.s32.totalorder %s15, 0
    %p96 = por %p94, %p95
    %s97 = ssub.s32 %s16, %s28
    %s98 = ssub.s32 %s17, %s24
    %s99 = sor.u32 %s97, %s98
    %p100 = scmp.eq.s32.totalorder %s99, 0
    %s102 = sadd.s32 %s101, 1
    %s103 = scalar_select %p100, %s101, %s102
    %p106 = pneg %p100
    %p107 = scmp.eq.s32.totalorder %s9, 3
    %p108 = por %p106, %p107
    %p109 = scmp.ne.s32.totalorder %s101, %s104
    %p110 = scmp.eq.s32.totalorder %s9, 0
    %p111 = por %p109, %p110
    %p112 = scmp.ne.s32.totalorder %s101, %s104
    %p113 = scmp.eq.s32.totalorder %s14, 3
    %p114 = por %p112, %p113
    %p115 = scmp.ne.s32.totalorder %s104, %s105
    %p116 = scmp.eq.s32.totalorder %s14, 0
    %p117 = por %p115, %p116
    %p118 = scmp.ne.s32.totalorder %s104, %s105
    %p119 = scmp.eq.s32.totalorder %s15, 3
    %p120 = por %p118, %p119
    %p122 = scmp.ne.s32.totalorder %s105, %s121
    %p123 = scmp.eq.s32.totalorder %s15, 0
    %p124 = por %p122, %p123
    %p125 = scmp.le.s32.totalorder 1, %s9
    %p126 = scmp.lt.s32.totalorder %s9, 5
    %p127 = pnand %p125, %p126
    %p128 = pneg %p127
    // Predicated region
    $region9: #{conv_bn_silu_forward.1} parent=5 // pred_check
      _
    $region10: #{conv_bn_silu_forward.1} parent=5 // pred_check_branch
      %130 = sbr.rel (%p127) target = $region12
    $region11: #{conv_bn_silu_forward.1} parent=5 // pred_region
      %s131 = ssub.s32 %s9, 1
      // Predicated region
      $region13: #{conv_bn_silu_forward.1} parent=11 // pred_check
        %p132 = pneg %p68
      $region14: #{conv_bn_silu_forward.1} parent=11 // pred_check_branch
        %134 = sbr.rel (%p132) target = $region16
      $region15: #{conv_bn_silu_forward.1} parent=11 // pred_region
        _
      $region16: #{conv_bn_silu_forward.1} parent=11 // pred_fallthru
        _
      // Predicated region
      $region17: #{conv_bn_silu_forward.1} parent=11 // pred_check
        %p135 = pneg %p89
      $region18: #{conv_bn_silu_forward.1} parent=11 // pred_check_branch
        %137 = sbr.rel (%p135) target = $region20
      $region19: #{conv_bn_silu_forward.1} parent=11 // pred_region
        _
      $region20: #{conv_bn_silu_forward.1} parent=11 // pred_fallthru
        _
    $region12: #{conv_bn_silu_forward.1} parent=5 // pred_fallthru
      _
    %p138 = scmp.lt.s32.totalorder %s9, 4
    // Predicated region
    $region21: #{conv_bn_silu_forward.1} parent=5 // pred_check
      %p139 = pneg %p138
    $region22: #{conv_bn_silu_forward.1} parent=5 // pred_check_branch
      %141 = sbr.rel (%p139) target = $region24
    $region23: #{conv_bn_silu_forward.1} parent=5 // pred_region
      // Predicated region
      $region25: #{conv_bn_silu_forward.1} parent=23 // pred_check
        %p142 = pneg %p41
      $region26: #{conv_bn_silu_forward.1} parent=23 // pred_check_branch
        %144 = sbr.rel (%p142) target = $region28
      $region27: #{conv_bn_silu_forward.1} parent=23 // pred_region
        %p145 = scmp.lt.s32.totalorder %s16, 1
        %s146 = scalar_select %p145, %s16, 1
        %s147 = smul.addr %s146, 54
        %s148 = smul.addr %s147, 4
        %s149 = scalar_lea.vmem %s0, %s148
      $region28: #{conv_bn_silu_forward.1} parent=23 // pred_fallthru
        _
    $region24: #{conv_bn_silu_forward.1} parent=5 // pred_fallthru
      _
    %p150 = scmp.le.s32.totalorder 1, %s9
    %p151 = scmp.lt.s32.totalorder %s9, 5
    %p152 = pnand %p150, %p151
    %p153 = pneg %p152
    // Predicated region
    $region29: #{conv_bn_silu_forward.1} parent=5 // pred_check
      _
    $region30: #{conv_bn_silu_forward.1} parent=5 // pred_check_branch
      %155 = sbr.rel (%p152) target = $region32
    $region31: #{conv_bn_silu_forward.1} parent=5 // pred_region
      %s156 = ssub.s32 %s9, 1
      %p157 = scmp.lt.s32.totalorder %s18, 1
      %s158 = scalar_select %p157, %s18, 1
      %s159 = smul.addr %s158, 54
      %s160 = smul.addr %s159, 4
      %s161 = scalar_lea.vmem %s0, %s160
      %p162 = pneg %p47
      %p163 = pneg %p44
      %p164 = pneg %p68
      %p165 = pneg %p65
      %p166 = pneg %p89
      %p167 = pneg %p86
      %p168 = pneg %p117
      %p169 = pneg %p114
      %s170 = smul.u32 8, %s19
      %p171 = scmp.lt.s32.totalorder %s18, 1
      %s172 = scalar_select %p171, %s18, 1
      %p173 = scmp.lt.s32.totalorder %s170, 15
      %s174 = scalar_select %p173, %s170, 15
      %s175 = smul.addr %s174, 2
      %s176 = smul.addr %s172, 32
      %s177 = sadd.s32 %s175, %s176
      %s178 = smul.addr %s177, 8
      %s179 = scalar_lea.vmem %s3, %s178
      %p180 = scmp.lt.s32.totalorder %s18, 1
      %s181 = scalar_select %p180, %s18, 1
      %s182 = smul.addr %s181, 54
      %s183 = smul.addr %s182, 4
      %s184 = scalar_lea.vmem %s0, %s183
      %s185 = smul.u32 8, %s19
      %p186 = scmp.lt.s32.totalorder %s18, 1
      %s187 = scalar_select %p186, %s18, 1
      %p188 = scmp.lt.s32.totalorder %s185, 15
      %s189 = scalar_select %p188, %s185, 15
      %s190 = smul.addr %s189, 2
      %s191 = smul.addr %s187, 32
      %s192 = sadd.s32 %s190, %s191
      %s193 = smul.addr %s192, 8
      %s194 = scalar_lea.vmem %s3, %s193
      %s195 = smul.u32 8, %s19
      %s197 = smul.u32 %s19, 8
      %v198 = vld [vmem:[%s1] sm:$0x3]
      %s199 = scalar_lea.vmem %s1, 2
      %v200 = vld [vmem:[%s199] sm:$0x3]
      %s201 = scalar_lea.vmem %s1, 4
      %v202 = vld [vmem:[%s201] sm:$0x3]
      %s203 = scalar_lea.vmem %s1, 6
      %v204 = vld [vmem:[%s203] sm:$0x3]
      %s205 = scalar_lea.vmem %s1, 8
      %v206 = vld [vmem:[%s205] sm:$0x3]
      %s207 = scalar_lea.vmem %s1, 10
      %v208 = vld [vmem:[%s207] sm:$0x3]
      %s209 = scalar_lea.vmem %s1, 12
      %v210 = vld [vmem:[%s209] sm:$0x3]
      %s211 = scalar_lea.vmem %s1, 14
      %v212 = vld [vmem:[%s211] sm:$0x3]
      %s213 = scalar_lea.vmem %s1, 16
      %v214 = vld [vmem:[%s213] sm:$0x3]
      %v215 = vld [vmem:[%s2] sm:$0x1]
      %s216 = smul.u32 %s197, 3
      %s217 = smul.addr %s216, 4
      %s218 = scalar_lea.vmem %s184, %s217
      %v219 = vld [vmem:[%s218] sm:$0xf]
      %v220 = vld [vmem:[%s218 + $0x4] sm:$0xf]
      %v221 = vld [vmem:[%s218 + $0x8] sm:$0x1]
      %v225 = vunpack.c.l.b16 %v219
      %v226 = vunpack.c.l.b16 %v220
      %v227 = vunpack.c.l.b16 %v221
      %v228 = vpack.c.b16 %v226, %v225
      %v229 = vpack.c.b16 %v227, %v227
      %vm230 = vsmask.f32 7424
      %v232 = vshrl.u32 %v228, 16
      %v234 = vshll.u32 %v228, 16
      %v236 = vrot.slane %v234, 1
      %v237 = vor.u32 %v232, %v236
      %v239 = vshll.u32 %v229, 16
      %v241 = vrot.slane %v239, 1
      %v242 = vsel %vm230, %v237, %v241
      %vm243 = vcmask 31744
      %v245 = vsel %vm243, %v242, 0
      %vm247 = vcmask 1041408
      %v249 = vsel %vm247, %v200, 0
      %251 = vmatpush.bf16.msra.mxu0 0
      %252 = vmatpush.bf16.msra.mxu0 0
      %253 = vmatpush.bf16.msra.mxu0 0
      %254 = vmatpush.bf16.msra.mxu0 0
      %255 = vmatpush.bf16.msra.mxu0 0
      %256 = vmatpush.bf16.msra.mxu0 0
      %257 = vmatpush.bf16.msra.mxu0 0
      %258 = vmatpush.bf16.msra.mxu0 %v249
      %259 = vmatmul.bf16.gmra.mxu0 %v245
      %v260 = vpop.f32.mrf.mxu0
      %v261 = vadd.f32 0.0, %v260
      %v262 = vpop.f32.mrf.mxu0
      %v263 = vadd.f32 0.0, %v262
      %264 = vdwg.mxu0
      %v265 = vsel %vm243, %v228, 0
      %v268 = vsel %vm247, %v198, 0
      %270 = vmatpush.bf16.msra.mxu0 0
      %271 = vmatpush.bf16.msra.mxu0 0
      %272 = vmatpush.bf16.msra.mxu0 0
      %273 = vmatpush.bf16.msra.mxu0 0
      %274 = vmatpush.bf16.msra.mxu0 0
      %275 = vmatpush.bf16.msra.mxu0 0
      %276 = vmatpush.bf16.msra.mxu0 0
      %277 = vmatpush.bf16.msra.mxu0 %v268
      %278 = vmatmul.bf16.gmra.mxu0 %v265
      %v279 = vpop.f32.mrf.mxu0
      %v280 = vadd.f32 %v261, %v279
      %v281 = vpop.f32.mrf.mxu0
      %v282 = vadd.f32 %v263, %v281
      %283 = vdwg.mxu0
      %v284 = vld [vmem:[%s218] sm:$0xe]
      %v286 = vunpack.c.l.b16 %v284
      %v287 = vpack.c.b16 %v226, %v286
      %vm288 = vcmask 1046528
      %v289 = vrot.slane %v287, 1
      %v290 = vrot.slane %v229, 1
      %v291 = vsel %vm288, %v289, %v290
      %v293 = vsel %vm243, %v291, 0
      %v296 = vsel %vm247, %v202, 0
      %298 = vmatpush.bf16.msra.mxu0 0
      %299 = vmatpush.bf16.msra.mxu0 0
      %300 = vmatpush.bf16.msra.mxu0 0
      %301 = vmatpush.bf16.msra.mxu0 0
      %302 = vmatpush.bf16.msra.mxu0 0
      %303 = vmatpush.bf16.msra.mxu0 0
      %304 = vmatpush.bf16.msra.mxu0 0
      %305 = vmatpush.bf16.msra.mxu0 %v296
      %306 = vmatmul.bf16.gmra.mxu0 %v293
      %v307 = vpop.f32.mrf.mxu0
      %v308 = vadd.f32 0.0, %v307
      %v309 = vpop.f32.mrf.mxu0
      %v310 = vadd.f32 0.0, %v309
      %311 = vdwg.mxu0
      %v312 = vadd.f32 %v280, %v308
      %v313 = vadd.f32 %v282, %v310
      %s314 = sadd.s32 %s197, 1
      %s315 = smul.u32 %s314, 3
      %s316 = smul.addr %s315, 4
      %s317 = scalar_lea.vmem %s184, %s316
      %v318 = vld [vmem:[%s317] sm:$0xf]
      %v319 = vld [vmem:[%s317 + $0x4] sm:$0xf]
      %v322 = vunpack.c.l.b16 %v318
      %v323 = vunpack.c.l.b16 %v319
      %v324 = vpack.c.b16 %v323, %v322
      %v326 = vsel %vm243, %v324, 0
      %v329 = vsel %vm247, %v204, 0
      %331 = vmatpush.bf16.msra.mxu0 0
      %332 = vmatpush.bf16.msra.mxu0 0
      %333 = vmatpush.bf16.msra.mxu0 0
      %334 = vmatpush.bf16.msra.mxu0 0
      %335 = vmatpush.bf16.msra.mxu0 0
      %336 = vmatpush.bf16.msra.mxu0 0
      %337 = vmatpush.bf16.msra.mxu0 0
      %338 = vmatpush.bf16.msra.mxu0 %v329
      %339 = vmatmul.bf16.gmra.mxu0 %v326
      %v340 = vpop.f32.mrf.mxu0
      %v341 = vadd.f32 0.0, %v340
      %v342 = vpop.f32.mrf.mxu0
      %v343 = vadd.f32 0.0, %v342
      %344 = vdwg.mxu0
      %v345 = vadd.f32 %v312, %v341
      %v346 = vadd.f32 %v313, %v343
      %v347 = vld [vmem:[%s317] sm:$0xf]
      %v348 = vld [vmem:[%s317 + $0x4] sm:$0xf]
      %v349 = vld [vmem:[%s317 + $0x8] sm:$0x1]
      %v353 = vunpack.c.l.b16 %v347
      %v354 = vunpack.c.l.b16 %v348
      %v355 = vunpack.c.l.b16 %v349
      %v356 = vpack.c.b16 %v354, %v353
      %v357 = vpack.c.b16 %v355, %v355
      %v359 = vshrl.u32 %v356, 16
      %v361 = vshll.u32 %v356, 16
      %v363 = vrot.slane %v361, 1
      %v364 = vor.u32 %v359, %v363
      %v366 = vshll.u32 %v357, 16
      %v368 = vrot.slane %v366, 1
      %v369 = vsel %vm230, %v364, %v368
      %v371 = vsel %vm243, %v369, 0
      %v374 = vsel %vm247, %v206, 0
      %376 = vmatpush.bf16.msra.mxu0 0
      %377 = vmatpush.bf16.msra.mxu0 0
      %378 = vmatpush.bf16.msra.mxu0 0
      %379 = vmatpush.bf16.msra.mxu0 0
      %380 = vmatpush.bf16.msra.mxu0 0
      %381 = vmatpush.bf16.msra.mxu0 0
      %382 = vmatpush.bf16.msra.mxu0 0
      %383 = vmatpush.bf16.msra.mxu0 %v374
      %384 = vmatmul.bf16.gmra.mxu0 %v371
      %v385 = vpop.f32.mrf.mxu0
      %v386 = vadd.f32 0.0, %v385
      %v387 = vpop.f32.mrf.mxu0
      %v388 = vadd.f32 0.0, %v387
      %389 = vdwg.mxu0
      %v390 = vadd.f32 %v345, %v386
      %v391 = vadd.f32 %v346, %v388
      %v392 = vld [vmem:[%s317] sm:$0xe]
      %v394 = vunpack.c.l.b16 %v392
      %v395 = vpack.c.b16 %v354, %v394
      %v396 = vrot.slane %v395, 1
      %v397 = vrot.slane %v357, 1
      %v398 = vsel %vm288, %v396, %v397
      %v400 = vsel %vm243, %v398, 0
      %v403 = vsel %vm247, %v208, 0
      %405 = vmatpush.bf16.msra.mxu0 0
      %406 = vmatpush.bf16.msra.mxu0 0
      %407 = vmatpush.bf16.msra.mxu0 0
      %408 = vmatpush.bf16.msra.mxu0 0
      %409 = vmatpush.bf16.msra.mxu0 0
      %410 = vmatpush.bf16.msra.mxu0 0
      %411 = vmatpush.bf16.msra.mxu0 0
      %412 = vmatpush.bf16.msra.mxu0 %v403
      %413 = vmatmul.bf16.gmra.mxu0 %v400
      %v414 = vpop.f32.mrf.mxu0
      %v415 = vadd.f32 0.0, %v414
      %v416 = vpop.f32.mrf.mxu0
      %v417 = vadd.f32 0.0, %v416
      %418 = vdwg.mxu0
      %v419 = vadd.f32 %v390, %v415
      %v420 = vadd.f32 %v391, %v417
      %s421 = sadd.s32 %s197, 2
      %s422 = smul.u32 %s421, 3
      %s423 = smul.addr %s422, 4
      %s424 = scalar_lea.vmem %s184, %s423
      %v425 = vld [vmem:[%s424] sm:$0xf]
      %v426 = vld [vmem:[%s424 + $0x4] sm:$0xf]
      %v429 = vunpack.c.l.b16 %v425
      %v430 = vunpack.c.l.b16 %v426
      %v431 = vpack.c.b16 %v430, %v429
      %v433 = vsel %vm243, %v431, 0
      %v436 = vsel %vm247, %v210, 0
      %438 = vmatpush.bf16.msra.mxu0 0
      %439 = vmatpush.bf16.msra.mxu0 0
      %440 = vmatpush.bf16.msra.mxu0 0
      %441 = vmatpush.bf16.msra.mxu0 0
      %442 = vmatpush.bf16.msra.mxu0 0
      %443 = vmatpush.bf16.msra.mxu0 0
      %444 = vmatpush.bf16.msra.mxu0 0
      %445 = vmatpush.bf16.msra.mxu0 %v436
      %446 = vmatmul.bf16.gmra.mxu0 %v433
      %v447 = vpop.f32.mrf.mxu0
      %v448 = vadd.f32 0.0, %v447
      %v449 = vpop.f32.mrf.mxu0
      %v450 = vadd.f32 0.0, %v449
      %451 = vdwg.mxu0
      %v452 = vadd.f32 %v419, %v448
      %v453 = vadd.f32 %v420, %v450
      %v454 = vld [vmem:[%s424] sm:$0xf]
      %v455 = vld [vmem:[%s424 + $0x4] sm:$0xf]
      %v456 = vld [vmem:[%s424 + $0x8] sm:$0x1]
      %v460 = vunpack.c.l.b16 %v454
      %v461 = vunpack.c.l.b16 %v455
      %v462 = vunpack.c.l.b16 %v456
      %v463 = vpack.c.b16 %v461, %v460
      %v464 = vpack.c.b16 %v462, %v462
      %v466 = vshrl.u32 %v463, 16
      %v468 = vshll.u32 %v463, 16
      %v470 = vrot.slane %v468, 1
      %v471 = vor.u32 %v466, %v470
      %v473 = vshll.u32 %v464, 16
      %v475 = vrot.slane %v473, 1
      %v476 = vsel %vm230, %v471, %v475
      %v478 = vsel %vm243, %v476, 0
      %v481 = vsel %vm247, %v212, 0
      %483 = vmatpush.bf16.msra.mxu0 0
      %484 = vmatpush.bf16.msra.mxu0 0
      %485 = vmatpush.bf16.msra.mxu0 0
      %486 = vmatpush.bf16.msra.mxu0 0
      %487 = vmatpush.bf16.msra.mxu0 0
      %488 = vmatpush.bf16.msra.mxu0 0
      %489 = vmatpush.bf16.msra.mxu0 0
      %490 = vmatpush.bf16.msra.mxu0 %v481
      %491 = vmatmul.bf16.gmra.mxu0 %v478
      %v492 = vpop.f32.mrf.mxu0
      %v493 = vadd.f32 0.0, %v492
      %v494 = vpop.f32.mrf.mxu0
      %v495 = vadd.f32 0.0, %v494
      %496 = vdwg.mxu0
      %v497 = vadd.f32 %v452, %v493
      %v498 = vadd.f32 %v453, %v495
      %v499 = vld [vmem:[%s424] sm:$0xe]
      %v501 = vunpack.c.l.b16 %v499
      %v502 = vpack.c.b16 %v461, %v501
      %v503 = vrot.slane %v502, 1
      %v504 = vrot.slane %v464, 1
      %v505 = vsel %vm288, %v503, %v504
      %v507 = vsel %vm243, %v505, 0
      %v510 = vsel %vm247, %v214, 0
      %512 = vmatpush.bf16.msra.mxu0 0
      %513 = vmatpush.bf16.msra.mxu0 0
      %514 = vmatpush.bf16.msra.mxu0 0
      %515 = vmatpush.bf16.msra.mxu0 0
      %516 = vmatpush.bf16.msra.mxu0 0
      %517 = vmatpush.bf16.msra.mxu0 0
      %518 = vmatpush.bf16.msra.mxu0 0
      %519 = vmatpush.bf16.msra.mxu0 %v510
      %520 = vmatmul.bf16.gmra.mxu0 %v507
      %v521 = vpop.f32.mrf.mxu0
      %v522 = vadd.f32 0.0, %v521
      %v523 = vpop.f32.mrf.mxu0
      %v524 = vadd.f32 0.0, %v523
      %525 = vdwg.mxu0
      %v526 = vadd.f32 %v497, %v522
      %v527 = vadd.f32 %v498, %v524
      %v529 = vperm.slane %v215, 0
      %v531 = vadd.f32 %v526, %v529
      %v532 = vadd.f32 %v527, %v529
      %v533 = vsub.f32 0.0, %v531
      %v534 = vsub.f32 0.0, %v532
      %v535 = vmul.f32 %v533, 1.442695
      %v536 = vpow.pop %v535
      %v537 = vmul.f32 %v534, 1.442695
      %v538 = vpow.pop %v537
      %v539 = vadd.f32 %v536, 1.0
      %v540 = vadd.f32 %v538, 1.0
      %v541 = vrcp.pop %v539
      %v542 = vrcp.pop %v540
      %v543 = vmul.f32 %v531, %v541
      %v544 = vmul.f32 %v532, %v542
      %545 = vst [vmem:[%s194] sm:$0xff] %v543
      %546 = vst [vmem:[%s194 + $0x8] sm:$0xff] %v544
      %v547 = vld [vmem:[%s317] sm:$0xf]
      %v548 = vld [vmem:[%s317 + $0x4] sm:$0xf]
      %v549 = vld [vmem:[%s317 + $0x8] sm:$0x1]
      %v553 = vunpack.c.l.b16 %v547
      %v554 = vunpack.c.l.b16 %v548
      %v555 = vunpack.c.l.b16 %v549
      %v556 = vpack.c.b16 %v554, %v553
      %v557 = vpack.c.b16 %v555, %v555
      %v559 = vshrl.u32 %v556, 16
      %v561 = vshll.u32 %v556, 16
      %v563 = vrot.slane %v561, 1
      %v564 = vor.u32 %v559, %v563
      %v566 = vshll.u32 %v557, 16
      %v568 = vrot.slane %v566, 1
      %v569 = vsel %vm230, %v564, %v568
      %v571 = vsel %vm243, %v569, 0
      %573 = vmatpush.bf16.msra.mxu0 0
      %574 = vmatpush.bf16.msra.mxu0 0
      %575 = vmatpush.bf16.msra.mxu0 0
      %576 = vmatpush.bf16.msra.mxu0 0
      %577 = vmatpush.bf16.msra.mxu0 0
      %578 = vmatpush.bf16.msra.mxu0 0
      %579 = vmatpush.bf16.msra.mxu0 0
      %580 = vmatpush.bf16.msra.mxu0 %v249
      %581 = vmatmul.bf16.gmra.mxu0 %v571
      %v582 = vpop.f32.mrf.mxu0
      %v583 = vadd.f32 0.0, %v582
      %v584 = vpop.f32.mrf.mxu0
      %v585 = vadd.f32 0.0, %v584
      %586 = vdwg.mxu0
      %v587 = vsel %vm243, %v556, 0
      %589 = vmatpush.bf16.msra.mxu0 0
      %590 = vmatpush.bf16.msra.mxu0 0
      %591 = vmatpush.bf16.msra.mxu0 0
      %592 = vmatpush.bf16.msra.mxu0 0
      %593 = vmatpush.bf16.msra.mxu0 0
      %594 = vmatpush.bf16.msra.mxu0 0
      %595 = vmatpush.bf16.msra.mxu0 0
      %596 = vmatpush.bf16.msra.mxu0 %v268
      %597 = vmatmul.bf16.gmra.mxu0 %v587
      %v598 = vpop.f32.mrf.mxu0
      %v599 = vadd.f32 %v583, %v598
      %v600 = vpop.f32.mrf.mxu0
      %v601 = vadd.f32 %v585, %v600
      %602 = vdwg.mxu0
      %v603 = vld [vmem:[%s317] sm:$0xe]
      %v605 = vunpack.c.l.b16 %v603
      %v606 = vpack.c.b16 %v554, %v605
      %v607 = vrot.slane %v606, 1
      %v608 = vrot.slane %v557, 1
      %v609 = vsel %vm288, %v607, %v608
      %v611 = vsel %vm243, %v609, 0
      %613 = vmatpush.bf16.msra.mxu0 0
      %614 = vmatpush.bf16.msra.mxu0 0
      %615 = vmatpush.bf16.msra.mxu0 0
      %616 = vmatpush.bf16.msra.mxu0 0
      %617 = vmatpush.bf16.msra.mxu0 0
      %618 = vmatpush.bf16.msra.mxu0 0
      %619 = vmatpush.bf16.msra.mxu0 0
      %620 = vmatpush.bf16.msra.mxu0 %v296
      %621 = vmatmul.bf16.gmra.mxu0 %v611
      %v622 = vpop.f32.mrf.mxu0
      %v623 = vadd.f32 0.0, %v622
      %v624 = vpop.f32.mrf.mxu0
      %v625 = vadd.f32 0.0, %v624
      %626 = vdwg.mxu0
      %v627 = vadd.f32 %v599, %v623
      %v628 = vadd.f32 %v601, %v625
      %v629 = vld [vmem:[%s424] sm:$0xf]
      %v630 = vld [vmem:[%s424 + $0x4] sm:$0xf]
      %v633 = vunpack.c.l.b16 %v629
      %v634 = vunpack.c.l.b16 %v630
      %v635 = vpack.c.b16 %v634, %v633
      %v637 = vsel %vm243, %v635, 0
      %639 = vmatpush.bf16.msra.mxu0 0
      %640 = vmatpush.bf16.msra.mxu0 0
      %641 = vmatpush.bf16.msra.mxu0 0
      %642 = vmatpush.bf16.msra.mxu0 0
      %643 = vmatpush.bf16.msra.mxu0 0
      %644 = vmatpush.bf16.msra.mxu0 0
      %645 = vmatpush.bf16.msra.mxu0 0
      %646 = vmatpush.bf16.msra.mxu0 %v329
      %647 = vmatmul.bf16.gmra.mxu0 %v637
      %v648 = vpop.f32.mrf.mxu0
      %v649 = vadd.f32 0.0, %v648
      %v650 = vpop.f32.mrf.mxu0
      %v651 = vadd.f32 0.0, %v650
      %652 = vdwg.mxu0
      %v653 = vadd.f32 %v627, %v649
      %v654 = vadd.f32 %v628, %v651
      %v655 = vld [vmem:[%s424] sm:$0xf]
      %v656 = vld [vmem:[%s424 + $0x4] sm:$0xf]
      %v657 = vld [vmem:[%s424 + $0x8] sm:$0x1]
      %v661 = vunpack.c.l.b16 %v655
      %v662 = vunpack.c.l.b16 %v656
      %v663 = vunpack.c.l.b16 %v657
      %v664 = vpack.c.b16 %v662, %v661
      %v665 = vpack.c.b16 %v663, %v663
      %v667 = vshrl.u32 %v664, 16
      %v669 = vshll.u32 %v664, 16
      %v671 = vrot.slane %v669, 1
      %v672 = vor.u32 %v667, %v671
      %v674 = vshll.u32 %v665, 16
      %v676 = vrot.slane %v674, 1
      %v677 = vsel %vm230, %v672, %v676
      %v679 = vsel %vm243, %v677, 0
      %681 = vmatpush.bf16.msra.mxu0 0
      %682 = vmatpush.bf16.msra.mxu0 0
      %683 = vmatpush.bf16.msra.mxu0 0
      %684 = vmatpush.bf16.msra.mxu0 0
      %685 = vmatpush.bf16.msra.mxu0 0
      %686 = vmatpush.bf16.msra.mxu0 0
      %687 = vmatpush.bf16.msra.mxu0 0
      %688 = vmatpush.bf16.msra.mxu0 %v374
      %689 = vmatmul.bf16.gmra.mxu0 %v679
      %v690 = vpop.f32.mrf.mxu0
      %v691 = vadd.f32 0.0, %v690
      %v692 = vpop.f32.mrf.mxu0
      %v693 = vadd.f32 0.0, %v692
      %694 = vdwg.mxu0
      %v695 = vadd.f32 %v653, %v691
      %v696 = vadd.f32 %v654, %v693
      %v697 = vld [vmem:[%s424] sm:$0xe]
      %v699 = vunpack.c.l.b16 %v697
      %v700 = vpack.c.b16 %v662, %v699
      %v701 = vrot.slane %v700, 1
      %v702 = vrot.slane %v665, 1
      %v703 = vsel %vm288, %v701, %v702
      %v705 = vsel %vm243, %v703, 0
      %707 = vmatpush.bf16.msra.mxu0 0
      %708 = vmatpush.bf16.msra.mxu0 0
      %709 = vmatpush.bf16.msra.mxu0 0
      %710 = vmatpush.bf16.msra.mxu0 0
      %711 = vmatpush.bf16.msra.mxu0 0
      %712 = vmatpush.bf16.msra.mxu0 0
      %713 = vmatpush.bf16.msra.mxu0 0
      %714 = vmatpush.bf16.msra.mxu0 %v403
      %715 = vmatmul.bf16.gmra.mxu0 %v705
      %v716 = vpop.f32.mrf.mxu0
      %v717 = vadd.f32 0.0, %v716
      %v718 = vpop.f32.mrf.mxu0
      %v719 = vadd.f32 0.0, %v718
      %720 = vdwg.mxu0
      %v721 = vadd.f32 %v695, %v717
      %v722 = vadd.f32 %v696, %v719
      %s723 = sadd.s32 %s197, 3
      %s724 = smul.u32 %s723, 3
      %s725 = smul.addr %s724, 4
      %s726 = scalar_lea.vmem %s184, %s725
      %v727 = vld [vmem:[%s726] sm:$0xf]
      %v728 = vld [vmem:[%s726 + $0x4] sm:$0xf]
      %v731 = vunpack.c.l.b16 %v727
      %v732 = vunpack.c.l.b16 %v728
      %v733 = vpack.c.b16 %v732, %v731
      %v735 = vsel %vm243, %v733, 0
      %737 = vmatpush.bf16.msra.mxu0 0
      %738 = vmatpush.bf16.msra.mxu0 0
      %739 = vmatpush.bf16.msra.mxu0 0
      %740 = vmatpush.bf16.msra.mxu0 0
      %741 = vmatpush.bf16.msra.mxu0 0
      %742 = vmatpush.bf16.msra.mxu0 0
      %743 = vmatpush.bf16.msra.mxu0 0
      %744 = vmatpush.bf16.msra.mxu0 %v436
      %745 = vmatmul.bf16.gmra.mxu0 %v735
      %v746 = vpop.f32.mrf.mxu0
      %v747 = vadd.f32 0.0, %v746
      %v748 = vpop.f32.mrf.mxu0
      %v749 = vadd.f32 0.0, %v748
      %750 = vdwg.mxu0
      %v751 = vadd.f32 %v721, %v747
      %v752 = vadd.f32 %v722, %v749
      %v753 = vld [vmem:[%s726] sm:$0xf]
      %v754 = vld [vmem:[%s726 + $0x4] sm:$0xf]
      %v755 = vld [vmem:[%s726 + $0x8] sm:$0x1]
      %v759 = vunpack.c.l.b16 %v753
      %v760 = vunpack.c.l.b16 %v754
      %v761 = vunpack.c.l.b16 %v755
      %v762 = vpack.c.b16 %v760, %v759
      %v763 = vpack.c.b16 %v761, %v761
      %v765 = vshrl.u32 %v762, 16
      %v767 = vshll.u32 %v762, 16
      %v769 = vrot.slane %v767, 1
      %v770 = vor.u32 %v765, %v769
      %v772 = vshll.u32 %v763, 16
      %v774 = vrot.slane %v772, 1
      %v775 = vsel %vm230, %v770, %v774
      %v777 = vsel %vm243, %v775, 0
      %779 = vmatpush.bf16.msra.mxu0 0
      %780 = vmatpush.bf16.msra.mxu0 0
      %781 = vmatpush.bf16.msra.mxu0 0
      %782 = vmatpush.bf16.msra.mxu0 0
      %783 = vmatpush.bf16.msra.mxu0 0
      %784 = vmatpush.bf16.msra.mxu0 0
      %785 = vmatpush.bf16.msra.mxu0 0
      %786 = vmatpush.bf16.msra.mxu0 %v481
      %787 = vmatmul.bf16.gmra.mxu0 %v777
      %v788 = vpop.f32.mrf.mxu0
      %v789 = vadd.f32 0.0, %v788
      %v790 = vpop.f32.mrf.mxu0
      %v791 = vadd.f32 0.0, %v790
      %792 = vdwg.mxu0
      %v793 = vadd.f32 %v751, %v789
      %v794 = vadd.f32 %v752, %v791
      %v795 = vld [vmem:[%s726] sm:$0xe]
      %v797 = vunpack.c.l.b16 %v795
      %v798 = vpack.c.b16 %v760, %v797
      %v799 = vrot.slane %v798, 1
      %v800 = vrot.slane %v763, 1
      %v801 = vsel %vm288, %v799, %v800
      %v803 = vsel %vm243, %v801, 0
      %805 = vmatpush.bf16.msra.mxu0 0
      %806 = vmatpush.bf16.msra.mxu0 0
      %807 = vmatpush.bf16.msra.mxu0 0
      %808 = vmatpush.bf16.msra.mxu0 0
      %809 = vmatpush.bf16.msra.mxu0 0
      %810 = vmatpush.bf16.msra.mxu0 0
      %811 = vmatpush.bf16.msra.mxu0 0
      %812 = vmatpush.bf16.msra.mxu0 %v510
      %813 = vmatmul.bf16.gmra.mxu0 %v803
      %v814 = vpop.f32.mrf.mxu0
      %v815 = vadd.f32 0.0, %v814
      %v816 = vpop.f32.mrf.mxu0
      %v817 = vadd.f32 0.0, %v816
      %818 = vdwg.mxu0
      %v819 = vadd.f32 %v793, %v815
      %v820 = vadd.f32 %v794, %v817
      %v821 = vadd.f32 %v819, %v529
      %v822 = vadd.f32 %v820, %v529
      %v823 = vsub.f32 0.0, %v821
      %v824 = vsub.f32 0.0, %v822
      %v825 = vmul.f32 %v823, 1.442695
      %v826 = vpow.pop %v825
      %v827 = vmul.f32 %v824, 1.442695
      %v828 = vpow.pop %v827
      %v829 = vadd.f32 %v826, 1.0
      %v830 = vadd.f32 %v828, 1.0
      %v831 = vrcp.pop %v829
      %v832 = vrcp.pop %v830
      %v833 = vmul.f32 %v821, %v831
      %v834 = vmul.f32 %v822, %v832
      %s835 = scalar_lea.vmem %s194, 16
      %836 = vst [vmem:[%s835] sm:$0xff] %v833
      %837 = vst [vmem:[%s835 + $0x8] sm:$0xff] %v834
      %v838 = vld [vmem:[%s424] sm:$0xf]
      %v839 = vld [vmem:[%s424 + $0x4] sm:$0xf]
      %v840 = vld [vmem:[%s424 + $0x8] sm:$0x1]
      %v844 = vunpack.c.l.b16 %v838
      %v845 = vunpack.c.l.b16 %v839
      %v846 = vunpack.c.l.b16 %v840
      %v847 = vpack.c.b16 %v845, %v844
      %v848 = vpack.c.b16 %v846, %v846
      %v850 = vshrl.u32 %v847, 16
      %v852 = vshll.u32 %v847, 16
      %v854 = vrot.slane %v852, 1
      %v855 = vor.u32 %v850, %v854
      %v857 = vshll.u32 %v848, 16
      %v859 = vrot.slane %v857, 1
      %v860 = vsel %vm230, %v855, %v859
      %v862 = vsel %vm243, %v860, 0
      %864 = vmatpush.bf16.msra.mxu0 0
      %865 = vmatpush.bf16.msra.mxu0 0
      %866 = vmatpush.bf16.msra.mxu0 0
      %867 = vmatpush.bf16.msra.mxu0 0
      %868 = vmatpush.bf16.msra.mxu0 0
      %869 = vmatpush.bf16.msra.mxu0 0
      %870 = vmatpush.bf16.msra.mxu0 0
      %871 = vmatpush.bf16.msra.mxu0 %v249
      %872 = vmatmul.bf16.gmra.mxu0 %v862
      %v873 = vpop.f32.mrf.mxu0
      %v874 = vadd.f32 0.0, %v873
      %v875 = vpop.f32.mrf.mxu0
      %v876 = vadd.f32 0.0, %v875
      %877 = vdwg.mxu0
      %v878 = vsel %vm243, %v847, 0
      %880 = vmatpush.bf16.msra.mxu0 0
      %881 = vmatpush.bf16.msra.mxu0 0
      %882 = vmatpush.bf16.msra.mxu0 0
      %883 = vmatpush.bf16.msra.mxu0 0
      %884 = vmatpush.bf16.msra.mxu0 0
      %885 = vmatpush.bf16.msra.mxu0 0
      %886 = vmatpush.bf16.msra.mxu0 0
      %887 = vmatpush.bf16.msra.mxu0 %v268
      %888 = vmatmul.bf16.gmra.mxu0 %v878
      %v889 = vpop.f32.mrf.mxu0
      %v890 = vadd.f32 %v874, %v889
      %v891 = vpop.f32.mrf.mxu0
      %v892 = vadd.f32 %v876, %v891
      %893 = vdwg.mxu0
      %v894 = vld [vmem:[%s424] sm:$0xe]
      %v896 = vunpack.c.l.b16 %v894
      %v897 = vpack.c.b16 %v845, %v896
      %v898 = vrot.slane %v897, 1
      %v899 = vrot.slane %v848, 1
      %v900 = vsel %vm288, %v898, %v899
      %v902 = vsel %vm243, %v900, 0
      %904 = vmatpush.bf16.msra.mxu0 0
      %905 = vmatpush.bf16.msra.mxu0 0
      %906 = vmatpush.bf16.msra.mxu0 0
      %907 = vmatpush.bf16.msra.mxu0 0
      %908 = vmatpush.bf16.msra.mxu0 0
      %909 = vmatpush.bf16.msra.mxu0 0
      %910 = vmatpush.bf16.msra.mxu0 0
      %911 = vmatpush.bf16.msra.mxu0 %v296
      %912 = vmatmul.bf16.gmra.mxu0 %v902
      %v913 = vpop.f32.mrf.mxu0
      %v914 = vadd.f32 0.0, %v913
      %v915 = vpop.f32.mrf.mxu0
      %v916 = vadd.f32 0.0, %v915
      %917 = vdwg.mxu0
      %v918 = vadd.f32 %v890, %v914
      %v919 = vadd.f32 %v892, %v916
      %v920 = vld [vmem:[%s726] sm:$0xf]
      %v921 = vld [vmem:[%s726 + $0x4] sm:$0xf]
      %v924 = vunpack.c.l.b16 %v920
      %v925 = vunpack.c.l.b16 %v921
      %v926 = vpack.c.b16 %v925, %v924
      %v928 = vsel %vm243, %v926, 0
      %930 = vmatpush.bf16.msra.mxu0 0
      %931 = vmatpush.bf16.msra.mxu0 0
      %932 = vmatpush.bf16.msra.mxu0 0
      %933 = vmatpush.bf16.msra.mxu0 0
      %934 = vmatpush.bf16.msra.mxu0 0
      %935 = vmatpush.bf16.msra.mxu0 0
      %936 = vmatpush.bf16.msra.mxu0 0
      %937 = vmatpush.bf16.msra.mxu0 %v329
      %938 = vmatmul.bf16.gmra.mxu0 %v928
      %v939 = vpop.f32.mrf.mxu0
      %v940 = vadd.f32 0.0, %v939
      %v941 = vpop.f32.mrf.mxu0
      %v942 = vadd.f32 0.0, %v941
      %943 = vdwg.mxu0
      %v944 = vadd.f32 %v918, %v940
      %v945 = vadd.f32 %v919, %v942
      %v946 = vld [vmem:[%s726] sm:$0xf]
      %v947 = vld [vmem:[%s726 + $0x4] sm:$0xf]
      %v948 = vld [vmem:[%s726 + $0x8] sm:$0x1]
      %v952 = vunpack.c.l.b16 %v946
      %v953 = vunpack.c.l.b16 %v947
      %v954 = vunpack.c.l.b16 %v948
      %v955 = vpack.c.b16 %v953, %v952
      %v956 = vpack.c.b16 %v954, %v954
      %v958 = vshrl.u32 %v955, 16
      %v960 = vshll.u32 %v955, 16
      %v962 = vrot.slane %v960, 1
      %v963 = vor.u32 %v958, %v962
      %v965 = vshll.u32 %v956, 16
      %v967 = vrot.slane %v965, 1
      %v968 = vsel %vm230, %v963, %v967
      %v970 = vsel %vm243, %v968, 0
      %972 = vmatpush.bf16.msra.mxu0 0
      %973 = vmatpush.bf16.msra.mxu0 0
      %974 = vmatpush.bf16.msra.mxu0 0
      %975 = vmatpush.bf16.msra.mxu0 0
      %976 = vmatpush.bf16.msra.mxu0 0
      %977 = vmatpush.bf16.msra.mxu0 0
      %978 = vmatpush.bf16.msra.mxu0 0
      %979 = vmatpush.bf16.msra.mxu0 %v374
      %980 = vmatmul.bf16.gmra.mxu0 %v970
      %v981 = vpop.f32.mrf.mxu0
      %v982 = vadd.f32 0.0, %v981
      %v983 = vpop.f32.mrf.mxu0
      %v984 = vadd.f32 0.0, %v983
      %985 = vdwg.mxu0
      %v986 = vadd.f32 %v944, %v982
      %v987 = vadd.f32 %v945, %v984
      %v988 = vld [vmem:[%s726] sm:$0xe]
      %v990 = vunpack.c.l.b16 %v988
      %v991 = vpack.c.b16 %v953, %v990
      %v992 = vrot.slane %v991, 1
      %v993 = vrot.slane %v956, 1
      %v994 = vsel %vm288, %v992, %v993
      %v996 = vsel %vm243, %v994, 0
      %998 = vmatpush.bf16.msra.mxu0 0
      %999 = vmatpush.bf16.msra.mxu0 0
      %1000 = vmatpush.bf16.msra.mxu0 0
      %1001 = vmatpush.bf16.msra.mxu0 0
      %1002 = vmatpush.bf16.msra.mxu0 0
      %1003 = vmatpush.bf16.msra.mxu0 0
      %1004 = vmatpush.bf16.msra.mxu0 0
      %1005 = vmatpush.bf16.msra.mxu0 %v403
      %1006 = vmatmul.bf16.gmra.mxu0 %v996
      %v1007 = vpop.f32.mrf.mxu0
      %v1008 = vadd.f32 0.0, %v1007
      %v1009 = vpop.f32.mrf.mxu0
      %v1010 = vadd.f32 0.0, %v1009
      %1011 = vdwg.mxu0
      %v1012 = vadd.f32 %v986, %v1008
      %v1013 = vadd.f32 %v987, %v1010
      %s1014 = sadd.s32 %s197, 4
      %s1015 = smul.u32 %s1014, 3
      %s1016 = smul.addr %s1015, 4
      %s1017 = scalar_lea.vmem %s184, %s1016
      %v1018 = vld [vmem:[%s1017] sm:$0xf]
      %v1019 = vld [vmem:[%s1017 + $0x4] sm:$0xf]
      %v1022 = vunpack.c.l.b16 %v1018
      %v1023 = vunpack.c.l.b16 %v1019
      %v1024 = vpack.c.b16 %v1023, %v1022
      %v1026 = vsel %vm243, %v1024, 0
      %1028 = vmatpush.bf16.msra.mxu0 0
      %1029 = vmatpush.bf16.msra.mxu0 0
      %1030 = vmatpush.bf16.msra.mxu0 0
      %1031 = vmatpush.bf16.msra.mxu0 0
      %1032 = vmatpush.bf16.msra.mxu0 0
      %1033 = vmatpush.bf16.msra.mxu0 0
      %1034 = vmatpush.bf16.msra.mxu0 0
      %1035 = vmatpush.bf16.msra.mxu0 %v436
      %1036 = vmatmul.bf16.gmra.mxu0 %v1026
      %v1037 = vpop.f32.mrf.mxu0
      %v1038 = vadd.f32 0.0, %v1037
      %v1039 = vpop.f32.mrf.mxu0
      %v1040 = vadd.f32 0.0, %v1039
      %1041 = vdwg.mxu0
      %v1042 = vadd.f32 %v1012, %v1038
      %v1043 = vadd.f32 %v1013, %v1040
      %v1044 = vld [vmem:[%s1017] sm:$0xf]
      %v1045 = vld [vmem:[%s1017 + $0x4] sm:$0xf]
      %v1046 = vld [vmem:[%s1017 + $0x8] sm:$0x1]
      %v1050 = vunpack.c.l.b16 %v1044
      %v1051 = vunpack.c.l.b16 %v1045
      %v1052 = vunpack.c.l.b16 %v1046
      %v1053 = vpack.c.b16 %v1051, %v1050
      %v1054 = vpack.c.b16 %v1052, %v1052
      %v1056 = vshrl.u32 %v1053, 16
      %v1058 = vshll.u32 %v1053, 16
      %v1060 = vrot.slane %v1058, 1
      %v1061 = vor.u32 %v1056, %v1060
      %v1063 = vshll.u32 %v1054, 16
      %v1065 = vrot.slane %v1063, 1
      %v1066 = vsel %vm230, %v1061, %v1065
      %v1068 = vsel %vm243, %v1066, 0
      %1070 = vmatpush.bf16.msra.mxu0 0
      %1071 = vmatpush.bf16.msra.mxu0 0
      %1072 = vmatpush.bf16.msra.mxu0 0
      %1073 = vmatpush.bf16.msra.mxu0 0
      %1074 = vmatpush.bf16.msra.mxu0 0
      %1075 = vmatpush.bf16.msra.mxu0 0
      %1076 = vmatpush.bf16.msra.mxu0 0
      %1077 = vmatpush.bf16.msra.mxu0 %v481
      %1078 = vmatmul.bf16.gmra.mxu0 %v1068
      %v1079 = vpop.f32.mrf.mxu0
      %v1080 = vadd.f32 0.0, %v1079
      %v1081 = vpop.f32.mrf.mxu0
      %v1082 = vadd.f32 0.0, %v1081
      %1083 = vdwg.mxu0
      %v1084 = vadd.f32 %v1042, %v1080
      %v1085 = vadd.f32 %v1043, %v1082
      %v1086 = vld [vmem:[%s1017] sm:$0xe]
      %v1088 = vunpack.c.l.b16 %v1086
      %v1089 = vpack.c.b16 %v1051, %v1088
      %v1090 = vrot.slane %v1089, 1
      %v1091 = vrot.slane %v1054, 1
      %v1092 = vsel %vm288, %v1090, %v1091
      %v1094 = vsel %vm243, %v1092, 0
      %1096 = vmatpush.bf16.msra.mxu0 0
      %1097 = vmatpush.bf16.msra.mxu0 0
      %1098 = vmatpush.bf16.msra.mxu0 0
      %1099 = vmatpush.bf16.msra.mxu0 0
      %1100 = vmatpush.bf16.msra.mxu0 0
      %1101 = vmatpush.bf16.msra.mxu0 0
      %1102 = vmatpush.bf16.msra.mxu0 0
      %1103 = vmatpush.bf16.msra.mxu0 %v510
      %1104 = vmatmul.bf16.gmra.mxu0 %v1094
      %v1105 = vpop.f32.mrf.mxu0
      %v1106 = vadd.f32 0.0, %v1105
      %v1107 = vpop.f32.mrf.mxu0
      %v1108 = vadd.f32 0.0, %v1107
      %1109 = vdwg.mxu0
      %v1110 = vadd.f32 %v1084, %v1106
      %v1111 = vadd.f32 %v1085, %v1108
      %v1112 = vadd.f32 %v1110, %v529
      %v1113 = vadd.f32 %v1111, %v529
      %v1114 = vsub.f32 0.0, %v1112
      %v1115 = vsub.f32 0.0, %v1113
      %v1116 = vmul.f32 %v1114, 1.442695
      %v1117 = vpow.pop %v1116
      %v1118 = vmul.f32 %v1115, 1.442695
      %v1119 = vpow.pop %v1118
      %v1120 = vadd.f32 %v1117, 1.0
      %v1121 = vadd.f32 %v1119, 1.0
      %v1122 = vrcp.pop %v1120
      %v1123 = vrcp.pop %v1121
      %v1124 = vmul.f32 %v1112, %v1122
      %v1125 = vmul.f32 %v1113, %v1123
      %s1126 = scalar_lea.vmem %s194, 32
      %1127 = vst [vmem:[%s1126] sm:$0xff] %v1124
      %1128 = vst [vmem:[%s1126 + $0x8] sm:$0xff] %v1125
      %v1129 = vld [vmem:[%s726] sm:$0xf]
      %v1130 = vld [vmem:[%s726 + $0x4] sm:$0xf]
      %v1131 = vld [vmem:[%s726 + $0x8] sm:$0x1]
      %v1135 = vunpack.c.l.b16 %v1129
      %v1136 = vunpack.c.l.b16 %v1130
      %v1137 = vunpack.c.l.b16 %v1131
      %v1138 = vpack.c.b16 %v1136, %v1135
      %v1139 = vpack.c.b16 %v1137, %v1137
      %v1141 = vshrl.u32 %v1138, 16
      %v1143 = vshll.u32 %v1138, 16
      %v1145 = vrot.slane %v1143, 1
      %v1146 = vor.u32 %v1141, %v1145
      %v1148 = vshll.u32 %v1139, 16
      %v1150 = vrot.slane %v1148, 1
      %v1151 = vsel %vm230, %v1146, %v1150
      %v1153 = vsel %vm243, %v1151, 0
      %1155 = vmatpush.bf16.msra.mxu0 0
      %1156 = vmatpush.bf16.msra.mxu0 0
      %1157 = vmatpush.bf16.msra.mxu0 0
      %1158 = vmatpush.bf16.msra.mxu0 0
      %1159 = vmatpush.bf16.msra.mxu0 0
      %1160 = vmatpush.bf16.msra.mxu0 0
      %1161 = vmatpush.bf16.msra.mxu0 0
      %1162 = vmatpush.bf16.msra.mxu0 %v249
      %1163 = vmatmul.bf16.gmra.mxu0 %v1153
      %v1164 = vpop.f32.mrf.mxu0
      %v1165 = vadd.f32 0.0, %v1164
      %v1166 = vpop.f32.mrf.mxu0
      %v1167 = vadd.f32 0.0, %v1166
      %1168 = vdwg.mxu0
      %v1169 = vsel %vm243, %v1138, 0
      %1171 = vmatpush.bf16.msra.mxu0 0
      %1172 = vmatpush.bf16.msra.mxu0 0
      %1173 = vmatpush.bf16.msra.mxu0 0
      %1174 = vmatpush.bf16.msra.mxu0 0
      %1175 = vmatpush.bf16.msra.mxu0 0
      %1176 = vmatpush.bf16.msra.mxu0 0
      %1177 = vmatpush.bf16.msra.mxu0 0
      %1178 = vmatpush.bf16.msra.mxu0 %v268
      %1179 = vmatmul.bf16.gmra.mxu0 %v1169
      %v1180 = vpop.f32.mrf.mxu0
      %v1181 = vadd.f32 %v1165, %v1180
      %v1182 = vpop.f32.mrf.mxu0
      %v1183 = vadd.f32 %v1167, %v1182
      %1184 = vdwg.mxu0
      %v1185 = vld [vmem:[%s726] sm:$0xe]
      %v1187 = vunpack.c.l.b16 %v1185
      %v1188 = vpack.c.b16 %v1136, %v1187
      %v1189 = vrot.slane %v1188, 1
      %v1190 = vrot.slane %v1139, 1
      %v1191 = vsel %vm288, %v1189, %v1190
      %v1193 = vsel %vm243, %v1191, 0
      %1195 = vmatpush.bf16.msra.mxu0 0
      %1196 = vmatpush.bf16.msra.mxu0 0
      %1197 = vmatpush.bf16.msra.mxu0 0
      %1198 = vmatpush.bf16.msra.mxu0 0
      %1199 = vmatpush.bf16.msra.mxu0 0
      %1200 = vmatpush.bf16.msra.mxu0 0
      %1201 = vmatpush.bf16.msra.mxu0 0
      %1202 = vmatpush.bf16.msra.mxu0 %v296
      %1203 = vmatmul.bf16.gmra.mxu0 %v1193
      %v1204 = vpop.f32.mrf.mxu0
      %v1205 = vadd.f32 0.0, %v1204
      %v1206 = vpop.f32.mrf.mxu0
      %v1207 = vadd.f32 0.0, %v1206
      %1208 = vdwg.mxu0
      %v1209 = vadd.f32 %v1181, %v1205
      %v1210 = vadd.f32 %v1183, %v1207
      %v1211 = vld [vmem:[%s1017] sm:$0xf]
      %v1212 = vld [vmem:[%s1017 + $0x4] sm:$0xf]
      %v1215 = vunpack.c.l.b16 %v1211
      %v1216 = vunpack.c.l.b16 %v1212
      %v1217 = vpack.c.b16 %v1216, %v1215
      %v1219 = vsel %vm243, %v1217, 0
      %1221 = vmatpush.bf16.msra.mxu0 0
      %1222 = vmatpush.bf16.msra.mxu0 0
      %1223 = vmatpush.bf16.msra.mxu0 0
      %1224 = vmatpush.bf16.msra.mxu0 0
      %1225 = vmatpush.bf16.msra.mxu0 0
      %1226 = vmatpush.bf16.msra.mxu0 0
      %1227 = vmatpush.bf16.msra.mxu0 0
      %1228 = vmatpush.bf16.msra.mxu0 %v329
      %1229 = vmatmul.bf16.gmra.mxu0 %v1219
      %v1230 = vpop.f32.mrf.mxu0
      %v1231 = vadd.f32 0.0, %v1230
      %v1232 = vpop.f32.mrf.mxu0
      %v1233 = vadd.f32 0.0, %v1232
      %1234 = vdwg.mxu0
      %v1235 = vadd.f32 %v1209, %v1231
      %v1236 = vadd.f32 %v1210, %v1233
      %v1237 = vld [vmem:[%s1017] sm:$0xf]
      %v1238 = vld [vmem:[%s1017 + $0x4] sm:$0xf]
      %v1239 = vld [vmem:[%s1017 + $0x8] sm:$0x1]
      %v1243 = vunpack.c.l.b16 %v1237
      %v1244 = vunpack.c.l.b16 %v1238
      %v1245 = vunpack.c.l.b16 %v1239
      %v1246 = vpack.c.b16 %v1244, %v1243
      %v1247 = vpack.c.b16 %v1245, %v1245
      %v1249 = vshrl.u32 %v1246, 16
      %v1251 = vshll.u32 %v1246, 16
      %v1253 = vrot.slane %v1251, 1
      %v1254 = vor.u32 %v1249, %v1253
      %v1256 = vshll.u32 %v1247, 16
      %v1258 = vrot.slane %v1256, 1
      %v1259 = vsel %vm230, %v1254, %v1258
      %v1261 = vsel %vm243, %v1259, 0
      %1263 = vmatpush.bf16.msra.mxu0 0
      %1264 = vmatpush.bf16.msra.mxu0 0
      %1265 = vmatpush.bf16.msra.mxu0 0
      %1266 = vmatpush.bf16.msra.mxu0 0
      %1267 = vmatpush.bf16.msra.mxu0 0
      %1268 = vmatpush.bf16.msra.mxu0 0
      %1269 = vmatpush.bf16.msra.mxu0 0
      %1270 = vmatpush.bf16.msra.mxu0 %v374
      %1271 = vmatmul.bf16.gmra.mxu0 %v1261
      %v1272 = vpop.f32.mrf.mxu0
      %v1273 = vadd.f32 0.0, %v1272
      %v1274 = vpop.f32.mrf.mxu0
      %v1275 = vadd.f32 0.0, %v1274
      %1276 = vdwg.mxu0
      %v1277 = vadd.f32 %v1235, %v1273
      %v1278 = vadd.f32 %v1236, %v1275
      %v1279 = vld [vmem:[%s1017] sm:$0xe]
      %v1281 = vunpack.c.l.b16 %v1279
      %v1282 = vpack.c.b16 %v1244, %v1281
      %v1283 = vrot.slane %v1282, 1
      %v1284 = vrot.slane %v1247, 1
      %v1285 = vsel %vm288, %v1283, %v1284
      %v1287 = vsel %vm243, %v1285, 0
      %1289 = vmatpush.bf16.msra.mxu0 0
      %1290 = vmatpush.bf16.msra.mxu0 0
      %1291 = vmatpush.bf16.msra.mxu0 0
      %1292 = vmatpush.bf16.msra.mxu0 0
      %1293 = vmatpush.bf16.msra.mxu0 0
      %1294 = vmatpush.bf16.msra.mxu0 0
      %1295 = vmatpush.bf16.msra.mxu0 0
      %1296 = vmatpush.bf16.msra.mxu0 %v403
      %1297 = vmatmul.bf16.gmra.mxu0 %v1287
      %v1298 = vpop.f32.mrf.mxu0
      %v1299 = vadd.f32 0.0, %v1298
      %v1300 = vpop.f32.mrf.mxu0
      %v1301 = vadd.f32 0.0, %v1300
      %1302 = vdwg.mxu0
      %v1303 = vadd.f32 %v1277, %v1299
      %v1304 = vadd.f32 %v1278, %v1301
      %s1305 = sadd.s32 %s197, 5
      %s1306 = smul.u32 %s1305, 3
      %s1307 = smul.addr %s1306, 4
      %s1308 = scalar_lea.vmem %s184, %s1307
      %v1309 = vld [vmem:[%s1308] sm:$0xf]
      %v1310 = vld [vmem:[%s1308 + $0x4] sm:$0xf]
      %v1313 = vunpack.c.l.b16 %v1309
      %v1314 = vunpack.c.l.b16 %v1310
      %v1315 = vpack.c.b16 %v1314, %v1313
      %v1317 = vsel %vm243, %v1315, 0
      %1319 = vmatpush.bf16.msra.mxu0 0
      %1320 = vmatpush.bf16.msra.mxu0 0
      %1321 = vmatpush.bf16.msra.mxu0 0
      %1322 = vmatpush.bf16.msra.mxu0 0
      %1323 = vmatpush.bf16.msra.mxu0 0
      %1324 = vmatpush.bf16.msra.mxu0 0
      %1325 = vmatpush.bf16.msra.mxu0 0
      %1326 = vmatpush.bf16.msra.mxu0 %v436
      %1327 = vmatmul.bf16.gmra.mxu0 %v1317
      %v1328 = vpop.f32.mrf.mxu0
      %v1329 = vadd.f32 0.0, %v1328
      %v1330 = vpop.f32.mrf.mxu0
      %v1331 = vadd.f32 0.0, %v1330
      %1332 = vdwg.mxu0
      %v1333 = vadd.f32 %v1303, %v1329
      %v1334 = vadd.f32 %v1304, %v1331
      %v1335 = vld [vmem:[%s1308] sm:$0xf]
      %v1336 = vld [vmem:[%s1308 + $0x4] sm:$0xf]
      %v1337 = vld [vmem:[%s1308 + $0x8] sm:$0x1]
      %v1341 = vunpack.c.l.b16 %v1335
      %v1342 = vunpack.c.l.b16 %v1336
      %v1343 = vunpack.c.l.b16 %v1337
      %v1344 = vpack.c.b16 %v1342, %v1341
      %v1345 = vpack.c.b16 %v1343, %v1343
      %v1347 = vshrl.u32 %v1344, 16
      %v1349 = vshll.u32 %v1344, 16
      %v1351 = vrot.slane %v1349, 1
      %v1352 = vor.u32 %v1347, %v1351
      %v1354 = vshll.u32 %v1345, 16
      %v1356 = vrot.slane %v1354, 1
      %v1357 = vsel %vm230, %v1352, %v1356
      %v1359 = vsel %vm243, %v1357, 0
      %1361 = vmatpush.bf16.msra.mxu0 0
      %1362 = vmatpush.bf16.msra.mxu0 0
      %1363 = vmatpush.bf16.msra.mxu0 0
      %1364 = vmatpush.bf16.msra.mxu0 0
      %1365 = vmatpush.bf16.msra.mxu0 0
      %1366 = vmatpush.bf16.msra.mxu0 0
      %1367 = vmatpush.bf16.msra.mxu0 0
      %1368 = vmatpush.bf16.msra.mxu0 %v481
      %1369 = vmatmul.bf16.gmra.mxu0 %v1359
      %v1370 = vpop.f32.mrf.mxu0
      %v1371 = vadd.f32 0.0, %v1370
      %v1372 = vpop.f32.mrf.mxu0
      %v1373 = vadd.f32 0.0, %v1372
      %1374 = vdwg.mxu0
      %v1375 = vadd.f32 %v1333, %v1371
      %v1376 = vadd.f32 %v1334, %v1373
      %v1377 = vld [vmem:[%s1308] sm:$0xe]
      %v1379 = vunpack.c.l.b16 %v1377
      %v1380 = vpack.c.b16 %v1342, %v1379
      %v1381 = vrot.slane %v1380, 1
      %v1382 = vrot.slane %v1345, 1
      %v1383 = vsel %vm288, %v1381, %v1382
      %v1385 = vsel %vm243, %v1383, 0
      %1387 = vmatpush.bf16.msra.mxu0 0
      %1388 = vmatpush.bf16.msra.mxu0 0
      %1389 = vmatpush.bf16.msra.mxu0 0
      %1390 = vmatpush.bf16.msra.mxu0 0
      %1391 = vmatpush.bf16.msra.mxu0 0
      %1392 = vmatpush.bf16.msra.mxu0 0
      %1393 = vmatpush.bf16.msra.mxu0 0
      %1394 = vmatpush.bf16.msra.mxu0 %v510
      %1395 = vmatmul.bf16.gmra.mxu0 %v1385
      %v1396 = vpop.f32.mrf.mxu0
      %v1397 = vadd.f32 0.0, %v1396
      %v1398 = vpop.f32.mrf.mxu0
      %v1399 = vadd.f32 0.0, %v1398
      %1400 = vdwg.mxu0
      %v1401 = vadd.f32 %v1375, %v1397
      %v1402 = vadd.f32 %v1376, %v1399
      %v1403 = vadd.f32 %v1401, %v529
      %v1404 = vadd.f32 %v1402, %v529
      %v1405 = vsub.f32 0.0, %v1403
      %v1406 = vsub.f32 0.0, %v1404
      %v1407 = vmul.f32 %v1405, 1.442695
      %v1408 = vpow.pop %v1407
      %v1409 = vmul.f32 %v1406, 1.442695
      %v1410 = vpow.pop %v1409
      %v1411 = vadd.f32 %v1408, 1.0
      %v1412 = vadd.f32 %v1410, 1.0
      %v1413 = vrcp.pop %v1411
      %v1414 = vrcp.pop %v1412
      %v1415 = vmul.f32 %v1403, %v1413
      %v1416 = vmul.f32 %v1404, %v1414
      %s1417 = scalar_lea.vmem %s194, 48
      %1418 = vst [vmem:[%s1417] sm:$0xff] %v1415
      %1419 = vst [vmem:[%s1417 + $0x8] sm:$0xff] %v1416
      %v1420 = vld [vmem:[%s1017] sm:$0xf]
      %v1421 = vld [vmem:[%s1017 + $0x4] sm:$0xf]
      %v1422 = vld [vmem:[%s1017 + $0x8] sm:$0x1]
      %v1426 = vunpack.c.l.b16 %v1420
      %v1427 = vunpack.c.l.b16 %v1421
      %v1428 = vunpack.c.l.b16 %v1422
      %v1429 = vpack.c.b16 %v1427, %v1426
      %v1430 = vpack.c.b16 %v1428, %v1428
      %v1432 = vshrl.u32 %v1429, 16
      %v1434 = vshll.u32 %v1429, 16
      %v1436 = vrot.slane %v1434, 1
      %v1437 = vor.u32 %v1432, %v1436
      %v1439 = vshll.u32 %v1430, 16
      %v1441 = vrot.slane %v1439, 1
      %v1442 = vsel %vm230, %v1437, %v1441
      %v1444 = vsel %vm243, %v1442, 0
      %1446 = vmatpush.bf16.msra.mxu0 0
      %1447 = vmatpush.bf16.msra.mxu0 0
      %1448 = vmatpush.bf16.msra.mxu0 0
      %1449 = vmatpush.bf16.msra.mxu0 0
      %1450 = vmatpush.bf16.msra.mxu0 0
      %1451 = vmatpush.bf16.msra.mxu0 0
      %1452 = vmatpush.bf16.msra.mxu0 0
      %1453 = vmatpush.bf16.msra.mxu0 %v249
      %1454 = vmatmul.bf16.gmra.mxu0 %v1444
      %v1455 = vpop.f32.mrf.mxu0
      %v1456 = vadd.f32 0.0, %v1455
      %v1457 = vpop.f32.mrf.mxu0
      %v1458 = vadd.f32 0.0, %v1457
      %1459 = vdwg.mxu0
      %v1460 = vsel %vm243, %v1429, 0
      %1462 = vmatpush.bf16.msra.mxu0 0
      %1463 = vmatpush.bf16.msra.mxu0 0
      %1464 = vmatpush.bf16.msra.mxu0 0
      %1465 = vmatpush.bf16.msra.mxu0 0
      %1466 = vmatpush.bf16.msra.mxu0 0
      %1467 = vmatpush.bf16.msra.mxu0 0
      %1468 = vmatpush.bf16.msra.mxu0 0
      %1469 = vmatpush.bf16.msra.mxu0 %v268
      %1470 = vmatmul.bf16.gmra.mxu0 %v1460
      %v1471 = vpop.f32.mrf.mxu0
      %v1472 = vadd.f32 %v1456, %v1471
      %v1473 = vpop.f32.mrf.mxu0
      %v1474 = vadd.f32 %v1458, %v1473
      %1475 = vdwg.mxu0
      %v1476 = vld [vmem:[%s1017] sm:$0xe]
      %v1478 = vunpack.c.l.b16 %v1476
      %v1479 = vpack.c.b16 %v1427, %v1478
      %v1480 = vrot.slane %v1479, 1
      %v1481 = vrot.slane %v1430, 1
      %v1482 = vsel %vm288, %v1480, %v1481
      %v1484 = vsel %vm243, %v1482, 0
      %1486 = vmatpush.bf16.msra.mxu0 0
      %1487 = vmatpush.bf16.msra.mxu0 0
      %1488 = vmatpush.bf16.msra.mxu0 0
      %1489 = vmatpush.bf16.msra.mxu0 0
      %1490 = vmatpush.bf16.msra.mxu0 0
      %1491 = vmatpush.bf16.msra.mxu0 0
      %1492 = vmatpush.bf16.msra.mxu0 0
      %1493 = vmatpush.bf16.msra.mxu0 %v296
      %1494 = vmatmul.bf16.gmra.mxu0 %v1484
      %v1495 = vpop.f32.mrf.mxu0
      %v1496 = vadd.f32 0.0, %v1495
      %v1497 = vpop.f32.mrf.mxu0
      %v1498 = vadd.f32 0.0, %v1497
      %1499 = vdwg.mxu0
      %v1500 = vadd.f32 %v1472, %v1496
      %v1501 = vadd.f32 %v1474, %v1498
      %v1502 = vld [vmem:[%s1308] sm:$0xf]
      %v1503 = vld [vmem:[%s1308 + $0x4] sm:$0xf]
      %v1506 = vunpack.c.l.b16 %v1502
      %v1507 = vunpack.c.l.b16 %v1503
      %v1508 = vpack.c.b16 %v1507, %v1506
      %v1510 = vsel %vm243, %v1508, 0
      %1512 = vmatpush.bf16.msra.mxu0 0
      %1513 = vmatpush.bf16.msra.mxu0 0
      %1514 = vmatpush.bf16.msra.mxu0 0
      %1515 = vmatpush.bf16.msra.mxu0 0
      %1516 = vmatpush.bf16.msra.mxu0 0
      %1517 = vmatpush.bf16.msra.mxu0 0
      %1518 = vmatpush.bf16.msra.mxu0 0
      %1519 = vmatpush.bf16.msra.mxu0 %v329
      %1520 = vmatmul.bf16.gmra.mxu0 %v1510
      %v1521 = vpop.f32.mrf.mxu0
      %v1522 = vadd.f32 0.0, %v1521
      %v1523 = vpop.f32.mrf.mxu0
      %v1524 = vadd.f32 0.0, %v1523
      %1525 = vdwg.mxu0
      %v1526 = vadd.f32 %v1500, %v1522
      %v1527 = vadd.f32 %v1501, %v1524
      %v1528 = vld [vmem:[%s1308] sm:$0xf]
      %v1529 = vld [vmem:[%s1308 + $0x4] sm:$0xf]
      %v1530 = vld [vmem:[%s1308 + $0x8] sm:$0x1]
      %v1534 = vunpack.c.l.b16 %v1528
      %v1535 = vunpack.c.l.b16 %v1529
      %v1536 = vunpack.c.l.b16 %v1530
      %v1537 = vpack.c.b16 %v1535, %v1534
      %v1538 = vpack.c.b16 %v1536, %v1536
      %v1540 = vshrl.u32 %v1537, 16
      %v1542 = vshll.u32 %v1537, 16
      %v1544 = vrot.slane %v1542, 1
      %v1545 = vor.u32 %v1540, %v1544
      %v1547 = vshll.u32 %v1538, 16
      %v1549 = vrot.slane %v1547, 1
      %v1550 = vsel %vm230, %v1545, %v1549
      %v1552 = vsel %vm243, %v1550, 0
      %1554 = vmatpush.bf16.msra.mxu0 0
      %1555 = vmatpush.bf16.msra.mxu0 0
      %1556 = vmatpush.bf16.msra.mxu0 0
      %1557 = vmatpush.bf16.msra.mxu0 0
      %1558 = vmatpush.bf16.msra.mxu0 0
      %1559 = vmatpush.bf16.msra.mxu0 0
      %1560 = vmatpush.bf16.msra.mxu0 0
      %1561 = vmatpush.bf16.msra.mxu0 %v374
      %1562 = vmatmul.bf16.gmra.mxu0 %v1552
      %v1563 = vpop.f32.mrf.mxu0
      %v1564 = vadd.f32 0.0, %v1563
      %v1565 = vpop.f32.mrf.mxu0
      %v1566 = vadd.f32 0.0, %v1565
      %1567 = vdwg.mxu0
      %v1568 = vadd.f32 %v1526, %v1564
      %v1569 = vadd.f32 %v1527, %v1566
      %v1570 = vld [vmem:[%s1308] sm:$0xe]
      %v1572 = vunpack.c.l.b16 %v1570
      %v1573 = vpack.c.b16 %v1535, %v1572
      %v1574 = vrot.slane %v1573, 1
      %v1575 = vrot.slane %v1538, 1
      %v1576 = vsel %vm288, %v1574, %v1575
      %v1578 = vsel %vm243, %v1576, 0
      %1580 = vmatpush.bf16.msra.mxu0 0
      %1581 = vmatpush.bf16.msra.mxu0 0
      %1582 = vmatpush.bf16.msra.mxu0 0
      %1583 = vmatpush.bf16.msra.mxu0 0
      %1584 = vmatpush.bf16.msra.mxu0 0
      %1585 = vmatpush.bf16.msra.mxu0 0
      %1586 = vmatpush.bf16.msra.mxu0 0
      %1587 = vmatpush.bf16.msra.mxu0 %v403
      %1588 = vmatmul.bf16.gmra.mxu0 %v1578
      %v1589 = vpop.f32.mrf.mxu0
      %v1590 = vadd.f32 0.0, %v1589
      %v1591 = vpop.f32.mrf.mxu0
      %v1592 = vadd.f32 0.0, %v1591
      %1593 = vdwg.mxu0
      %v1594 = vadd.f32 %v1568, %v1590
      %v1595 = vadd.f32 %v1569, %v1592
      %s1596 = sadd.s32 %s197, 6
      %s1597 = smul.u32 %s1596, 3
      %s1598 = smul.addr %s1597, 4
      %s1599 = scalar_lea.vmem %s184, %s1598
      %v1600 = vld [vmem:[%s1599] sm:$0xf]
      %v1601 = vld [vmem:[%s1599 + $0x4] sm:$0xf]
      %v1604 = vunpack.c.l.b16 %v1600
      %v1605 = vunpack.c.l.b16 %v1601
      %v1606 = vpack.c.b16 %v1605, %v1604
      %v1608 = vsel %vm243, %v1606, 0
      %1610 = vmatpush.bf16.msra.mxu0 0
      %1611 = vmatpush.bf16.msra.mxu0 0
      %1612 = vmatpush.bf16.msra.mxu0 0
      %1613 = vmatpush.bf16.msra.mxu0 0
      %1614 = vmatpush.bf16.msra.mxu0 0
      %1615 = vmatpush.bf16.msra.mxu0 0
      %1616 = vmatpush.bf16.msra.mxu0 0
      %1617 = vmatpush.bf16.msra.mxu0 %v436
      %1618 = vmatmul.bf16.gmra.mxu0 %v1608
      %v1619 = vpop.f32.mrf.mxu0
      %v1620 = vadd.f32 0.0, %v1619
      %v1621 = vpop.f32.mrf.mxu0
      %v1622 = vadd.f32 0.0, %v1621
      %1623 = vdwg.mxu0
      %v1624 = vadd.f32 %v1594, %v1620
      %v1625 = vadd.f32 %v1595, %v1622
      %v1626 = vld [vmem:[%s1599] sm:$0xf]
      %v1627 = vld [vmem:[%s1599 + $0x4] sm:$0xf]
      %v1628 = vld [vmem:[%s1599 + $0x8] sm:$0x1]
      %v1632 = vunpack.c.l.b16 %v1626
      %v1633 = vunpack.c.l.b16 %v1627
      %v1634 = vunpack.c.l.b16 %v1628
      %v1635 = vpack.c.b16 %v1633, %v1632
      %v1636 = vpack.c.b16 %v1634, %v1634
      %v1638 = vshrl.u32 %v1635, 16
      %v1640 = vshll.u32 %v1635, 16
      %v1642 = vrot.slane %v1640, 1
      %v1643 = vor.u32 %v1638, %v1642
      %v1645 = vshll.u32 %v1636, 16
      %v1647 = vrot.slane %v1645, 1
      %v1648 = vsel %vm230, %v1643, %v1647
      %v1650 = vsel %vm243, %v1648, 0
      %1652 = vmatpush.bf16.msra.mxu0 0
      %1653 = vmatpush.bf16.msra.mxu0 0
      %1654 = vmatpush.bf16.msra.mxu0 0
      %1655 = vmatpush.bf16.msra.mxu0 0
      %1656 = vmatpush.bf16.msra.mxu0 0
      %1657 = vmatpush.bf16.msra.mxu0 0
      %1658 = vmatpush.bf16.msra.mxu0 0
      %1659 = vmatpush.bf16.msra.mxu0 %v481
      %1660 = vmatmul.bf16.gmra.mxu0 %v1650
      %v1661 = vpop.f32.mrf.mxu0
      %v1662 = vadd.f32 0.0, %v1661
      %v1663 = vpop.f32.mrf.mxu0
      %v1664 = vadd.f32 0.0, %v1663
      %1665 = vdwg.mxu0
      %v1666 = vadd.f32 %v1624, %v1662
      %v1667 = vadd.f32 %v1625, %v1664
      %v1668 = vld [vmem:[%s1599] sm:$0xe]
      %v1670 = vunpack.c.l.b16 %v1668
      %v1671 = vpack.c.b16 %v1633, %v1670
      %v1672 = vrot.slane %v1671, 1
      %v1673 = vrot.slane %v1636, 1
      %v1674 = vsel %vm288, %v1672, %v1673
      %v1676 = vsel %vm243, %v1674, 0
      %1678 = vmatpush.bf16.msra.mxu0 0
      %1679 = vmatpush.bf16.msra.mxu0 0
      %1680 = vmatpush.bf16.msra.mxu0 0
      %1681 = vmatpush.bf16.msra.mxu0 0
      %1682 = vmatpush.bf16.msra.mxu0 0
      %1683 = vmatpush.bf16.msra.mxu0 0
      %1684 = vmatpush.bf16.msra.mxu0 0
      %1685 = vmatpush.bf16.msra.mxu0 %v510
      %1686 = vmatmul.bf16.gmra.mxu0 %v1676
      %v1687 = vpop.f32.mrf.mxu0
      %v1688 = vadd.f32 0.0, %v1687
      %v1689 = vpop.f32.mrf.mxu0
      %v1690 = vadd.f32 0.0, %v1689
      %1691 = vdwg.mxu0
      %v1692 = vadd.f32 %v1666, %v1688
      %v1693 = vadd.f32 %v1667, %v1690
      %v1694 = vadd.f32 %v1692, %v529
      %v1695 = vadd.f32 %v1693, %v529
      %v1696 = vsub.f32 0.0, %v1694
      %v1697 = vsub.f32 0.0, %v1695
      %v1698 = vmul.f32 %v1696, 1.442695
      %v1699 = vpow.pop %v1698
      %v1700 = vmul.f32 %v1697, 1.442695
      %v1701 = vpow.pop %v1700
      %v1702 = vadd.f32 %v1699, 1.0
      %v1703 = vadd.f32 %v1701, 1.0
      %v1704 = vrcp.pop %v1702
      %v1705 = vrcp.pop %v1703
      %v1706 = vmul.f32 %v1694, %v1704
      %v1707 = vmul.f32 %v1695, %v1705
      %s1708 = scalar_lea.vmem %s194, 64
      %1709 = vst [vmem:[%s1708] sm:$0xff] %v1706
      %1710 = vst [vmem:[%s1708 + $0x8] sm:$0xff] %v1707
      %v1711 = vld [vmem:[%s1308] sm:$0xf]
      %v1712 = vld [vmem:[%s1308 + $0x4] sm:$0xf]
      %v1713 = vld [vmem:[%s1308 + $0x8] sm:$0x1]
      %v1717 = vunpack.c.l.b16 %v1711
      %v1718 = vunpack.c.l.b16 %v1712
      %v1719 = vunpack.c.l.b16 %v1713
      %v1720 = vpack.c.b16 %v1718, %v1717
      %v1721 = vpack.c.b16 %v1719, %v1719
      %v1723 = vshrl.u32 %v1720, 16
      %v1725 = vshll.u32 %v1720, 16
      %v1727 = vrot.slane %v1725, 1
      %v1728 = vor.u32 %v1723, %v1727
      %v1730 = vshll.u32 %v1721, 16
      %v1732 = vrot.slane %v1730, 1
      %v1733 = vsel %vm230, %v1728, %v1732
      %v1735 = vsel %vm243, %v1733, 0
      %1737 = vmatpush.bf16.msra.mxu0 0
      %1738 = vmatpush.bf16.msra.mxu0 0
      %1739 = vmatpush.bf16.msra.mxu0 0
      %1740 = vmatpush.bf16.msra.mxu0 0
      %1741 = vmatpush.bf16.msra.mxu0 0
      %1742 = vmatpush.bf16.msra.mxu0 0
      %1743 = vmatpush.bf16.msra.mxu0 0
      %1744 = vmatpush.bf16.msra.mxu0 %v249
      %1745 = vmatmul.bf16.gmra.mxu0 %v1735
      %v1746 = vpop.f32.mrf.mxu0
      %v1747 = vadd.f32 0.0, %v1746
      %v1748 = vpop.f32.mrf.mxu0
      %v1749 = vadd.f32 0.0, %v1748
      %1750 = vdwg.mxu0
      %v1751 = vsel %vm243, %v1720, 0
      %1753 = vmatpush.bf16.msra.mxu0 0
      %1754 = vmatpush.bf16.msra.mxu0 0
      %1755 = vmatpush.bf16.msra.mxu0 0
      %1756 = vmatpush.bf16.msra.mxu0 0
      %1757 = vmatpush.bf16.msra.mxu0 0
      %1758 = vmatpush.bf16.msra.mxu0 0
      %1759 = vmatpush.bf16.msra.mxu0 0
      %1760 = vmatpush.bf16.msra.mxu0 %v268
      %1761 = vmatmul.bf16.gmra.mxu0 %v1751
      %v1762 = vpop.f32.mrf.mxu0
      %v1763 = vadd.f32 %v1747, %v1762
      %v1764 = vpop.f32.mrf.mxu0
      %v1765 = vadd.f32 %v1749, %v1764
      %1766 = vdwg.mxu0
      %v1767 = vld [vmem:[%s1308] sm:$0xe]
      %v1769 = vunpack.c.l.b16 %v1767
      %v1770 = vpack.c.b16 %v1718, %v1769
      %v1771 = vrot.slane %v1770, 1
      %v1772 = vrot.slane %v1721, 1
      %v1773 = vsel %vm288, %v1771, %v1772
      %v1775 = vsel %vm243, %v1773, 0
      %1777 = vmatpush.bf16.msra.mxu0 0
      %1778 = vmatpush.bf16.msra.mxu0 0
      %1779 = vmatpush.bf16.msra.mxu0 0
      %1780 = vmatpush.bf16.msra.mxu0 0
      %1781 = vmatpush.bf16.msra.mxu0 0
      %1782 = vmatpush.bf16.msra.mxu0 0
      %1783 = vmatpush.bf16.msra.mxu0 0
      %1784 = vmatpush.bf16.msra.mxu0 %v296
      %1785 = vmatmul.bf16.gmra.mxu0 %v1775
      %v1786 = vpop.f32.mrf.mxu0
      %v1787 = vadd.f32 0.0, %v1786
      %v1788 = vpop.f32.mrf.mxu0
      %v1789 = vadd.f32 0.0, %v1788
      %1790 = vdwg.mxu0
      %v1791 = vadd.f32 %v1763, %v1787
      %v1792 = vadd.f32 %v1765, %v1789
      %v1793 = vld [vmem:[%s1599] sm:$0xf]
      %v1794 = vld [vmem:[%s1599 + $0x4] sm:$0xf]
      %v1797 = vunpack.c.l.b16 %v1793
      %v1798 = vunpack.c.l.b16 %v1794
      %v1799 = vpack.c.b16 %v1798, %v1797
      %v1801 = vsel %vm243, %v1799, 0
      %1803 = vmatpush.bf16.msra.mxu0 0
      %1804 = vmatpush.bf16.msra.mxu0 0
      %1805 = vmatpush.bf16.msra.mxu0 0
      %1806 = vmatpush.bf16.msra.mxu0 0
      %1807 = vmatpush.bf16.msra.mxu0 0
      %1808 = vmatpush.bf16.msra.mxu0 0
      %1809 = vmatpush.bf16.msra.mxu0 0
      %1810 = vmatpush.bf16.msra.mxu0 %v329
      %1811 = vmatmul.bf16.gmra.mxu0 %v1801
      %v1812 = vpop.f32.mrf.mxu0
      %v1813 = vadd.f32 0.0, %v1812
      %v1814 = vpop.f32.mrf.mxu0
      %v1815 = vadd.f32 0.0, %v1814
      %1816 = vdwg.mxu0
      %v1817 = vadd.f32 %v1791, %v1813
      %v1818 = vadd.f32 %v1792, %v1815
      %v1819 = vld [vmem:[%s1599] sm:$0xf]
      %v1820 = vld [vmem:[%s1599 + $0x4] sm:$0xf]
      %v1821 = vld [vmem:[%s1599 + $0x8] sm:$0x1]
      %v1825 = vunpack.c.l.b16 %v1819
      %v1826 = vunpack.c.l.b16 %v1820
      %v1827 = vunpack.c.l.b16 %v1821
      %v1828 = vpack.c.b16 %v1826, %v1825
      %v1829 = vpack.c.b16 %v1827, %v1827
      %v1831 = vshrl.u32 %v1828, 16
      %v1833 = vshll.u32 %v1828, 16
      %v1835 = vrot.slane %v1833, 1
      %v1836 = vor.u32 %v1831, %v1835
      %v1838 = vshll.u32 %v1829, 16
      %v1840 = vrot.slane %v1838, 1
      %v1841 = vsel %vm230, %v1836, %v1840
      %v1843 = vsel %vm243, %v1841, 0
      %1845 = vmatpush.bf16.msra.mxu0 0
      %1846 = vmatpush.bf16.msra.mxu0 0
      %1847 = vmatpush.bf16.msra.mxu0 0
      %1848 = vmatpush.bf16.msra.mxu0 0
      %1849 = vmatpush.bf16.msra.mxu0 0
      %1850 = vmatpush.bf16.msra.mxu0 0
      %1851 = vmatpush.bf16.msra.mxu0 0
      %1852 = vmatpush.bf16.msra.mxu0 %v374
      %1853 = vmatmul.bf16.gmra.mxu0 %v1843
      %v1854 = vpop.f32.mrf.mxu0
      %v1855 = vadd.f32 0.0, %v1854
      %v1856 = vpop.f32.mrf.mxu0
      %v1857 = vadd.f32 0.0, %v1856
      %1858 = vdwg.mxu0
      %v1859 = vadd.f32 %v1817, %v1855
      %v1860 = vadd.f32 %v1818, %v1857
      %v1861 = vld [vmem:[%s1599] sm:$0xe]
      %v1863 = vunpack.c.l.b16 %v1861
      %v1864 = vpack.c.b16 %v1826, %v1863
      %v1865 = vrot.slane %v1864, 1
      %v1866 = vrot.slane %v1829, 1
      %v1867 = vsel %vm288, %v1865, %v1866
      %v1869 = vsel %vm243, %v1867, 0
      %1871 = vmatpush.bf16.msra.mxu0 0
      %1872 = vmatpush.bf16.msra.mxu0 0
      %1873 = vmatpush.bf16.msra.mxu0 0
      %1874 = vmatpush.bf16.msra.mxu0 0
      %1875 = vmatpush.bf16.msra.mxu0 0
      %1876 = vmatpush.bf16.msra.mxu0 0
      %1877 = vmatpush.bf16.msra.mxu0 0
      %1878 = vmatpush.bf16.msra.mxu0 %v403
      %1879 = vmatmul.bf16.gmra.mxu0 %v1869
      %v1880 = vpop.f32.mrf.mxu0
      %v1881 = vadd.f32 0.0, %v1880
      %v1882 = vpop.f32.mrf.mxu0
      %v1883 = vadd.f32 0.0, %v1882
      %1884 = vdwg.mxu0
      %v1885 = vadd.f32 %v1859, %v1881
      %v1886 = vadd.f32 %v1860, %v1883
      %s1887 = sadd.s32 %s197, 7
      %s1888 = smul.u32 %s1887, 3
      %s1889 = smul.addr %s1888, 4
      %s1890 = scalar_lea.vmem %s184, %s1889
      %v1891 = vld [vmem:[%s1890] sm:$0xf]
      %v1892 = vld [vmem:[%s1890 + $0x4] sm:$0xf]
      %v1895 = vunpack.c.l.b16 %v1891
      %v1896 = vunpack.c.l.b16 %v1892
      %v1897 = vpack.c.b16 %v1896, %v1895
      %v1899 = vsel %vm243, %v1897, 0
      %1901 = vmatpush.bf16.msra.mxu0 0
      %1902 = vmatpush.bf16.msra.mxu0 0
      %1903 = vmatpush.bf16.msra.mxu0 0
      %1904 = vmatpush.bf16.msra.mxu0 0
      %1905 = vmatpush.bf16.msra.mxu0 0
      %1906 = vmatpush.bf16.msra.mxu0 0
      %1907 = vmatpush.bf16.msra.mxu0 0
      %1908 = vmatpush.bf16.msra.mxu0 %v436
      %1909 = vmatmul.bf16.gmra.mxu0 %v1899
      %v1910 = vpop.f32.mrf.mxu0
      %v1911 = vadd.f32 0.0, %v1910
      %v1912 = vpop.f32.mrf.mxu0
      %v1913 = vadd.f32 0.0, %v1912
      %1914 = vdwg.mxu0
      %v1915 = vadd.f32 %v1885, %v1911
      %v1916 = vadd.f32 %v1886, %v1913
      %v1917 = vld [vmem:[%s1890] sm:$0xf]
      %v1918 = vld [vmem:[%s1890 + $0x4] sm:$0xf]
      %v1919 = vld [vmem:[%s1890 + $0x8] sm:$0x1]
      %v1923 = vunpack.c.l.b16 %v1917
      %v1924 = vunpack.c.l.b16 %v1918
      %v1925 = vunpack.c.l.b16 %v1919
      %v1926 = vpack.c.b16 %v1924, %v1923
      %v1927 = vpack.c.b16 %v1925, %v1925
      %v1929 = vshrl.u32 %v1926, 16
      %v1931 = vshll.u32 %v1926, 16
      %v1933 = vrot.slane %v1931, 1
      %v1934 = vor.u32 %v1929, %v1933
      %v1936 = vshll.u32 %v1927, 16
      %v1938 = vrot.slane %v1936, 1
      %v1939 = vsel %vm230, %v1934, %v1938
      %v1941 = vsel %vm243, %v1939, 0
      %1943 = vmatpush.bf16.msra.mxu0 0
      %1944 = vmatpush.bf16.msra.mxu0 0
      %1945 = vmatpush.bf16.msra.mxu0 0
      %1946 = vmatpush.bf16.msra.mxu0 0
      %1947 = vmatpush.bf16.msra.mxu0 0
      %1948 = vmatpush.bf16.msra.mxu0 0
      %1949 = vmatpush.bf16.msra.mxu0 0
      %1950 = vmatpush.bf16.msra.mxu0 %v481
      %1951 = vmatmul.bf16.gmra.mxu0 %v1941
      %v1952 = vpop.f32.mrf.mxu0
      %v1953 = vadd.f32 0.0, %v1952
      %v1954 = vpop.f32.mrf.mxu0
      %v1955 = vadd.f32 0.0, %v1954
      %1956 = vdwg.mxu0
      %v1957 = vadd.f32 %v1915, %v1953
      %v1958 = vadd.f32 %v1916, %v1955
      %v1959 = vld [vmem:[%s1890] sm:$0xe]
      %v1961 = vunpack.c.l.b16 %v1959
      %v1962 = vpack.c.b16 %v1924, %v1961
      %v1963 = vrot.slane %v1962, 1
      %v1964 = vrot.slane %v1927, 1
      %v1965 = vsel %vm288, %v1963, %v1964
      %v1967 = vsel %vm243, %v1965, 0
      %1969 = vmatpush.bf16.msra.mxu0 0
      %1970 = vmatpush.bf16.msra.mxu0 0
      %1971 = vmatpush.bf16.msra.mxu0 0
      %1972 = vmatpush.bf16.msra.mxu0 0
      %1973 = vmatpush.bf16.msra.mxu0 0
      %1974 = vmatpush.bf16.msra.mxu0 0
      %1975 = vmatpush.bf16.msra.mxu0 0
      %1976 = vmatpush.bf16.msra.mxu0 %v510
      %1977 = vmatmul.bf16.gmra.mxu0 %v1967
      %v1978 = vpop.f32.mrf.mxu0
      %v1979 = vadd.f32 0.0, %v1978
      %v1980 = vpop.f32.mrf.mxu0
      %v1981 = vadd.f32 0.0, %v1980
      %1982 = vdwg.mxu0
      %v1983 = vadd.f32 %v1957, %v1979
      %v1984 = vadd.f32 %v1958, %v1981
      %v1985 = vadd.f32 %v1983, %v529
      %v1986 = vadd.f32 %v1984, %v529
      %v1987 = vsub.f32 0.0, %v1985
      %v1988 = vsub.f32 0.0, %v1986
      %v1989 = vmul.f32 %v1987, 1.442695
      %v1990 = vpow.pop %v1989
      %v1991 = vmul.f32 %v1988, 1.442695
      %v1992 = vpow.pop %v1991
      %v1993 = vadd.f32 %v1990, 1.0
      %v1994 = vadd.f32 %v1992, 1.0
      %v1995 = vrcp.pop %v1993
      %v1996 = vrcp.pop %v1994
      %v1997 = vmul.f32 %v1985, %v1995
      %v1998 = vmul.f32 %v1986, %v1996
      %s1999 = scalar_lea.vmem %s194, 80
      %2000 = vst [vmem:[%s1999] sm:$0xff] %v1997
      %2001 = vst [vmem:[%s1999 + $0x8] sm:$0xff] %v1998
      %v2002 = vld [vmem:[%s1599] sm:$0xf]
      %v2003 = vld [vmem:[%s1599 + $0x4] sm:$0xf]
      %v2004 = vld [vmem:[%s1599 + $0x8] sm:$0x1]
      %v2008 = vunpack.c.l.b16 %v2002
      %v2009 = vunpack.c.l.b16 %v2003
      %v2010 = vunpack.c.l.b16 %v2004
      %v2011 = vpack.c.b16 %v2009, %v2008
      %v2012 = vpack.c.b16 %v2010, %v2010
      %v2014 = vshrl.u32 %v2011, 16
      %v2016 = vshll.u32 %v2011, 16
      %v2018 = vrot.slane %v2016, 1
      %v2019 = vor.u32 %v2014, %v2018
      %v2021 = vshll.u32 %v2012, 16
      %v2023 = vrot.slane %v2021, 1
      %v2024 = vsel %vm230, %v2019, %v2023
      %v2026 = vsel %vm243, %v2024, 0
      %2028 = vmatpush.bf16.msra.mxu0 0
      %2029 = vmatpush.bf16.msra.mxu0 0
      %2030 = vmatpush.bf16.msra.mxu0 0
      %2031 = vmatpush.bf16.msra.mxu0 0
      %2032 = vmatpush.bf16.msra.mxu0 0
      %2033 = vmatpush.bf16.msra.mxu0 0
      %2034 = vmatpush.bf16.msra.mxu0 0
      %2035 = vmatpush.bf16.msra.mxu0 %v249
      %2036 = vmatmul.bf16.gmra.mxu0 %v2026
      %v2037 = vpop.f32.mrf.mxu0
      %v2038 = vadd.f32 0.0, %v2037
      %v2039 = vpop.f32.mrf.mxu0
      %v2040 = vadd.f32 0.0, %v2039
      %2041 = vdwg.mxu0
      %v2042 = vsel %vm243, %v2011, 0
      %2044 = vmatpush.bf16.msra.mxu0 0
      %2045 = vmatpush.bf16.msra.mxu0 0
      %2046 = vmatpush.bf16.msra.mxu0 0
      %2047 = vmatpush.bf16.msra.mxu0 0
      %2048 = vmatpush.bf16.msra.mxu0 0
      %2049 = vmatpush.bf16.msra.mxu0 0
      %2050 = vmatpush.bf16.msra.mxu0 0
      %2051 = vmatpush.bf16.msra.mxu0 %v268
      %2052 = vmatmul.bf16.gmra.mxu0 %v2042
      %v2053 = vpop.f32.mrf.mxu0
      %v2054 = vadd.f32 %v2038, %v2053
      %v2055 = vpop.f32.mrf.mxu0
      %v2056 = vadd.f32 %v2040, %v2055
      %2057 = vdwg.mxu0
      %v2058 = vld [vmem:[%s1599] sm:$0xe]
      %v2060 = vunpack.c.l.b16 %v2058
      %v2061 = vpack.c.b16 %v2009, %v2060
      %v2062 = vrot.slane %v2061, 1
      %v2063 = vrot.slane %v2012, 1
      %v2064 = vsel %vm288, %v2062, %v2063
      %v2066 = vsel %vm243, %v2064, 0
      %2068 = vmatpush.bf16.msra.mxu0 0
      %2069 = vmatpush.bf16.msra.mxu0 0
      %2070 = vmatpush.bf16.msra.mxu0 0
      %2071 = vmatpush.bf16.msra.mxu0 0
      %2072 = vmatpush.bf16.msra.mxu0 0
      %2073 = vmatpush.bf16.msra.mxu0 0
      %2074 = vmatpush.bf16.msra.mxu0 0
      %2075 = vmatpush.bf16.msra.mxu0 %v296
      %2076 = vmatmul.bf16.gmra.mxu0 %v2066
      %v2077 = vpop.f32.mrf.mxu0
      %v2078 = vadd.f32 0.0, %v2077
      %v2079 = vpop.f32.mrf.mxu0
      %v2080 = vadd.f32 0.0, %v2079
      %2081 = vdwg.mxu0
      %v2082 = vadd.f32 %v2054, %v2078
      %v2083 = vadd.f32 %v2056, %v2080
      %v2084 = vld [vmem:[%s1890] sm:$0xf]
      %v2085 = vld [vmem:[%s1890 + $0x4] sm:$0xf]
      %v2088 = vunpack.c.l.b16 %v2084
      %v2089 = vunpack.c.l.b16 %v2085
      %v2090 = vpack.c.b16 %v2089, %v2088
      %v2092 = vsel %vm243, %v2090, 0
      %2094 = vmatpush.bf16.msra.mxu0 0
      %2095 = vmatpush.bf16.msra.mxu0 0
      %2096 = vmatpush.bf16.msra.mxu0 0
      %2097 = vmatpush.bf16.msra.mxu0 0
      %2098 = vmatpush.bf16.msra.mxu0 0
      %2099 = vmatpush.bf16.msra.mxu0 0
      %2100 = vmatpush.bf16.msra.mxu0 0
      %2101 = vmatpush.bf16.msra.mxu0 %v329
      %2102 = vmatmul.bf16.gmra.mxu0 %v2092
      %v2103 = vpop.f32.mrf.mxu0
      %v2104 = vadd.f32 0.0, %v2103
      %v2105 = vpop.f32.mrf.mxu0
      %v2106 = vadd.f32 0.0, %v2105
      %2107 = vdwg.mxu0
      %v2108 = vadd.f32 %v2082, %v2104
      %v2109 = vadd.f32 %v2083, %v2106
      %v2110 = vld [vmem:[%s1890] sm:$0xf]
      %v2111 = vld [vmem:[%s1890 + $0x4] sm:$0xf]
      %v2112 = vld [vmem:[%s1890 + $0x8] sm:$0x1]
      %v2116 = vunpack.c.l.b16 %v2110
      %v2117 = vunpack.c.l.b16 %v2111
      %v2118 = vunpack.c.l.b16 %v2112
      %v2119 = vpack.c.b16 %v2117, %v2116
      %v2120 = vpack.c.b16 %v2118, %v2118
      %v2122 = vshrl.u32 %v2119, 16
      %v2124 = vshll.u32 %v2119, 16
      %v2126 = vrot.slane %v2124, 1
      %v2127 = vor.u32 %v2122, %v2126
      %v2129 = vshll.u32 %v2120, 16
      %v2131 = vrot.slane %v2129, 1
      %v2132 = vsel %vm230, %v2127, %v2131
      %v2134 = vsel %vm243, %v2132, 0
      %2136 = vmatpush.bf16.msra.mxu0 0
      %2137 = vmatpush.bf16.msra.mxu0 0
      %2138 = vmatpush.bf16.msra.mxu0 0
      %2139 = vmatpush.bf16.msra.mxu0 0
      %2140 = vmatpush.bf16.msra.mxu0 0
      %2141 = vmatpush.bf16.msra.mxu0 0
      %2142 = vmatpush.bf16.msra.mxu0 0
      %2143 = vmatpush.bf16.msra.mxu0 %v374
      %2144 = vmatmul.bf16.gmra.mxu0 %v2134
      %v2145 = vpop.f32.mrf.mxu0
      %v2146 = vadd.f32 0.0, %v2145
      %v2147 = vpop.f32.mrf.mxu0
      %v2148 = vadd.f32 0.0, %v2147
      %2149 = vdwg.mxu0
      %v2150 = vadd.f32 %v2108, %v2146
      %v2151 = vadd.f32 %v2109, %v2148
      %v2152 = vld [vmem:[%s1890] sm:$0xe]
      %v2154 = vunpack.c.l.b16 %v2152
      %v2155 = vpack.c.b16 %v2117, %v2154
      %v2156 = vrot.slane %v2155, 1
      %v2157 = vrot.slane %v2120, 1
      %v2158 = vsel %vm288, %v2156, %v2157
      %v2160 = vsel %vm243, %v2158, 0
      %2162 = vmatpush.bf16.msra.mxu0 0
      %2163 = vmatpush.bf16.msra.mxu0 0
      %2164 = vmatpush.bf16.msra.mxu0 0
      %2165 = vmatpush.bf16.msra.mxu0 0
      %2166 = vmatpush.bf16.msra.mxu0 0
      %2167 = vmatpush.bf16.msra.mxu0 0
      %2168 = vmatpush.bf16.msra.mxu0 0
      %2169 = vmatpush.bf16.msra.mxu0 %v403
      %2170 = vmatmul.bf16.gmra.mxu0 %v2160
      %v2171 = vpop.f32.mrf.mxu0
      %v2172 = vadd.f32 0.0, %v2171
      %v2173 = vpop.f32.mrf.mxu0
      %v2174 = vadd.f32 0.0, %v2173
      %2175 = vdwg.mxu0
      %v2176 = vadd.f32 %v2150, %v2172
      %v2177 = vadd.f32 %v2151, %v2174
      %s2178 = sadd.s32 %s197, 8
      %s2179 = smul.u32 %s2178, 3
      %s2180 = smul.addr %s2179, 4
      %s2181 = scalar_lea.vmem %s184, %s2180
      %v2182 = vld [vmem:[%s2181] sm:$0xf]
      %v2183 = vld [vmem:[%s2181 + $0x4] sm:$0xf]
      %v2186 = vunpack.c.l.b16 %v2182
      %v2187 = vunpack.c.l.b16 %v2183
      %v2188 = vpack.c.b16 %v2187, %v2186
      %v2190 = vsel %vm243, %v2188, 0
      %2192 = vmatpush.bf16.msra.mxu0 0
      %2193 = vmatpush.bf16.msra.mxu0 0
      %2194 = vmatpush.bf16.msra.mxu0 0
      %2195 = vmatpush.bf16.msra.mxu0 0
      %2196 = vmatpush.bf16.msra.mxu0 0
      %2197 = vmatpush.bf16.msra.mxu0 0
      %2198 = vmatpush.bf16.msra.mxu0 0
      %2199 = vmatpush.bf16.msra.mxu0 %v436
      %2200 = vmatmul.bf16.gmra.mxu0 %v2190
      %v2201 = vpop.f32.mrf.mxu0
      %v2202 = vadd.f32 0.0, %v2201
      %v2203 = vpop.f32.mrf.mxu0
      %v2204 = vadd.f32 0.0, %v2203
      %2205 = vdwg.mxu0
      %v2206 = vadd.f32 %v2176, %v2202
      %v2207 = vadd.f32 %v2177, %v2204
      %v2208 = vld [vmem:[%s2181] sm:$0xf]
      %v2209 = vld [vmem:[%s2181 + $0x4] sm:$0xf]
      %v2210 = vld [vmem:[%s2181 + $0x8] sm:$0x1]
      %v2214 = vunpack.c.l.b16 %v2208
      %v2215 = vunpack.c.l.b16 %v2209
      %v2216 = vunpack.c.l.b16 %v2210
      %v2217 = vpack.c.b16 %v2215, %v2214
      %v2218 = vpack.c.b16 %v2216, %v2216
      %v2220 = vshrl.u32 %v2217, 16
      %v2222 = vshll.u32 %v2217, 16
      %v2224 = vrot.slane %v2222, 1
      %v2225 = vor.u32 %v2220, %v2224
      %v2227 = vshll.u32 %v2218, 16
      %v2229 = vrot.slane %v2227, 1
      %v2230 = vsel %vm230, %v2225, %v2229
      %v2232 = vsel %vm243, %v2230, 0
      %2234 = vmatpush.bf16.msra.mxu0 0
      %2235 = vmatpush.bf16.msra.mxu0 0
      %2236 = vmatpush.bf16.msra.mxu0 0
      %2237 = vmatpush.bf16.msra.mxu0 0
      %2238 = vmatpush.bf16.msra.mxu0 0
      %2239 = vmatpush.bf16.msra.mxu0 0
      %2240 = vmatpush.bf16.msra.mxu0 0
      %2241 = vmatpush.bf16.msra.mxu0 %v481
      %2242 = vmatmul.bf16.gmra.mxu0 %v2232
      %v2243 = vpop.f32.mrf.mxu0
      %v2244 = vadd.f32 0.0, %v2243
      %v2245 = vpop.f32.mrf.mxu0
      %v2246 = vadd.f32 0.0, %v2245
      %2247 = vdwg.mxu0
      %v2248 = vadd.f32 %v2206, %v2244
      %v2249 = vadd.f32 %v2207, %v2246
      %v2250 = vld [vmem:[%s2181] sm:$0xe]
      %v2252 = vunpack.c.l.b16 %v2250
      %v2253 = vpack.c.b16 %v2215, %v2252
      %v2254 = vrot.slane %v2253, 1
      %v2255 = vrot.slane %v2218, 1
      %v2256 = vsel %vm288, %v2254, %v2255
      %v2258 = vsel %vm243, %v2256, 0
      %2260 = vmatpush.bf16.msra.mxu0 0
      %2261 = vmatpush.bf16.msra.mxu0 0
      %2262 = vmatpush.bf16.msra.mxu0 0
      %2263 = vmatpush.bf16.msra.mxu0 0
      %2264 = vmatpush.bf16.msra.mxu0 0
      %2265 = vmatpush.bf16.msra.mxu0 0
      %2266 = vmatpush.bf16.msra.mxu0 0
      %2267 = vmatpush.bf16.msra.mxu0 %v510
      %2268 = vmatmul.bf16.gmra.mxu0 %v2258
      %v2269 = vpop.f32.mrf.mxu0
      %v2270 = vadd.f32 0.0, %v2269
      %v2271 = vpop.f32.mrf.mxu0
      %v2272 = vadd.f32 0.0, %v2271
      %2273 = vdwg.mxu0
      %v2274 = vadd.f32 %v2248, %v2270
      %v2275 = vadd.f32 %v2249, %v2272
      %v2276 = vadd.f32 %v2274, %v529
      %v2277 = vadd.f32 %v2275, %v529
      %v2278 = vsub.f32 0.0, %v2276
      %v2279 = vsub.f32 0.0, %v2277
      %v2280 = vmul.f32 %v2278, 1.442695
      %v2281 = vpow.pop %v2280
      %v2282 = vmul.f32 %v2279, 1.442695
      %v2283 = vpow.pop %v2282
      %v2284 = vadd.f32 %v2281, 1.0
      %v2285 = vadd.f32 %v2283, 1.0
      %v2286 = vrcp.pop %v2284
      %v2287 = vrcp.pop %v2285
      %v2288 = vmul.f32 %v2276, %v2286
      %v2289 = vmul.f32 %v2277, %v2287
      %s2290 = scalar_lea.vmem %s194, 96
      %2291 = vst [vmem:[%s2290] sm:$0xff] %v2288
      %2292 = vst [vmem:[%s2290 + $0x8] sm:$0xff] %v2289
      %v2293 = vld [vmem:[%s1890] sm:$0xf]
      %v2294 = vld [vmem:[%s1890 + $0x4] sm:$0xf]
      %v2295 = vld [vmem:[%s1890 + $0x8] sm:$0x1]
      %v2299 = vunpack.c.l.b16 %v2293
      %v2300 = vunpack.c.l.b16 %v2294
      %v2301 = vunpack.c.l.b16 %v2295
      %v2302 = vpack.c.b16 %v2300, %v2299
      %v2303 = vpack.c.b16 %v2301, %v2301
      %v2305 = vshrl.u32 %v2302, 16
      %v2307 = vshll.u32 %v2302, 16
      %v2309 = vrot.slane %v2307, 1
      %v2310 = vor.u32 %v2305, %v2309
      %v2312 = vshll.u32 %v2303, 16
      %v2314 = vrot.slane %v2312, 1
      %v2315 = vsel %vm230, %v2310, %v2314
      %v2317 = vsel %vm243, %v2315, 0
      %2319 = vmatpush.bf16.msra.mxu0 0
      %2320 = vmatpush.bf16.msra.mxu0 0
      %2321 = vmatpush.bf16.msra.mxu0 0
      %2322 = vmatpush.bf16.msra.mxu0 0
      %2323 = vmatpush.bf16.msra.mxu0 0
      %2324 = vmatpush.bf16.msra.mxu0 0
      %2325 = vmatpush.bf16.msra.mxu0 0
      %2326 = vmatpush.bf16.msra.mxu0 %v249
      %2327 = vmatmul.bf16.gmra.mxu0 %v2317
      %v2328 = vpop.f32.mrf.mxu0
      %v2329 = vadd.f32 0.0, %v2328
      %v2330 = vpop.f32.mrf.mxu0
      %v2331 = vadd.f32 0.0, %v2330
      %2332 = vdwg.mxu0
      %v2333 = vsel %vm243, %v2302, 0
      %2335 = vmatpush.bf16.msra.mxu0 0
      %2336 = vmatpush.bf16.msra.mxu0 0
      %2337 = vmatpush.bf16.msra.mxu0 0
      %2338 = vmatpush.bf16.msra.mxu0 0
      %2339 = vmatpush.bf16.msra.mxu0 0
      %2340 = vmatpush.bf16.msra.mxu0 0
      %2341 = vmatpush.bf16.msra.mxu0 0
      %2342 = vmatpush.bf16.msra.mxu0 %v268
      %2343 = vmatmul.bf16.gmra.mxu0 %v2333
      %v2344 = vpop.f32.mrf.mxu0
      %v2345 = vadd.f32 %v2329, %v2344
      %v2346 = vpop.f32.mrf.mxu0
      %v2347 = vadd.f32 %v2331, %v2346
      %2348 = vdwg.mxu0
      %v2349 = vld [vmem:[%s1890] sm:$0xe]
      %v2351 = vunpack.c.l.b16 %v2349
      %v2352 = vpack.c.b16 %v2300, %v2351
      %v2353 = vrot.slane %v2352, 1
      %v2354 = vrot.slane %v2303, 1
      %v2355 = vsel %vm288, %v2353, %v2354
      %v2357 = vsel %vm243, %v2355, 0
      %2359 = vmatpush.bf16.msra.mxu0 0
      %2360 = vmatpush.bf16.msra.mxu0 0
      %2361 = vmatpush.bf16.msra.mxu0 0
      %2362 = vmatpush.bf16.msra.mxu0 0
      %2363 = vmatpush.bf16.msra.mxu0 0
      %2364 = vmatpush.bf16.msra.mxu0 0
      %2365 = vmatpush.bf16.msra.mxu0 0
      %2366 = vmatpush.bf16.msra.mxu0 %v296
      %2367 = vmatmul.bf16.gmra.mxu0 %v2357
      %v2368 = vpop.f32.mrf.mxu0
      %v2369 = vadd.f32 0.0, %v2368
      %v2370 = vpop.f32.mrf.mxu0
      %v2371 = vadd.f32 0.0, %v2370
      %2372 = vdwg.mxu0
      %v2373 = vadd.f32 %v2345, %v2369
      %v2374 = vadd.f32 %v2347, %v2371
      %v2375 = vld [vmem:[%s2181] sm:$0xf]
      %v2376 = vld [vmem:[%s2181 + $0x4] sm:$0xf]
      %v2379 = vunpack.c.l.b16 %v2375
      %v2380 = vunpack.c.l.b16 %v2376
      %v2381 = vpack.c.b16 %v2380, %v2379
      %v2383 = vsel %vm243, %v2381, 0
      %2385 = vmatpush.bf16.msra.mxu0 0
      %2386 = vmatpush.bf16.msra.mxu0 0
      %2387 = vmatpush.bf16.msra.mxu0 0
      %2388 = vmatpush.bf16.msra.mxu0 0
      %2389 = vmatpush.bf16.msra.mxu0 0
      %2390 = vmatpush.bf16.msra.mxu0 0
      %2391 = vmatpush.bf16.msra.mxu0 0
      %2392 = vmatpush.bf16.msra.mxu0 %v329
      %2393 = vmatmul.bf16.gmra.mxu0 %v2383
      %v2394 = vpop.f32.mrf.mxu0
      %v2395 = vadd.f32 0.0, %v2394
      %v2396 = vpop.f32.mrf.mxu0
      %v2397 = vadd.f32 0.0, %v2396
      %2398 = vdwg.mxu0
      %v2399 = vadd.f32 %v2373, %v2395
      %v2400 = vadd.f32 %v2374, %v2397
      %v2401 = vld [vmem:[%s2181] sm:$0xf]
      %v2402 = vld [vmem:[%s2181 + $0x4] sm:$0xf]
      %v2403 = vld [vmem:[%s2181 + $0x8] sm:$0x1]
      %v2407 = vunpack.c.l.b16 %v2401
      %v2408 = vunpack.c.l.b16 %v2402
      %v2409 = vunpack.c.l.b16 %v2403
      %v2410 = vpack.c.b16 %v2408, %v2407
      %v2411 = vpack.c.b16 %v2409, %v2409
      %v2413 = vshrl.u32 %v2410, 16
      %v2415 = vshll.u32 %v2410, 16
      %v2417 = vrot.slane %v2415, 1
      %v2418 = vor.u32 %v2413, %v2417
      %v2420 = vshll.u32 %v2411, 16
      %v2422 = vrot.slane %v2420, 1
      %v2423 = vsel %vm230, %v2418, %v2422
      %v2425 = vsel %vm243, %v2423, 0
      %2427 = vmatpush.bf16.msra.mxu0 0
      %2428 = vmatpush.bf16.msra.mxu0 0
      %2429 = vmatpush.bf16.msra.mxu0 0
      %2430 = vmatpush.bf16.msra.mxu0 0
      %2431 = vmatpush.bf16.msra.mxu0 0
      %2432 = vmatpush.bf16.msra.mxu0 0
      %2433 = vmatpush.bf16.msra.mxu0 0
      %2434 = vmatpush.bf16.msra.mxu0 %v374
      %2435 = vmatmul.bf16.gmra.mxu0 %v2425
      %v2436 = vpop.f32.mrf.mxu0
      %v2437 = vadd.f32 0.0, %v2436
      %v2438 = vpop.f32.mrf.mxu0
      %v2439 = vadd.f32 0.0, %v2438
      %2440 = vdwg.mxu0
      %v2441 = vadd.f32 %v2399, %v2437
      %v2442 = vadd.f32 %v2400, %v2439
      %v2443 = vld [vmem:[%s2181] sm:$0xe]
      %v2445 = vunpack.c.l.b16 %v2443
      %v2446 = vpack.c.b16 %v2408, %v2445
      %v2447 = vrot.slane %v2446, 1
      %v2448 = vrot.slane %v2411, 1
      %v2449 = vsel %vm288, %v2447, %v2448
      %v2451 = vsel %vm243, %v2449, 0
      %2453 = vmatpush.bf16.msra.mxu0 0
      %2454 = vmatpush.bf16.msra.mxu0 0
      %2455 = vmatpush.bf16.msra.mxu0 0
      %2456 = vmatpush.bf16.msra.mxu0 0
      %2457 = vmatpush.bf16.msra.mxu0 0
      %2458 = vmatpush.bf16.msra.mxu0 0
      %2459 = vmatpush.bf16.msra.mxu0 0
      %2460 = vmatpush.bf16.msra.mxu0 %v403
      %2461 = vmatmul.bf16.gmra.mxu0 %v2451
      %v2462 = vpop.f32.mrf.mxu0
      %v2463 = vadd.f32 0.0, %v2462
      %v2464 = vpop.f32.mrf.mxu0
      %v2465 = vadd.f32 0.0, %v2464
      %2466 = vdwg.mxu0
      %v2467 = vadd.f32 %v2441, %v2463
      %v2468 = vadd.f32 %v2442, %v2465
      %s2469 = sadd.s32 %s197, 9
      %s2470 = smul.u32 %s2469, 3
      %s2471 = smul.addr %s2470, 4
      %s2472 = scalar_lea.vmem %s184, %s2471
      %v2473 = vld [vmem:[%s2472] sm:$0xf]
      %v2474 = vld [vmem:[%s2472 + $0x4] sm:$0xf]
      %v2477 = vunpack.c.l.b16 %v2473
      %v2478 = vunpack.c.l.b16 %v2474
      %v2479 = vpack.c.b16 %v2478, %v2477
      %v2481 = vsel %vm243, %v2479, 0
      %2483 = vmatpush.bf16.msra.mxu0 0
      %2484 = vmatpush.bf16.msra.mxu0 0
      %2485 = vmatpush.bf16.msra.mxu0 0
      %2486 = vmatpush.bf16.msra.mxu0 0
      %2487 = vmatpush.bf16.msra.mxu0 0
      %2488 = vmatpush.bf16.msra.mxu0 0
      %2489 = vmatpush.bf16.msra.mxu0 0
      %2490 = vmatpush.bf16.msra.mxu0 %v436
      %2491 = vmatmul.bf16.gmra.mxu0 %v2481
      %v2492 = vpop.f32.mrf.mxu0
      %v2493 = vadd.f32 0.0, %v2492
      %v2494 = vpop.f32.mrf.mxu0
      %v2495 = vadd.f32 0.0, %v2494
      %2496 = vdwg.mxu0
      %v2497 = vadd.f32 %v2467, %v2493
      %v2498 = vadd.f32 %v2468, %v2495
      %v2499 = vld [vmem:[%s2472] sm:$0xf]
      %v2500 = vld [vmem:[%s2472 + $0x4] sm:$0xf]
      %v2501 = vld [vmem:[%s2472 + $0x8] sm:$0x1]
      %v2505 = vunpack.c.l.b16 %v2499
      %v2506 = vunpack.c.l.b16 %v2500
      %v2507 = vunpack.c.l.b16 %v2501
      %v2508 = vpack.c.b16 %v2506, %v2505
      %v2509 = vpack.c.b16 %v2507, %v2507
      %v2511 = vshrl.u32 %v2508, 16
      %v2513 = vshll.u32 %v2508, 16
      %v2515 = vrot.slane %v2513, 1
      %v2516 = vor.u32 %v2511, %v2515
      %v2518 = vshll.u32 %v2509, 16
      %v2520 = vrot.slane %v2518, 1
      %v2521 = vsel %vm230, %v2516, %v2520
      %v2523 = vsel %vm243, %v2521, 0
      %2525 = vmatpush.bf16.msra.mxu0 0
      %2526 = vmatpush.bf16.msra.mxu0 0
      %2527 = vmatpush.bf16.msra.mxu0 0
      %2528 = vmatpush.bf16.msra.mxu0 0
      %2529 = vmatpush.bf16.msra.mxu0 0
      %2530 = vmatpush.bf16.msra.mxu0 0
      %2531 = vmatpush.bf16.msra.mxu0 0
      %2532 = vmatpush.bf16.msra.mxu0 %v481
      %2533 = vmatmul.bf16.gmra.mxu0 %v2523
      %v2534 = vpop.f32.mrf.mxu0
      %v2535 = vadd.f32 0.0, %v2534
      %v2536 = vpop.f32.mrf.mxu0
      %v2537 = vadd.f32 0.0, %v2536
      %2538 = vdwg.mxu0
      %v2539 = vadd.f32 %v2497, %v2535
      %v2540 = vadd.f32 %v2498, %v2537
      %v2541 = vld [vmem:[%s2472] sm:$0xe]
      %v2543 = vunpack.c.l.b16 %v2541
      %v2544 = vpack.c.b16 %v2506, %v2543
      %v2545 = vrot.slane %v2544, 1
      %v2546 = vrot.slane %v2509, 1
      %v2547 = vsel %vm288, %v2545, %v2546
      %v2549 = vsel %vm243, %v2547, 0
      %2551 = vmatpush.bf16.msra.mxu0 0
      %2552 = vmatpush.bf16.msra.mxu0 0
      %2553 = vmatpush.bf16.msra.mxu0 0
      %2554 = vmatpush.bf16.msra.mxu0 0
      %2555 = vmatpush.bf16.msra.mxu0 0
      %2556 = vmatpush.bf16.msra.mxu0 0
      %2557 = vmatpush.bf16.msra.mxu0 0
      %2558 = vmatpush.bf16.msra.mxu0 %v510
      %2559 = vmatmul.bf16.gmra.mxu0 %v2549
      %v2560 = vpop.f32.mrf.mxu0
      %v2561 = vadd.f32 0.0, %v2560
      %v2562 = vpop.f32.mrf.mxu0
      %v2563 = vadd.f32 0.0, %v2562
      %2564 = vdwg.mxu0
      %v2565 = vadd.f32 %v2539, %v2561
      %v2566 = vadd.f32 %v2540, %v2563
      %v2567 = vadd.f32 %v2565, %v529
      %v2568 = vadd.f32 %v2566, %v529
      %v2569 = vsub.f32 0.0, %v2567
      %v2570 = vsub.f32 0.0, %v2568
      %v2571 = vmul.f32 %v2569, 1.442695
      %v2572 = vpow.pop %v2571
      %v2573 = vmul.f32 %v2570, 1.442695
      %v2574 = vpow.pop %v2573
      %v2575 = vadd.f32 %v2572, 1.0
      %v2576 = vadd.f32 %v2574, 1.0
      %v2577 = vrcp.pop %v2575
      %v2578 = vrcp.pop %v2576
      %v2579 = vmul.f32 %v2567, %v2577
      %v2580 = vmul.f32 %v2568, %v2578
      %s2581 = scalar_lea.vmem %s194, 112
      %2582 = vst [vmem:[%s2581] sm:$0xff] %v2579
      %2583 = vst [vmem:[%s2581 + $0x8] sm:$0xff] %v2580
      %s2584 = smul.u32 8, %s19
      %p2585 = scmp.lt.s32.totalorder %s18, 1
      %s2586 = scalar_select %p2585, %s18, 1
      %p2587 = scmp.lt.s32.totalorder %s2584, 15
      %s2588 = scalar_select %p2587, %s2584, 15
      %s2589 = smul.addr %s2588, 2
      %s2590 = smul.addr %s2586, 32
      %s2591 = sadd.s32 %s2589, %s2590
      %s2592 = smul.addr %s2591, 8
      %s2593 = scalar_lea.vmem %s3, %s2592
      // Predicated region
      $region33: #{conv_bn_silu_forward.1} parent=31 // pred_check
        %p2594 = pneg %p114
      $region34: #{conv_bn_silu_forward.1} parent=31 // pred_check_branch
        %2596 = sbr.rel (%p2594) target = $region36
      $region35: #{conv_bn_silu_forward.1} parent=31 // pred_region
        %s2597 = smul.u32 8, %s19
      $region36: #{conv_bn_silu_forward.1} parent=31 // pred_fallthru
        _
    $region32: #{conv_bn_silu_forward.1} parent=5 // pred_fallthru
      _
    %p2598 = scmp.le.s32.totalorder 2, %s9
    // Predicated region
    $region37: #{conv_bn_silu_forward.1} parent=5 // pred_check
      %p2599 = pneg %p2598
    $region38: #{conv_bn_silu_forward.1} parent=5 // pred_check_branch
      %2601 = sbr.rel (%p2599) target = $region40
    $region39: #{conv_bn_silu_forward.1} parent=5 // pred_region
      %s2602 = ssub.s32 %s9, 2
      // Predicated region
      $region41: #{conv_bn_silu_forward.1} parent=39 // pred_check
        %p2603 = pneg %p120
      $region42: #{conv_bn_silu_forward.1} parent=39 // pred_check_branch
        %2605 = sbr.rel (%p2603) target = $region44
      $region43: #{conv_bn_silu_forward.1} parent=39 // pred_region
        %s2606 = smul.u32 8, %s21
        %p2607 = scmp.lt.s32.totalorder %s20, 1
        %s2608 = scalar_select %p2607, %s20, 1
        %p2609 = scmp.lt.s32.totalorder %s2606, 15
        %s2610 = scalar_select %p2609, %s2606, 15
        %s2611 = smul.addr %s2610, 2
        %s2612 = smul.addr %s2608, 32
        %s2613 = sadd.s32 %s2611, %s2612
        %s2614 = smul.addr %s2613, 8
        %s2615 = scalar_lea.vmem %s3, %s2614
      $region44: #{conv_bn_silu_forward.1} parent=39 // pred_fallthru
        _
    $region40: #{conv_bn_silu_forward.1} parent=5 // pred_fallthru
      _
  $region6: #{conv_bn_silu_forward.1} parent=0 // loop_footer
    %s13 = sadd.s32 1, %s9
  $region7: #{conv_bn_silu_forward.1} parent=0 // loop_footer_branch
    %8 = sbr.rel target = $region3
  $region8: #{conv_bn_silu_forward.1} parent=0 // loop_exit
    _

</llo_original>
